<compile_context>
chip_gen: v7x
topology: tpu7x:2x2x1
jax: 0.10.0
libtpu: 0.0.40
codegen_flags: <defaults>
</compile_context>

<pallas_src>
import functools

import numpy as np
import jax
import jax.numpy as jnp
from jax import lax
from jax.experimental import pallas as pl
from jax.experimental.pallas import tpu as pltpu

_NEG_INF = float("-inf")


# ----------------------------------------------------------------------------
# Static slab layout (pure Python ints; shared by fold_params and the wrapper)
# ----------------------------------------------------------------------------
def make_layout(c1, c2):
    c_ = int(2 * c2 * 0.5)   # = c2

    def rnd(x, m):
        return ((x + m - 1) // m) * m

    # name -> (rows, K) for the transposed dense weights the kernel consumes.
    wblocks = [('w1', c_, c1), ('w2', c_, c1), ('w3', c_, 9 * c_),
               ('w4', c_, c_),
               ('w5a', c_, c_), ('w5b', c_, c_), ('w5c', c_, c_), ('w5d', c_, c_),
               ('w6', c_, 9 * c_),
               ('w7a', c2, c_), ('w7b', c2, c_)]
    woff, off, kmax = {}, 0, 0
    for name, rows, k in wblocks:
        woff[name] = (off, rows, k)
        off += rnd(rows, 16)          # 16-row alignment for the bf16 slab
        kmax = max(kmax, k)
    wrows = rnd(off, 16)
    kpad = rnd(kmax, 128)             # lane-dense weight slab

    bblocks = [('b1', c_), ('b2', c_), ('b3', c_), ('b4', c_),
               ('b5', c_), ('b6', c_), ('b7', c2)]
    boff, off = {}, 0
    for name, rows in bblocks:
        boff[name] = (off, rows)
        off += rnd(rows, 8)
    brows = rnd(off, 8)

    return dict(c1=c1, c_=c_, c2=c2, woff=woff, wrows=wrows, kpad=kpad,
                boff=boff, brows=brows)


def _pick_block_batch(B):
    # Pack 2-4 images per grid step (amortizes ~0.35us/step overhead and the
    # fixed cost of every roll/mask/MXU push); prefer an even grid so v7x's
    # two TensorCores both get work.
    for bb in (4, 3, 2):
        if B % bb == 0 and (B // bb) % 2 == 0:
            return bb
    for bb in (4, 3, 2):
        if B % bb == 0:
            return bb
    return 1


# ----------------------------------------------------------------------------
# Fused Pallas kernel: whole simple_SPP forward for bb lane-packed images.
# ----------------------------------------------------------------------------
def _spp_fused_kernel(x_ref, w_ref, b_ref, o_ref, tap_ref, *, H, W, meta):
    c_ = meta['c_']
    N = H * W
    Ntot = x_ref.shape[-1]                    # bb * N (images packed on lanes)
    bf16 = jnp.bfloat16
    x = x_ref[0]                              # (c1, Ntot) f32

    # ---- hoisted, specialized, memoized border masks ------------------------
    lane = lax.broadcasted_iota(jnp.int32, (c_, Ntot), 1)
    local = lane % N                          # per-image flat index h*W + w
    col = local % W                           # per-image column index
    mask_cache = {}

    def tap_mask(dh, dw):
        key = (dh, dw)
        if key not in mask_cache:
            off = dh * W + dw
            conds = []
            if dw > 0:                        # pure-row / mixed: column bound
                conds.append(col < W - dw)
            elif dw < 0:
                conds.append(col >= -dw)
            if dh > 0:                        # pure-col / mixed: flat bound
                conds.append(local < N - off)
            elif dh < 0:
                conds.append(local >= -off)
            m = conds[0]
            for c in conds[1:]:
                m = m & c
            mask_cache[key] = m
        return mask_cache[key]

    def shift_tap(a, dh, dw, fill):
        # a[:, n] -> a[:, n + dh*W + dw]; out-of-image positions = fill.
        off = dh * W + dw
        if off == 0:
            return a
        s = pltpu.roll(a, shift=(-off) % Ntot, axis=1)
        return jnp.where(tap_mask(dh, dw), s, fill)

    # ---- weight / bias slab accessors (static offsets) ----------------------
    def W_(name):
        off, rows, k = meta['woff'][name]
        return w_ref[pl.ds(off, rows), pl.ds(0, k)]          # bf16 (rows, k)

    def B_(name):
        off, rows = meta['boff'][name]
        return b_ref[pl.ds(off, rows), :]                    # f32 (rows, 1)

    def bias_silu(y, b):
        y = y + b                                            # lane broadcast
        # sigmoid = 1/(1+exp(-y)); exp and the approx reciprocal both go to
        # the EUP slot, keeping the divide off the (saturated) VPU.
        return y * pl.reciprocal(1.0 + jnp.exp(-y), approx=True)

    def conv1x1(wname, bname, a):
        y = jnp.dot(W_(wname), a.astype(bf16),
                    preferred_element_type=jnp.float32)
        return bias_silu(y, B_(bname))

    def hetconv3(wname, bname, a):
        # 9 shifted taps into the (9*c_, Ntot) VMEM slab, one K = 9*c_ matmul.
        for t in range(9):
            dh, dw = t // 3 - 1, t % 3 - 1
            tap_ref[pl.ds(t * c_, c_), :] = \
                shift_tap(a, dh, dw, 0.0).astype(tap_ref.dtype)
        y = jnp.dot(W_(wname), tap_ref[...],
                    preferred_element_type=jnp.float32)
        return bias_silu(y, B_(bname))

    def maxpool5(a):
        # Separable 5x5 / stride-1 / pad-2 max-pool (row pass, then col pass).
        r = a
        for dw in (-2, -1, 1, 2):
            r = jnp.maximum(r, shift_tap(a, 0, dw, _NEG_INF))
        out = r
        for dh in (-2, -1, 1, 2):
            out = jnp.maximum(out, shift_tap(r, dh, 0, _NEG_INF))
        return out

    # ---- simple_SPP.forward --------------------------------------------------
    t1 = conv1x1('w1', 'b1', x)                              # cv1
    t1 = hetconv3('w3', 'b3', t1)                            # cv3 (HetConv)
    x1 = conv1x1('w4', 'b4', t1)                             # cv4
    x2 = maxpool5(x1)                                        # m
    x3 = maxpool5(x2)                                        # m
    x4 = maxpool5(x3)                                        # m
    # cv5 on concat([x1,x2,x3,x4]) -> split-weight partial matmuls (no concat)
    y = (jnp.dot(W_('w5a'), x1.astype(bf16), preferred_element_type=jnp.float32) +
         jnp.dot(W_('w5b'), x2.astype(bf16), preferred_element_type=jnp.float32) +
         jnp.dot(W_('w5c'), x3.astype(bf16), preferred_element_type=jnp.float32) +
         jnp.dot(W_('w5d'), x4.astype(bf16), preferred_element_type=jnp.float32))
    y1 = hetconv3('w6', 'b6', bias_silu(y, B_('b5')))        # cv5 -> cv6
    y2 = conv1x1('w2', 'b2', x)                              # cv2
    # cv7 on concat([y1,y2]) -> split-weight partial matmuls (no concat)
    out = (jnp.dot(W_('w7a'), y1.astype(bf16), preferred_element_type=jnp.float32) +
           jnp.dot(W_('w7b'), y2.astype(bf16), preferred_element_type=jnp.float32))
    o_ref[0] = bias_silu(out, B_('b7'))                      # (c2, Ntot)


# ----------------------------------------------------------------------------
# Wrapper
# ----------------------------------------------------------------------------
def simple_spp_forward(x_nchw, wslab, bslab, *, meta):
    B, c1, H, W = x_nchw.shape
    N = H * W
    c_, c2 = meta['c_'], meta['c2']
    bb = _pick_block_batch(B)
    G = B // bb
    Ntot = bb * N

    # NCHW -> (G, c1, bb*N): pack bb images along the lane axis (one wrapper
    # transpose; in-kernel masks use pos % N so shifts never leak across
    # packed-image boundaries).
    x = x_nchw.reshape(G, bb, c1, N).transpose(0, 2, 1, 3).reshape(G, c1, Ntot)

    # bf16 tap slab only when c_ is a multiple of 16 (bf16 sublane-tile
    # alignment); otherwise f32 to keep the slab writes as full unmasked vst.
    tap_dtype = jnp.bfloat16 if (c_ % 16 == 0) else jnp.float32

    kernel = functools.partial(_spp_fused_kernel, H=H, W=W, meta=meta)
    out = pl.pallas_call(
        kernel,
        out_shape=jax.ShapeDtypeStruct((G, c2, Ntot), jnp.float32),
        grid=(G,),
        in_specs=[pl.BlockSpec((1, c1, Ntot), lambda i: (i, 0, 0)),
                  pl.BlockSpec(wslab.shape, lambda i: (0, 0)),
                  pl.BlockSpec(bslab.shape, lambda i: (0, 0))],
        out_specs=pl.BlockSpec((1, c2, Ntot), lambda i: (i, 0, 0)),
        scratch_shapes=[pltpu.VMEM((9 * c_, Ntot), tap_dtype)],
        compiler_params=pltpu.CompilerParams(
            dimension_semantics=("parallel",),
            vmem_limit_bytes=32 * 1024 * 1024),
    )(x, wslab, bslab)

    out = out.reshape(G, c2, bb, N).transpose(0, 2, 1, 3).reshape(B, c2, H, W)
    return out


# ----------------------------------------------------------------------------
# Parameter construction (deterministic, synthetic)
# ----------------------------------------------------------------------------
def _bn_params(key, c):
    k1, k2, k3, k4 = jax.random.split(key, 4)
    gamma = jax.random.uniform(k1, (c,), jnp.float32, 0.5, 1.5)
    beta = 0.1 * jax.random.normal(k2, (c,), jnp.float32)
    mean = 0.1 * jax.random.normal(k3, (c,), jnp.float32)
    var = jax.random.uniform(k4, (c,), jnp.float32, 0.5, 1.5)
    return gamma, beta, mean, var


def _conv_w(key, cin, cout, k, g):
    # HWIO grouped weight: (k, k, cin // g, cout)
    return 0.1 * jax.random.normal(key, (k, k, cin // g, cout), jnp.float32)


def dense_from_grouped(wg, g):
    """Embed a grouped HWIO weight into an equivalent block-diagonal dense one."""
    kh, kw, cing, cout = wg.shape
    cin, coutg = cing * g, cout // g
    wd = np.zeros((kh, kw, cin, cout), np.float32)
    wg_np = np.asarray(wg)
    for gi in range(g):
        wd[:, :, gi * cing:(gi + 1) * cing, gi * coutg:(gi + 1) * coutg] = \
            wg_np[:, :, :, gi * coutg:(gi + 1) * coutg]
    return jnp.asarray(wd)


def init_params(key, c1, c2):
    c_ = int(2 * c2 * 0.5)   # = c2
    conv_defs = {   # name: (cin, cout, k, groups, bn_eps)
        'cv1': (c1, c_, 1, 4, 1e-5),
        'cv2': (c1, c_, 1, 4, 1e-5),
        'cv4': (c_, c_, 1, 4, 1e-5),
        'cv5': (4 * c_, c_, 1, 4, 1e-5),
        'cv7': (2 * c_, c2, 1, 4, 1e-5),
    }
    het_defs = {    # name: (cin, cout, groups, bn_eps)  -- simple_Conv (HetConv)
        'cv3': (c_, c_, 4, 1e-3),
        'cv6': (c_, c_, 4, 1e-3),
    }
    keys = jax.random.split(key, 16)
    ki, raw = 0, {}
    for name, (cin, cout, k, g, eps) in conv_defs.items():
        wg = _conv_w(keys[ki], cin, cout, k, g); ki += 1
        bn = _bn_params(keys[ki], cout); ki += 1
        raw[name] = dict(wg=wg, bn=bn, g=g, eps=eps)
    for name, (cin, cout, g, eps) in het_defs.items():
        w3g = _conv_w(keys[ki], cin, cout, 3, g); ki += 1
        w1 = _conv_w(keys[ki], cin, cout, 1, 1); ki += 1
        bn = _bn_params(keys[ki], cout); ki += 1
        raw[name] = dict(w3g=w3g, w1=w1, bn=bn, g=g, eps=eps)
    return raw


def _fold_bn(bn, eps):
    gamma, beta, mean, var = bn
    s = gamma / jnp.sqrt(var + eps)
    return s, beta - mean * s


def fold_params(raw, meta):
    """Fold eval-mode BN into transposed dense weights/biases, pack into slabs."""
    c_ = meta['c_']

    def fold_1x1(d):
        s, b = _fold_bn(d['bn'], d['eps'])
        wd = dense_from_grouped(d['wg'], d['g'])[0, 0]      # (Cin, Cout)
        wt = (wd * s[None, :]).T                            # (Cout, Cin)
        return np.asarray(wt), np.asarray(b)

    def fold_het(d):
        s, b = _fold_bn(d['bn'], d['eps'])
        w3d = dense_from_grouped(d['w3g'], d['g'])          # (3, 3, Cin, Cout)
        w3d = w3d.at[1, 1].add(d['w1'][0, 0])               # pwc into centre tap
        w3d = w3d * s[None, None, None, :]
        cin, cout = w3d.shape[2], w3d.shape[3]
        # (Cout, 9*Cin), tap t = kh*3 + kw occupies columns [t*Cin:(t+1)*Cin]
        wt = jnp.transpose(w3d, (3, 0, 1, 2)).reshape(cout, 9 * cin)
        return np.asarray(wt), np.asarray(b)

    Wt, Bv = {}, {}
    Wt['w1'], Bv['b1'] = fold_1x1(raw['cv1'])
    Wt['w2'], Bv['b2'] = fold_1x1(raw['cv2'])
    Wt['w4'], Bv['b4'] = fold_1x1(raw['cv4'])
    w5, Bv['b5'] = fold_1x1(raw['cv5'])                     # (c_, 4*c_)
    Wt['w5a'], Wt['w5b'], Wt['w5c'], Wt['w5d'] = (
        w5[:, 0 * c_:1 * c_], w5[:, 1 * c_:2 * c_],
        w5[:, 2 * c_:3 * c_], w5[:, 3 * c_:4 * c_])
    w7, Bv['b7'] = fold_1x1(raw['cv7'])                     # (c2, 2*c_)
    Wt['w7a'], Wt['w7b'] = w7[:, :c_], w7[:, c_:]
    Wt['w3'], Bv['b3'] = fold_het(raw['cv3'])
    Wt['w6'], Bv['b6'] = fold_het(raw['cv6'])

    wslab = np.zeros((meta['wrows'], meta['kpad']), np.float32)
    for name, (off, rows, k) in meta['woff'].items():
        wslab[off:off + rows, :k] = Wt[name]
    bslab = np.zeros((meta['brows'], 1), np.float32)
    for name, (off, rows) in meta['boff'].items():
        bslab[off:off + rows, 0] = Bv[name]

    # bf16 weights: MXU-native dot operands on v5e/v6e/v7x; accumulation and
    # the bias+SiLU epilogue stay f32 in the kernel.
    return jnp.asarray(wslab, dtype=jnp.bfloat16), jnp.asarray(bslab, dtype=jnp.float32)


# ----------------------------------------------------------------------------
# Pure-JAX reference (grouped convs via lax) for a smoke check
# ----------------------------------------------------------------------------
_DN = ('NHWC', 'HWIO', 'NHWC')


def _ref_conv(x, d, pad):
    y = lax.conv_general_dilated(x, d['wg'], (1, 1), [(pad, pad)] * 2,
                                 dimension_numbers=_DN,
                                 feature_group_count=d['g'],
                                 precision=lax.Precision.HIGHEST)
    gamma, beta, mean, var = d['bn']
    s = gamma / jnp.sqrt(var + d['eps'])
    y = y * s + (beta - mean * s)
    return y * jax.nn.sigmoid(y)


def _ref_het(x, d):
    y = lax.conv_general_dilated(x, d['w3g'], (1, 1), [(1, 1), (1, 1)],
                                 dimension_numbers=_DN,
                                 feature_group_count=d['g'],
                                 precision=lax.Precision.HIGHEST)
    y = y + lax.conv_general_dilated(x, d['w1'], (1, 1), [(0, 0), (0, 0)],
                                     dimension_numbers=_DN,
                                     precision=lax.Precision.HIGHEST)
    gamma, beta, mean, var = d['bn']
    s = gamma / jnp.sqrt(var + d['eps'])
    y = y * s + (beta - mean * s)
    return y * jax.nn.sigmoid(y)


def _ref_pool(x):
    return lax.reduce_window(x, -jnp.inf, lax.max, (1, 5, 5, 1), (1, 1, 1, 1),
                             ((0, 0), (2, 2), (2, 2), (0, 0)))


def simple_spp_reference(x_nchw, raw):
    x = jnp.transpose(x_nchw, (0, 2, 3, 1))
    t = _ref_conv(x, raw['cv1'], 0)
    t = _ref_het(t, raw['cv3'])
    x1 = _ref_conv(t, raw['cv4'], 0)
    x2 = _ref_pool(x1)
    x3 = _ref_pool(x2)
    x4 = _ref_pool(x3)
    y1 = _ref_conv(jnp.concatenate([x1, x2, x3, x4], -1), raw['cv5'], 0)
    y1 = _ref_het(y1, raw['cv6'])
    y2 = _ref_conv(x, raw['cv2'], 0)
    out = _ref_conv(jnp.concatenate([y1, y2], -1), raw['cv7'], 0)
    return jnp.transpose(out, (0, 3, 1, 2))


# ----------------------------------------------------------------------------
if __name__ == "__main__":
    key = jax.random.PRNGKey(0)
    B, c1, c2, H, W = 2, 8, 8, 16, 16
    kx, kp = jax.random.split(key)
    x = jax.random.normal(kx, (B, c1, H, W), jnp.float32)       # NCHW input

    raw = init_params(kp, c1, c2)
    meta = make_layout(c1, c2)
    wslab, bslab = fold_params(raw, meta)

    fwd = jax.jit(functools.partial(simple_spp_forward, meta=meta))
    out = jax.block_until_ready(fwd(x, wslab, bslab))
    assert out.shape == (B, c2, H, W), out.shape

    ref = simple_spp_reference(x, raw)
    np.testing.assert_allclose(np.asarray(out), np.asarray(ref),
                               rtol=5e-2, atol=5e-2)
    print("KERNEL_OK")
</pallas_src>

<mosaic_0001>
module attributes {stable_mosaic.version = 11 : i64} {
  func.func @_spp_fused_kernel(%arg0: i32, %arg1: memref<1x8x512xf32, #tpu.memory_space<vmem>>, %arg2: memref<176x128xbf16, #tpu.memory_space<vmem>>, %arg3: memref<56x1xf32, #tpu.memory_space<vmem>>, %arg4: memref<1x8x512xf32, #tpu.memory_space<vmem>>, %arg5: memref<72x512xf32, #tpu.memory_space<vmem>>) attributes {dimension_semantics = [#tpu.dimension_semantics<parallel>], iteration_bounds = array<i64: 1>, scalar_prefetch = 0 : i64, scratch_operands = 1 : i64, tpu.core_type = #tpu.core_type<tc>, window_params = [{transform_indices = @transform_0, window_bounds = array<i64: 1, 8, 512>}, {pipeline_mode = #tpu.pipeline_mode<synchronous>, transform_indices = @transform_1, window_bounds = array<i64: 176, 128>}, {pipeline_mode = #tpu.pipeline_mode<synchronous>, transform_indices = @transform_2, window_bounds = array<i64: 56, 1>}, {transform_indices = @transform_3, window_bounds = array<i64: 1, 8, 512>}]} {
    %c0 = arith.constant 0 : index
    %c0_0 = arith.constant 0 : index
    %c0_1 = arith.constant 0 : index
    %0 = vector.load %arg1[%c0, %c0_0, %c0_1] : memref<1x8x512xf32, #tpu.memory_space<vmem>>, vector<1x8x512xf32>
    %1 = vector.shape_cast %0 : vector<1x8x512xf32> to vector<8x512xf32>
    %2 = tpu.iota {dimensions = array<i32: 1>} : vector<8x512xi32>
    %c256_i32 = arith.constant 256 : i32
    %c0_i32 = arith.constant 0 : i32
    %3 = arith.cmpi eq, %c256_i32, %c0_i32 : i32
    %c1_i32 = arith.constant 1 : i32
    %4 = arith.select %3, %c1_i32, %c256_i32 : i32
    %5 = vector.broadcast %4 : i32 to vector<8x512xi32>
    %6 = arith.remsi %2, %5 : vector<8x512xi32>
    %c0_i32_2 = arith.constant 0 : i32
    %7 = vector.broadcast %c0_i32_2 : i32 to vector<8x512xi32>
    %8 = arith.cmpi ne, %6, %7 : vector<8x512xi32>
    %c0_i32_3 = arith.constant 0 : i32
    %9 = vector.broadcast %c0_i32_3 : i32 to vector<8x512xi32>
    %10 = arith.cmpi slt, %6, %9 : vector<8x512xi32>
    %c0_i32_4 = arith.constant 0 : i32
    %11 = arith.cmpi slt, %4, %c0_i32_4 : i32
    %12 = vector.broadcast %11 : i1 to vector<8x512xi1>
    %13 = vector.broadcast %12 : vector<8x512xi1> to vector<8x512xi1>
    %14 = arith.xori %10, %13 : vector<8x512xi1>
    %15 = arith.andi %14, %8 : vector<8x512xi1>
    %16 = vector.broadcast %4 : i32 to vector<8x512xi32>
    %17 = arith.addi %6, %16 : vector<8x512xi32>
    %18 = arith.select %15, %17, %6 : vector<8x512xi1>, vector<8x512xi32>
    %c16_i32 = arith.constant 16 : i32
    %c0_i32_5 = arith.constant 0 : i32
    %19 = arith.cmpi eq, %c16_i32, %c0_i32_5 : i32
    %c1_i32_6 = arith.constant 1 : i32
    %20 = arith.select %19, %c1_i32_6, %c16_i32 : i32
    %21 = vector.broadcast %20 : i32 to vector<8x512xi32>
    %22 = arith.remsi %18, %21 : vector<8x512xi32>
    %c0_i32_7 = arith.constant 0 : i32
    %23 = vector.broadcast %c0_i32_7 : i32 to vector<8x512xi32>
    %24 = arith.cmpi ne, %22, %23 : vector<8x512xi32>
    %c0_i32_8 = arith.constant 0 : i32
    %25 = vector.broadcast %c0_i32_8 : i32 to vector<8x512xi32>
    %26 = arith.cmpi slt, %22, %25 : vector<8x512xi32>
    %c0_i32_9 = arith.constant 0 : i32
    %27 = arith.cmpi slt, %20, %c0_i32_9 : i32
    %28 = vector.broadcast %27 : i1 to vector<8x512xi1>
    %29 = vector.broadcast %28 : vector<8x512xi1> to vector<8x512xi1>
    %30 = arith.xori %26, %29 : vector<8x512xi1>
    %31 = arith.andi %30, %24 : vector<8x512xi1>
    %32 = vector.broadcast %20 : i32 to vector<8x512xi32>
    %33 = arith.addi %22, %32 : vector<8x512xi32>
    %34 = arith.select %31, %33, %22 : vector<8x512xi1>, vector<8x512xi32>
    %c0_10 = arith.constant 0 : index
    %c0_11 = arith.constant 0 : index
    %35 = vector.load %arg2[%c0_10, %c0_11] : memref<176x128xbf16, #tpu.memory_space<vmem>>, vector<8x8xbf16>
    %36 = arith.truncf %1 : vector<8x512xf32> to vector<8x512xbf16>
    %cst = arith.constant dense<0.000000e+00> : vector<8x512xf32>
    %37 = tpu.matmul %35, %36, %cst {dimension_numbers = #tpu.dot_dimension_numbers<[1], [0], [0], [1], [0, 0, 1, 1], [], []>} : vector<8x8xbf16>, vector<8x512xbf16>, vector<8x512xf32> -> vector<8x512xf32>
    %c0_12 = arith.constant 0 : index
    %c0_13 = arith.constant 0 : index
    %38 = vector.load %arg3[%c0_12, %c0_13] : memref<56x1xf32, #tpu.memory_space<vmem>>, vector<8x1xf32>
    %39 = vector.broadcast %38 : vector<8x1xf32> to vector<8x512xf32>
    %40 = arith.addf %37, %39 : vector<8x512xf32>
    %cst_14 = arith.constant 0.000000e+00 : f32
    %41 = vector.broadcast %cst_14 : f32 to vector<8x512xf32>
    %42 = arith.subf %41, %40 : vector<8x512xf32>
    %43 = math.exp %42 : vector<8x512xf32>
    %cst_15 = arith.constant 1.000000e+00 : f32
    %44 = vector.broadcast %cst_15 : f32 to vector<8x512xf32>
    %45 = arith.addf %44, %43 : vector<8x512xf32>
    %46 = tpu.reciprocal %45 {approx = true} : vector<8x512xf32> -> vector<8x512xf32>
    %47 = arith.mulf %40, %46 : vector<8x512xf32>
    %c17_i32 = arith.constant 17 : i32
    %48 = tpu.dynamic_rotate %47 by %c17_i32 dim 1 : vector<8x512xf32>, i32 -> vector<8x512xf32>
    %c1_i32_16 = arith.constant 1 : i32
    %49 = vector.broadcast %c1_i32_16 : i32 to vector<8x512xi32>
    %50 = arith.cmpi sge, %34, %49 : vector<8x512xi32>
    %c17_i32_17 = arith.constant 17 : i32
    %51 = vector.broadcast %c17_i32_17 : i32 to vector<8x512xi32>
    %52 = arith.cmpi sge, %18, %51 : vector<8x512xi32>
    %53 = arith.andi %50, %52 : vector<8x512xi1>
    %cst_18 = arith.constant 0.000000e+00 : f32
    %54 = vector.broadcast %cst_18 : f32 to vector<8x512xf32>
    %55 = arith.select %53, %48, %54 : vector<8x512xi1>, vector<8x512xf32>
    %c0_19 = arith.constant 0 : index
    %c0_20 = arith.constant 0 : index
    %56 = vector.load %arg5[%c0_19, %c0_20] : memref<72x512xf32, #tpu.memory_space<vmem>>, vector<8x512xf32>
    tpu.vector_store %arg5[%c0_19, %c0_20], %55 {strides = array<i32>} : memref<72x512xf32, #tpu.memory_space<vmem>>, vector<8x512xf32>,
    %c16_i32_21 = arith.constant 16 : i32
    %57 = tpu.dynamic_rotate %47 by %c16_i32_21 dim 1 : vector<8x512xf32>, i32 -> vector<8x512xf32>
    %c16_i32_22 = arith.constant 16 : i32
    %58 = vector.broadcast %c16_i32_22 : i32 to vector<8x512xi32>
    %59 = arith.cmpi sge, %18, %58 : vector<8x512xi32>
    %cst_23 = arith.constant 0.000000e+00 : f32
    %60 = vector.broadcast %cst_23 : f32 to vector<8x512xf32>
    %61 = arith.select %59, %57, %60 : vector<8x512xi1>, vector<8x512xf32>
    %c8 = arith.constant 8 : index
    %c0_24 = arith.constant 0 : index
    %62 = vector.load %arg5[%c8, %c0_24] : memref<72x512xf32, #tpu.memory_space<vmem>>, vector<8x512xf32>
    tpu.vector_store %arg5[%c8, %c0_24], %61 {strides = array<i32>} : memref<72x512xf32, #tpu.memory_space<vmem>>, vector<8x512xf32>,
    %c15_i32 = arith.constant 15 : i32
    %63 = tpu.dynamic_rotate %47 by %c15_i32 dim 1 : vector<8x512xf32>, i32 -> vector<8x512xf32>
    %c15_i32_25 = arith.constant 15 : i32
    %64 = vector.broadcast %c15_i32_25 : i32 to vector<8x512xi32>
    %65 = arith.cmpi slt, %34, %64 : vector<8x512xi32>
    %c15_i32_26 = arith.constant 15 : i32
    %66 = vector.broadcast %c15_i32_26 : i32 to vector<8x512xi32>
    %67 = arith.cmpi sge, %18, %66 : vector<8x512xi32>
    %68 = arith.andi %65, %67 : vector<8x512xi1>
    %cst_27 = arith.constant 0.000000e+00 : f32
    %69 = vector.broadcast %cst_27 : f32 to vector<8x512xf32>
    %70 = arith.select %68, %63, %69 : vector<8x512xi1>, vector<8x512xf32>
    %c16 = arith.constant 16 : index
    %c0_28 = arith.constant 0 : index
    %71 = vector.load %arg5[%c16, %c0_28] : memref<72x512xf32, #tpu.memory_space<vmem>>, vector<8x512xf32>
    tpu.vector_store %arg5[%c16, %c0_28], %70 {strides = array<i32>} : memref<72x512xf32, #tpu.memory_space<vmem>>, vector<8x512xf32>,
    %c1_i32_29 = arith.constant 1 : i32
    %72 = tpu.dynamic_rotate %47 by %c1_i32_29 dim 1 : vector<8x512xf32>, i32 -> vector<8x512xf32>
    %c1_i32_30 = arith.constant 1 : i32
    %73 = vector.broadcast %c1_i32_30 : i32 to vector<8x512xi32>
    %74 = arith.cmpi sge, %34, %73 : vector<8x512xi32>
    %cst_31 = arith.constant 0.000000e+00 : f32
    %75 = vector.broadcast %cst_31 : f32 to vector<8x512xf32>
    %76 = arith.select %74, %72, %75 : vector<8x512xi1>, vector<8x512xf32>
    %c24 = arith.constant 24 : index
    %c0_32 = arith.constant 0 : index
    %77 = vector.load %arg5[%c24, %c0_32] : memref<72x512xf32, #tpu.memory_space<vmem>>, vector<8x512xf32>
    tpu.vector_store %arg5[%c24, %c0_32], %76 {strides = array<i32>} : memref<72x512xf32, #tpu.memory_space<vmem>>, vector<8x512xf32>,
    %c32 = arith.constant 32 : index
    %c0_33 = arith.constant 0 : index
    %78 = vector.load %arg5[%c32, %c0_33] : memref<72x512xf32, #tpu.memory_space<vmem>>, vector<8x512xf32>
    tpu.vector_store %arg5[%c32, %c0_33], %47 {strides = array<i32>} : memref<72x512xf32, #tpu.memory_space<vmem>>, vector<8x512xf32>,
    %c511_i32 = arith.constant 511 : i32
    %79 = tpu.dynamic_rotate %47 by %c511_i32 dim 1 : vector<8x512xf32>, i32 -> vector<8x512xf32>
    %c15_i32_34 = arith.constant 15 : i32
    %80 = vector.broadcast %c15_i32_34 : i32 to vector<8x512xi32>
    %81 = arith.cmpi slt, %34, %80 : vector<8x512xi32>
    %cst_35 = arith.constant 0.000000e+00 : f32
    %82 = vector.broadcast %cst_35 : f32 to vector<8x512xf32>
    %83 = arith.select %81, %79, %82 : vector<8x512xi1>, vector<8x512xf32>
    %c40 = arith.constant 40 : index
    %c0_36 = arith.constant 0 : index
    %84 = vector.load %arg5[%c40, %c0_36] : memref<72x512xf32, #tpu.memory_space<vmem>>, vector<8x512xf32>
    tpu.vector_store %arg5[%c40, %c0_36], %83 {strides = array<i32>} : memref<72x512xf32, #tpu.memory_space<vmem>>, vector<8x512xf32>,
    %c497_i32 = arith.constant 497 : i32
    %85 = tpu.dynamic_rotate %47 by %c497_i32 dim 1 : vector<8x512xf32>, i32 -> vector<8x512xf32>
    %c1_i32_37 = arith.constant 1 : i32
    %86 = vector.broadcast %c1_i32_37 : i32 to vector<8x512xi32>
    %87 = arith.cmpi sge, %34, %86 : vector<8x512xi32>
    %c241_i32 = arith.constant 241 : i32
    %88 = vector.broadcast %c241_i32 : i32 to vector<8x512xi32>
    %89 = arith.cmpi slt, %18, %88 : vector<8x512xi32>
    %90 = arith.andi %87, %89 : vector<8x512xi1>
    %cst_38 = arith.constant 0.000000e+00 : f32
    %91 = vector.broadcast %cst_38 : f32 to vector<8x512xf32>
    %92 = arith.select %90, %85, %91 : vector<8x512xi1>, vector<8x512xf32>
    %c48 = arith.constant 48 : index
    %c0_39 = arith.constant 0 : index
    %93 = vector.load %arg5[%c48, %c0_39] : memref<72x512xf32, #tpu.memory_space<vmem>>, vector<8x512xf32>
    tpu.vector_store %arg5[%c48, %c0_39], %92 {strides = array<i32>} : memref<72x512xf32, #tpu.memory_space<vmem>>, vector<8x512xf32>,
    %c496_i32 = arith.constant 496 : i32
    %94 = tpu.dynamic_rotate %47 by %c496_i32 dim 1 : vector<8x512xf32>, i32 -> vector<8x512xf32>
    %c240_i32 = arith.constant 240 : i32
    %95 = vector.broadcast %c240_i32 : i32 to vector<8x512xi32>
    %96 = arith.cmpi slt, %18, %95 : vector<8x512xi32>
    %cst_40 = arith.constant 0.000000e+00 : f32
    %97 = vector.broadcast %cst_40 : f32 to vector<8x512xf32>
    %98 = arith.select %96, %94, %97 : vector<8x512xi1>, vector<8x512xf32>
    %c56 = arith.constant 56 : index
    %c0_41 = arith.constant 0 : index
    %99 = vector.load %arg5[%c56, %c0_41] : memref<72x512xf32, #tpu.memory_space<vmem>>, vector<8x512xf32>
    tpu.vector_store %arg5[%c56, %c0_41], %98 {strides = array<i32>} : memref<72x512xf32, #tpu.memory_space<vmem>>, vector<8x512xf32>,
    %c495_i32 = arith.constant 495 : i32
    %100 = tpu.dynamic_rotate %47 by %c495_i32 dim 1 : vector<8x512xf32>, i32 -> vector<8x512xf32>
    %c15_i32_42 = arith.constant 15 : i32
    %101 = vector.broadcast %c15_i32_42 : i32 to vector<8x512xi32>
    %102 = arith.cmpi slt, %34, %101 : vector<8x512xi32>
    %c239_i32 = arith.constant 239 : i32
    %103 = vector.broadcast %c239_i32 : i32 to vector<8x512xi32>
    %104 = arith.cmpi slt, %18, %103 : vector<8x512xi32>
    %105 = arith.andi %102, %104 : vector<8x512xi1>
    %cst_43 = arith.constant 0.000000e+00 : f32
    %106 = vector.broadcast %cst_43 : f32 to vector<8x512xf32>
    %107 = arith.select %105, %100, %106 : vector<8x512xi1>, vector<8x512xf32>
    %c64 = arith.constant 64 : index
    %c0_44 = arith.constant 0 : index
    %108 = vector.load %arg5[%c64, %c0_44] : memref<72x512xf32, #tpu.memory_space<vmem>>, vector<8x512xf32>
    tpu.vector_store %arg5[%c64, %c0_44], %107 {strides = array<i32>} : memref<72x512xf32, #tpu.memory_space<vmem>>, vector<8x512xf32>,
    %c32_45 = arith.constant 32 : index
    %c0_46 = arith.constant 0 : index
    %109 = vector.load %arg2[%c32_45, %c0_46] : memref<176x128xbf16, #tpu.memory_space<vmem>>, vector<8x72xbf16>
    %c0_47 = arith.constant 0 : index
    %c0_48 = arith.constant 0 : index
    %110 = vector.load %arg5[%c0_47, %c0_48] : memref<72x512xf32, #tpu.memory_space<vmem>>, vector<72x512xf32>
    %cst_49 = arith.constant dense<0.000000e+00> : vector<8x512xf32>
    %111 = tpu.matmul %109, %110, %cst_49 {dimension_numbers = #tpu.dot_dimension_numbers<[1], [0], [0], [1], [0, 0, 1, 1], [], []>} : vector<8x72xbf16>, vector<72x512xf32>, vector<8x512xf32> -> vector<8x512xf32>
    %c16_50 = arith.constant 16 : index
    %c0_51 = arith.constant 0 : index
    %112 = vector.load %arg3[%c16_50, %c0_51] : memref<56x1xf32, #tpu.memory_space<vmem>>, vector<8x1xf32>
    %113 = vector.broadcast %112 : vector<8x1xf32> to vector<8x512xf32>
    %114 = arith.addf %111, %113 : vector<8x512xf32>
    %cst_52 = arith.constant 0.000000e+00 : f32
    %115 = vector.broadcast %cst_52 : f32 to vector<8x512xf32>
    %116 = arith.subf %115, %114 : vector<8x512xf32>
    %117 = math.exp %116 : vector<8x512xf32>
    %cst_53 = arith.constant 1.000000e+00 : f32
    %118 = vector.broadcast %cst_53 : f32 to vector<8x512xf32>
    %119 = arith.addf %118, %117 : vector<8x512xf32>
    %120 = tpu.reciprocal %119 {approx = true} : vector<8x512xf32> -> vector<8x512xf32>
    %121 = arith.mulf %114, %120 : vector<8x512xf32>
    %c48_54 = arith.constant 48 : index
    %c0_55 = arith.constant 0 : index
    %122 = vector.load %arg2[%c48_54, %c0_55] : memref<176x128xbf16, #tpu.memory_space<vmem>>, vector<8x8xbf16>
    %123 = arith.truncf %121 : vector<8x512xf32> to vector<8x512xbf16>
    %cst_56 = arith.constant dense<0.000000e+00> : vector<8x512xf32>
    %124 = tpu.matmul %122, %123, %cst_56 {dimension_numbers = #tpu.dot_dimension_numbers<[1], [0], [0], [1], [0, 0, 1, 1], [], []>} : vector<8x8xbf16>, vector<8x512xbf16>, vector<8x512xf32> -> vector<8x512xf32>
    %c24_57 = arith.constant 24 : index
    %c0_58 = arith.constant 0 : index
    %125 = vector.load %arg3[%c24_57, %c0_58] : memref<56x1xf32, #tpu.memory_space<vmem>>, vector<8x1xf32>
    %126 = vector.broadcast %125 : vector<8x1xf32> to vector<8x512xf32>
    %127 = arith.addf %124, %126 : vector<8x512xf32>
    %cst_59 = arith.constant 0.000000e+00 : f32
    %128 = vector.broadcast %cst_59 : f32 to vector<8x512xf32>
    %129 = arith.subf %128, %127 : vector<8x512xf32>
    %130 = math.exp %129 : vector<8x512xf32>
    %cst_60 = arith.constant 1.000000e+00 : f32
    %131 = vector.broadcast %cst_60 : f32 to vector<8x512xf32>
    %132 = arith.addf %131, %130 : vector<8x512xf32>
    %133 = tpu.reciprocal %132 {approx = true} : vector<8x512xf32> -> vector<8x512xf32>
    %134 = arith.mulf %127, %133 : vector<8x512xf32>
    %c2_i32 = arith.constant 2 : i32
    %135 = tpu.dynamic_rotate %134 by %c2_i32 dim 1 : vector<8x512xf32>, i32 -> vector<8x512xf32>
    %c2_i32_61 = arith.constant 2 : i32
    %136 = vector.broadcast %c2_i32_61 : i32 to vector<8x512xi32>
    %137 = arith.cmpi sge, %34, %136 : vector<8x512xi32>
    %cst_62 = arith.constant 0xFF800000 : f32
    %138 = vector.broadcast %cst_62 : f32 to vector<8x512xf32>
    %139 = arith.select %137, %135, %138 : vector<8x512xi1>, vector<8x512xf32>
    %140 = arith.maximumf %134, %139 : vector<8x512xf32>
    %c1_i32_63 = arith.constant 1 : i32
    %141 = tpu.dynamic_rotate %134 by %c1_i32_63 dim 1 : vector<8x512xf32>, i32 -> vector<8x512xf32>
    %cst_64 = arith.constant 0xFF800000 : f32
    %142 = vector.broadcast %cst_64 : f32 to vector<8x512xf32>
    %143 = arith.select %74, %141, %142 : vector<8x512xi1>, vector<8x512xf32>
    %144 = arith.maximumf %140, %143 : vector<8x512xf32>
    %c511_i32_65 = arith.constant 511 : i32
    %145 = tpu.dynamic_rotate %134 by %c511_i32_65 dim 1 : vector<8x512xf32>, i32 -> vector<8x512xf32>
    %cst_66 = arith.constant 0xFF800000 : f32
    %146 = vector.broadcast %cst_66 : f32 to vector<8x512xf32>
    %147 = arith.select %81, %145, %146 : vector<8x512xi1>, vector<8x512xf32>
    %148 = arith.maximumf %144, %147 : vector<8x512xf32>
    %c510_i32 = arith.constant 510 : i32
    %149 = tpu.dynamic_rotate %134 by %c510_i32 dim 1 : vector<8x512xf32>, i32 -> vector<8x512xf32>
    %c14_i32 = arith.constant 14 : i32
    %150 = vector.broadcast %c14_i32 : i32 to vector<8x512xi32>
    %151 = arith.cmpi slt, %34, %150 : vector<8x512xi32>
    %cst_67 = arith.constant 0xFF800000 : f32
    %152 = vector.broadcast %cst_67 : f32 to vector<8x512xf32>
    %153 = arith.select %151, %149, %152 : vector<8x512xi1>, vector<8x512xf32>
    %154 = arith.maximumf %148, %153 : vector<8x512xf32>
    %c32_i32 = arith.constant 32 : i32
    %155 = tpu.dynamic_rotate %154 by %c32_i32 dim 1 : vector<8x512xf32>, i32 -> vector<8x512xf32>
    %c32_i32_68 = arith.constant 32 : i32
    %156 = vector.broadcast %c32_i32_68 : i32 to vector<8x512xi32>
    %157 = arith.cmpi sge, %18, %156 : vector<8x512xi32>
    %cst_69 = arith.constant 0xFF800000 : f32
    %158 = vector.broadcast %cst_69 : f32 to vector<8x512xf32>
    %159 = arith.select %157, %155, %158 : vector<8x512xi1>, vector<8x512xf32>
    %160 = arith.maximumf %154, %159 : vector<8x512xf32>
    %c16_i32_70 = arith.constant 16 : i32
    %161 = tpu.dynamic_rotate %154 by %c16_i32_70 dim 1 : vector<8x512xf32>, i32 -> vector<8x512xf32>
    %cst_71 = arith.constant 0xFF800000 : f32
    %162 = vector.broadcast %cst_71 : f32 to vector<8x512xf32>
    %163 = arith.select %59, %161, %162 : vector<8x512xi1>, vector<8x512xf32>
    %164 = arith.maximumf %160, %163 : vector<8x512xf32>
    %c496_i32_72 = arith.constant 496 : i32
    %165 = tpu.dynamic_rotate %154 by %c496_i32_72 dim 1 : vector<8x512xf32>, i32 -> vector<8x512xf32>
    %cst_73 = arith.constant 0xFF800000 : f32
    %166 = vector.broadcast %cst_73 : f32 to vector<8x512xf32>
    %167 = arith.select %96, %165, %166 : vector<8x512xi1>, vector<8x512xf32>
    %168 = arith.maximumf %164, %167 : vector<8x512xf32>
    %c480_i32 = arith.constant 480 : i32
    %169 = tpu.dynamic_rotate %154 by %c480_i32 dim 1 : vector<8x512xf32>, i32 -> vector<8x512xf32>
    %c224_i32 = arith.constant 224 : i32
    %170 = vector.broadcast %c224_i32 : i32 to vector<8x512xi32>
    %171 = arith.cmpi slt, %18, %170 : vector<8x512xi32>
    %cst_74 = arith.constant 0xFF800000 : f32
    %172 = vector.broadcast %cst_74 : f32 to vector<8x512xf32>
    %173 = arith.select %171, %169, %172 : vector<8x512xi1>, vector<8x512xf32>
    %174 = arith.maximumf %168, %173 : vector<8x512xf32>
    %c2_i32_75 = arith.constant 2 : i32
    %175 = tpu.dynamic_rotate %174 by %c2_i32_75 dim 1 : vector<8x512xf32>, i32 -> vector<8x512xf32>
    %cst_76 = arith.constant 0xFF800000 : f32
    %176 = vector.broadcast %cst_76 : f32 to vector<8x512xf32>
    %177 = arith.select %137, %175, %176 : vector<8x512xi1>, vector<8x512xf32>
    %178 = arith.maximumf %174, %177 : vector<8x512xf32>
    %c1_i32_77 = arith.constant 1 : i32
    %179 = tpu.dynamic_rotate %174 by %c1_i32_77 dim 1 : vector<8x512xf32>, i32 -> vector<8x512xf32>
    %cst_78 = arith.constant 0xFF800000 : f32
    %180 = vector.broadcast %cst_78 : f32 to vector<8x512xf32>
    %181 = arith.select %74, %179, %180 : vector<8x512xi1>, vector<8x512xf32>
    %182 = arith.maximumf %178, %181 : vector<8x512xf32>
    %c511_i32_79 = arith.constant 511 : i32
    %183 = tpu.dynamic_rotate %174 by %c511_i32_79 dim 1 : vector<8x512xf32>, i32 -> vector<8x512xf32>
    %cst_80 = arith.constant 0xFF800000 : f32
    %184 = vector.broadcast %cst_80 : f32 to vector<8x512xf32>
    %185 = arith.select %81, %183, %184 : vector<8x512xi1>, vector<8x512xf32>
    %186 = arith.maximumf %182, %185 : vector<8x512xf32>
    %c510_i32_81 = arith.constant 510 : i32
    %187 = tpu.dynamic_rotate %174 by %c510_i32_81 dim 1 : vector<8x512xf32>, i32 -> vector<8x512xf32>
    %cst_82 = arith.constant 0xFF800000 : f32
    %188 = vector.broadcast %cst_82 : f32 to vector<8x512xf32>
    %189 = arith.select %151, %187, %188 : vector<8x512xi1>, vector<8x512xf32>
    %190 = arith.maximumf %186, %189 : vector<8x512xf32>
    %c32_i32_83 = arith.constant 32 : i32
    %191 = tpu.dynamic_rotate %190 by %c32_i32_83 dim 1 : vector<8x512xf32>, i32 -> vector<8x512xf32>
    %cst_84 = arith.constant 0xFF800000 : f32
    %192 = vector.broadcast %cst_84 : f32 to vector<8x512xf32>
    %193 = arith.select %157, %191, %192 : vector<8x512xi1>, vector<8x512xf32>
    %194 = arith.maximumf %190, %193 : vector<8x512xf32>
    %c16_i32_85 = arith.constant 16 : i32
    %195 = tpu.dynamic_rotate %190 by %c16_i32_85 dim 1 : vector<8x512xf32>, i32 -> vector<8x512xf32>
    %cst_86 = arith.constant 0xFF800000 : f32
    %196 = vector.broadcast %cst_86 : f32 to vector<8x512xf32>
    %197 = arith.select %59, %195, %196 : vector<8x512xi1>, vector<8x512xf32>
    %198 = arith.maximumf %194, %197 : vector<8x512xf32>
    %c496_i32_87 = arith.constant 496 : i32
    %199 = tpu.dynamic_rotate %190 by %c496_i32_87 dim 1 : vector<8x512xf32>, i32 -> vector<8x512xf32>
    %cst_88 = arith.constant 0xFF800000 : f32
    %200 = vector.broadcast %cst_88 : f32 to vector<8x512xf32>
    %201 = arith.select %96, %199, %200 : vector<8x512xi1>, vector<8x512xf32>
    %202 = arith.maximumf %198, %201 : vector<8x512xf32>
    %c480_i32_89 = arith.constant 480 : i32
    %203 = tpu.dynamic_rotate %190 by %c480_i32_89 dim 1 : vector<8x512xf32>, i32 -> vector<8x512xf32>
    %cst_90 = arith.constant 0xFF800000 : f32
    %204 = vector.broadcast %cst_90 : f32 to vector<8x512xf32>
    %205 = arith.select %171, %203, %204 : vector<8x512xi1>, vector<8x512xf32>
    %206 = arith.maximumf %202, %205 : vector<8x512xf32>
    %c2_i32_91 = arith.constant 2 : i32
    %207 = tpu.dynamic_rotate %206 by %c2_i32_91 dim 1 : vector<8x512xf32>, i32 -> vector<8x512xf32>
    %cst_92 = arith.constant 0xFF800000 : f32
    %208 = vector.broadcast %cst_92 : f32 to vector<8x512xf32>
    %209 = arith.select %137, %207, %208 : vector<8x512xi1>, vector<8x512xf32>
    %210 = arith.maximumf %206, %209 : vector<8x512xf32>
    %c1_i32_93 = arith.constant 1 : i32
    %211 = tpu.dynamic_rotate %206 by %c1_i32_93 dim 1 : vector<8x512xf32>, i32 -> vector<8x512xf32>
    %cst_94 = arith.constant 0xFF800000 : f32
    %212 = vector.broadcast %cst_94 : f32 to vector<8x512xf32>
    %213 = arith.select %74, %211, %212 : vector<8x512xi1>, vector<8x512xf32>
    %214 = arith.maximumf %210, %213 : vector<8x512xf32>
    %c511_i32_95 = arith.constant 511 : i32
    %215 = tpu.dynamic_rotate %206 by %c511_i32_95 dim 1 : vector<8x512xf32>, i32 -> vector<8x512xf32>
    %cst_96 = arith.constant 0xFF800000 : f32
    %216 = vector.broadcast %cst_96 : f32 to vector<8x512xf32>
    %217 = arith.select %81, %215, %216 : vector<8x512xi1>, vector<8x512xf32>
    %218 = arith.maximumf %214, %217 : vector<8x512xf32>
    %c510_i32_97 = arith.constant 510 : i32
    %219 = tpu.dynamic_rotate %206 by %c510_i32_97 dim 1 : vector<8x512xf32>, i32 -> vector<8x512xf32>
    %cst_98 = arith.constant 0xFF800000 : f32
    %220 = vector.broadcast %cst_98 : f32 to vector<8x512xf32>
    %221 = arith.select %151, %219, %220 : vector<8x512xi1>, vector<8x512xf32>
    %222 = arith.maximumf %218, %221 : vector<8x512xf32>
    %c32_i32_99 = arith.constant 32 : i32
    %223 = tpu.dynamic_rotate %222 by %c32_i32_99 dim 1 : vector<8x512xf32>, i32 -> vector<8x512xf32>
    %cst_100 = arith.constant 0xFF800000 : f32
    %224 = vector.broadcast %cst_100 : f32 to vector<8x512xf32>
    %225 = arith.select %157, %223, %224 : vector<8x512xi1>, vector<8x512xf32>
    %226 = arith.maximumf %222, %225 : vector<8x512xf32>
    %c16_i32_101 = arith.constant 16 : i32
    %227 = tpu.dynamic_rotate %222 by %c16_i32_101 dim 1 : vector<8x512xf32>, i32 -> vector<8x512xf32>
    %cst_102 = arith.constant 0xFF800000 : f32
    %228 = vector.broadcast %cst_102 : f32 to vector<8x512xf32>
    %229 = arith.select %59, %227, %228 : vector<8x512xi1>, vector<8x512xf32>
    %230 = arith.maximumf %226, %229 : vector<8x512xf32>
    %c496_i32_103 = arith.constant 496 : i32
    %231 = tpu.dynamic_rotate %222 by %c496_i32_103 dim 1 : vector<8x512xf32>, i32 -> vector<8x512xf32>
    %cst_104 = arith.constant 0xFF800000 : f32
    %232 = vector.broadcast %cst_104 : f32 to vector<8x512xf32>
    %233 = arith.select %96, %231, %232 : vector<8x512xi1>, vector<8x512xf32>
    %234 = arith.maximumf %230, %233 : vector<8x512xf32>
    %c480_i32_105 = arith.constant 480 : i32
    %235 = tpu.dynamic_rotate %222 by %c480_i32_105 dim 1 : vector<8x512xf32>, i32 -> vector<8x512xf32>
    %cst_106 = arith.constant 0xFF800000 : f32
    %236 = vector.broadcast %cst_106 : f32 to vector<8x512xf32>
    %237 = arith.select %171, %235, %236 : vector<8x512xi1>, vector<8x512xf32>
    %238 = arith.maximumf %234, %237 : vector<8x512xf32>
    %c64_107 = arith.constant 64 : index
    %c0_108 = arith.constant 0 : index
    %239 = vector.load %arg2[%c64_107, %c0_108] : memref<176x128xbf16, #tpu.memory_space<vmem>>, vector<8x8xbf16>
    %240 = arith.truncf %134 : vector<8x512xf32> to vector<8x512xbf16>
    %cst_109 = arith.constant dense<0.000000e+00> : vector<8x512xf32>
    %241 = tpu.matmul %239, %240, %cst_109 {dimension_numbers = #tpu.dot_dimension_numbers<[1], [0], [0], [1], [0, 0, 1, 1], [], []>} : vector<8x8xbf16>, vector<8x512xbf16>, vector<8x512xf32> -> vector<8x512xf32>
    %c80 = arith.constant 80 : index
    %c0_110 = arith.constant 0 : index
    %242 = vector.load %arg2[%c80, %c0_110] : memref<176x128xbf16, #tpu.memory_space<vmem>>, vector<8x8xbf16>
    %243 = arith.truncf %174 : vector<8x512xf32> to vector<8x512xbf16>
    %cst_111 = arith.constant dense<0.000000e+00> : vector<8x512xf32>
    %244 = tpu.matmul %242, %243, %cst_111 {dimension_numbers = #tpu.dot_dimension_numbers<[1], [0], [0], [1], [0, 0, 1, 1], [], []>} : vector<8x8xbf16>, vector<8x512xbf16>, vector<8x512xf32> -> vector<8x512xf32>
    %245 = arith.addf %241, %244 : vector<8x512xf32>
    %c96 = arith.constant 96 : index
    %c0_112 = arith.constant 0 : index
    %246 = vector.load %arg2[%c96, %c0_112] : memref<176x128xbf16, #tpu.memory_space<vmem>>, vector<8x8xbf16>
    %247 = arith.truncf %206 : vector<8x512xf32> to vector<8x512xbf16>
    %cst_113 = arith.constant dense<0.000000e+00> : vector<8x512xf32>
    %248 = tpu.matmul %246, %247, %cst_113 {dimension_numbers = #tpu.dot_dimension_numbers<[1], [0], [0], [1], [0, 0, 1, 1], [], []>} : vector<8x8xbf16>, vector<8x512xbf16>, vector<8x512xf32> -> vector<8x512xf32>
    %249 = arith.addf %245, %248 : vector<8x512xf32>
    %c112 = arith.constant 112 : index
    %c0_114 = arith.constant 0 : index
    %250 = vector.load %arg2[%c112, %c0_114] : memref<176x128xbf16, #tpu.memory_space<vmem>>, vector<8x8xbf16>
    %251 = arith.truncf %238 : vector<8x512xf32> to vector<8x512xbf16>
    %cst_115 = arith.constant dense<0.000000e+00> : vector<8x512xf32>
    %252 = tpu.matmul %250, %251, %cst_115 {dimension_numbers = #tpu.dot_dimension_numbers<[1], [0], [0], [1], [0, 0, 1, 1], [], []>} : vector<8x8xbf16>, vector<8x512xbf16>, vector<8x512xf32> -> vector<8x512xf32>
    %253 = arith.addf %249, %252 : vector<8x512xf32>
    %c32_116 = arith.constant 32 : index
    %c0_117 = arith.constant 0 : index
    %254 = vector.load %arg3[%c32_116, %c0_117] : memref<56x1xf32, #tpu.memory_space<vmem>>, vector<8x1xf32>
    %255 = vector.broadcast %254 : vector<8x1xf32> to vector<8x512xf32>
    %256 = arith.addf %253, %255 : vector<8x512xf32>
    %cst_118 = arith.constant 0.000000e+00 : f32
    %257 = vector.broadcast %cst_118 : f32 to vector<8x512xf32>
    %258 = arith.subf %257, %256 : vector<8x512xf32>
    %259 = math.exp %258 : vector<8x512xf32>
    %cst_119 = arith.constant 1.000000e+00 : f32
    %260 = vector.broadcast %cst_119 : f32 to vector<8x512xf32>
    %261 = arith.addf %260, %259 : vector<8x512xf32>
    %262 = tpu.reciprocal %261 {approx = true} : vector<8x512xf32> -> vector<8x512xf32>
    %263 = arith.mulf %256, %262 : vector<8x512xf32>
    %c17_i32_120 = arith.constant 17 : i32
    %264 = tpu.dynamic_rotate %263 by %c17_i32_120 dim 1 : vector<8x512xf32>, i32 -> vector<8x512xf32>
    %cst_121 = arith.constant 0.000000e+00 : f32
    %265 = vector.broadcast %cst_121 : f32 to vector<8x512xf32>
    %266 = arith.select %53, %264, %265 : vector<8x512xi1>, vector<8x512xf32>
    %c0_122 = arith.constant 0 : index
    %c0_123 = arith.constant 0 : index
    %267 = vector.load %arg5[%c0_122, %c0_123] : memref<72x512xf32, #tpu.memory_space<vmem>>, vector<8x512xf32>
    tpu.vector_store %arg5[%c0_122, %c0_123], %266 {strides = array<i32>} : memref<72x512xf32, #tpu.memory_space<vmem>>, vector<8x512xf32>,
    %c16_i32_124 = arith.constant 16 : i32
    %268 = tpu.dynamic_rotate %263 by %c16_i32_124 dim 1 : vector<8x512xf32>, i32 -> vector<8x512xf32>
    %cst_125 = arith.constant 0.000000e+00 : f32
    %269 = vector.broadcast %cst_125 : f32 to vector<8x512xf32>
    %270 = arith.select %59, %268, %269 : vector<8x512xi1>, vector<8x512xf32>
    %c8_126 = arith.constant 8 : index
    %c0_127 = arith.constant 0 : index
    %271 = vector.load %arg5[%c8_126, %c0_127] : memref<72x512xf32, #tpu.memory_space<vmem>>, vector<8x512xf32>
    tpu.vector_store %arg5[%c8_126, %c0_127], %270 {strides = array<i32>} : memref<72x512xf32, #tpu.memory_space<vmem>>, vector<8x512xf32>,
    %c15_i32_128 = arith.constant 15 : i32
    %272 = tpu.dynamic_rotate %263 by %c15_i32_128 dim 1 : vector<8x512xf32>, i32 -> vector<8x512xf32>
    %cst_129 = arith.constant 0.000000e+00 : f32
    %273 = vector.broadcast %cst_129 : f32 to vector<8x512xf32>
    %274 = arith.select %68, %272, %273 : vector<8x512xi1>, vector<8x512xf32>
    %c16_130 = arith.constant 16 : index
    %c0_131 = arith.constant 0 : index
    %275 = vector.load %arg5[%c16_130, %c0_131] : memref<72x512xf32, #tpu.memory_space<vmem>>, vector<8x512xf32>
    tpu.vector_store %arg5[%c16_130, %c0_131], %274 {strides = array<i32>} : memref<72x512xf32, #tpu.memory_space<vmem>>, vector<8x512xf32>,
    %c1_i32_132 = arith.constant 1 : i32
    %276 = tpu.dynamic_rotate %263 by %c1_i32_132 dim 1 : vector<8x512xf32>, i32 -> vector<8x512xf32>
    %cst_133 = arith.constant 0.000000e+00 : f32
    %277 = vector.broadcast %cst_133 : f32 to vector<8x512xf32>
    %278 = arith.select %74, %276, %277 : vector<8x512xi1>, vector<8x512xf32>
    %c24_134 = arith.constant 24 : index
    %c0_135 = arith.constant 0 : index
    %279 = vector.load %arg5[%c24_134, %c0_135] : memref<72x512xf32, #tpu.memory_space<vmem>>, vector<8x512xf32>
    tpu.vector_store %arg5[%c24_134, %c0_135], %278 {strides = array<i32>} : memref<72x512xf32, #tpu.memory_space<vmem>>, vector<8x512xf32>,
    %c32_136 = arith.constant 32 : index
    %c0_137 = arith.constant 0 : index
    %280 = vector.load %arg5[%c32_136, %c0_137] : memref<72x512xf32, #tpu.memory_space<vmem>>, vector<8x512xf32>
    tpu.vector_store %arg5[%c32_136, %c0_137], %263 {strides = array<i32>} : memref<72x512xf32, #tpu.memory_space<vmem>>, vector<8x512xf32>,
    %c511_i32_138 = arith.constant 511 : i32
    %281 = tpu.dynamic_rotate %263 by %c511_i32_138 dim 1 : vector<8x512xf32>, i32 -> vector<8x512xf32>
    %cst_139 = arith.constant 0.000000e+00 : f32
    %282 = vector.broadcast %cst_139 : f32 to vector<8x512xf32>
    %283 = arith.select %81, %281, %282 : vector<8x512xi1>, vector<8x512xf32>
    %c40_140 = arith.constant 40 : index
    %c0_141 = arith.constant 0 : index
    %284 = vector.load %arg5[%c40_140, %c0_141] : memref<72x512xf32, #tpu.memory_space<vmem>>, vector<8x512xf32>
    tpu.vector_store %arg5[%c40_140, %c0_141], %283 {strides = array<i32>} : memref<72x512xf32, #tpu.memory_space<vmem>>, vector<8x512xf32>,
    %c497_i32_142 = arith.constant 497 : i32
    %285 = tpu.dynamic_rotate %263 by %c497_i32_142 dim 1 : vector<8x512xf32>, i32 -> vector<8x512xf32>
    %cst_143 = arith.constant 0.000000e+00 : f32
    %286 = vector.broadcast %cst_143 : f32 to vector<8x512xf32>
    %287 = arith.select %90, %285, %286 : vector<8x512xi1>, vector<8x512xf32>
    %c48_144 = arith.constant 48 : index
    %c0_145 = arith.constant 0 : index
    %288 = vector.load %arg5[%c48_144, %c0_145] : memref<72x512xf32, #tpu.memory_space<vmem>>, vector<8x512xf32>
    tpu.vector_store %arg5[%c48_144, %c0_145], %287 {strides = array<i32>} : memref<72x512xf32, #tpu.memory_space<vmem>>, vector<8x512xf32>,
    %c496_i32_146 = arith.constant 496 : i32
    %289 = tpu.dynamic_rotate %263 by %c496_i32_146 dim 1 : vector<8x512xf32>, i32 -> vector<8x512xf32>
    %cst_147 = arith.constant 0.000000e+00 : f32
    %290 = vector.broadcast %cst_147 : f32 to vector<8x512xf32>
    %291 = arith.select %96, %289, %290 : vector<8x512xi1>, vector<8x512xf32>
    %c56_148 = arith.constant 56 : index
    %c0_149 = arith.constant 0 : index
    %292 = vector.load %arg5[%c56_148, %c0_149] : memref<72x512xf32, #tpu.memory_space<vmem>>, vector<8x512xf32>
    tpu.vector_store %arg5[%c56_148, %c0_149], %291 {strides = array<i32>} : memref<72x512xf32, #tpu.memory_space<vmem>>, vector<8x512xf32>,
    %c495_i32_150 = arith.constant 495 : i32
    %293 = tpu.dynamic_rotate %263 by %c495_i32_150 dim 1 : vector<8x512xf32>, i32 -> vector<8x512xf32>
    %cst_151 = arith.constant 0.000000e+00 : f32
    %294 = vector.broadcast %cst_151 : f32 to vector<8x512xf32>
    %295 = arith.select %105, %293, %294 : vector<8x512xi1>, vector<8x512xf32>
    %c64_152 = arith.constant 64 : index
    %c0_153 = arith.constant 0 : index
    %296 = vector.load %arg5[%c64_152, %c0_153] : memref<72x512xf32, #tpu.memory_space<vmem>>, vector<8x512xf32>
    tpu.vector_store %arg5[%c64_152, %c0_153], %295 {strides = array<i32>} : memref<72x512xf32, #tpu.memory_space<vmem>>, vector<8x512xf32>,
    %c128 = arith.constant 128 : index
    %c0_154 = arith.constant 0 : index
    %297 = vector.load %arg2[%c128, %c0_154] : memref<176x128xbf16, #tpu.memory_space<vmem>>, vector<8x72xbf16>
    %c0_155 = arith.constant 0 : index
    %c0_156 = arith.constant 0 : index
    %298 = vector.load %arg5[%c0_155, %c0_156] : memref<72x512xf32, #tpu.memory_space<vmem>>, vector<72x512xf32>
    %cst_157 = arith.constant dense<0.000000e+00> : vector<8x512xf32>
    %299 = tpu.matmul %297, %298, %cst_157 {dimension_numbers = #tpu.dot_dimension_numbers<[1], [0], [0], [1], [0, 0, 1, 1], [], []>} : vector<8x72xbf16>, vector<72x512xf32>, vector<8x512xf32> -> vector<8x512xf32>
    %c40_158 = arith.constant 40 : index
    %c0_159 = arith.constant 0 : index
    %300 = vector.load %arg3[%c40_158, %c0_159] : memref<56x1xf32, #tpu.memory_space<vmem>>, vector<8x1xf32>
    %301 = vector.broadcast %300 : vector<8x1xf32> to vector<8x512xf32>
    %302 = arith.addf %299, %301 : vector<8x512xf32>
    %cst_160 = arith.constant 0.000000e+00 : f32
    %303 = vector.broadcast %cst_160 : f32 to vector<8x512xf32>
    %304 = arith.subf %303, %302 : vector<8x512xf32>
    %305 = math.exp %304 : vector<8x512xf32>
    %cst_161 = arith.constant 1.000000e+00 : f32
    %306 = vector.broadcast %cst_161 : f32 to vector<8x512xf32>
    %307 = arith.addf %306, %305 : vector<8x512xf32>
    %308 = tpu.reciprocal %307 {approx = true} : vector<8x512xf32> -> vector<8x512xf32>
    %309 = arith.mulf %302, %308 : vector<8x512xf32>
    %c16_162 = arith.constant 16 : index
    %c0_163 = arith.constant 0 : index
    %310 = vector.load %arg2[%c16_162, %c0_163] : memref<176x128xbf16, #tpu.memory_space<vmem>>, vector<8x8xbf16>
    %311 = arith.truncf %1 : vector<8x512xf32> to vector<8x512xbf16>
    %cst_164 = arith.constant dense<0.000000e+00> : vector<8x512xf32>
    %312 = tpu.matmul %310, %311, %cst_164 {dimension_numbers = #tpu.dot_dimension_numbers<[1], [0], [0], [1], [0, 0, 1, 1], [], []>} : vector<8x8xbf16>, vector<8x512xbf16>, vector<8x512xf32> -> vector<8x512xf32>
    %c8_165 = arith.constant 8 : index
    %c0_166 = arith.constant 0 : index
    %313 = vector.load %arg3[%c8_165, %c0_166] : memref<56x1xf32, #tpu.memory_space<vmem>>, vector<8x1xf32>
    %314 = vector.broadcast %313 : vector<8x1xf32> to vector<8x512xf32>
    %315 = arith.addf %312, %314 : vector<8x512xf32>
    %cst_167 = arith.constant 0.000000e+00 : f32
    %316 = vector.broadcast %cst_167 : f32 to vector<8x512xf32>
    %317 = arith.subf %316, %315 : vector<8x512xf32>
    %318 = math.exp %317 : vector<8x512xf32>
    %cst_168 = arith.constant 1.000000e+00 : f32
    %319 = vector.broadcast %cst_168 : f32 to vector<8x512xf32>
    %320 = arith.addf %319, %318 : vector<8x512xf32>
    %321 = tpu.reciprocal %320 {approx = true} : vector<8x512xf32> -> vector<8x512xf32>
    %322 = arith.mulf %315, %321 : vector<8x512xf32>
    %c144 = arith.constant 144 : index
    %c0_169 = arith.constant 0 : index
    %323 = vector.load %arg2[%c144, %c0_169] : memref<176x128xbf16, #tpu.memory_space<vmem>>, vector<8x8xbf16>
    %324 = arith.truncf %309 : vector<8x512xf32> to vector<8x512xbf16>
    %cst_170 = arith.constant dense<0.000000e+00> : vector<8x512xf32>
    %325 = tpu.matmul %323, %324, %cst_170 {dimension_numbers = #tpu.dot_dimension_numbers<[1], [0], [0], [1], [0, 0, 1, 1], [], []>} : vector<8x8xbf16>, vector<8x512xbf16>, vector<8x512xf32> -> vector<8x512xf32>
    %c160 = arith.constant 160 : index
    %c0_171 = arith.constant 0 : index
    %326 = vector.load %arg2[%c160, %c0_171] : memref<176x128xbf16, #tpu.memory_space<vmem>>, vector<8x8xbf16>
    %327 = arith.truncf %322 : vector<8x512xf32> to vector<8x512xbf16>
    %cst_172 = arith.constant dense<0.000000e+00> : vector<8x512xf32>
    %328 = tpu.matmul %326, %327, %cst_172 {dimension_numbers = #tpu.dot_dimension_numbers<[1], [0], [0], [1], [0, 0, 1, 1], [], []>} : vector<8x8xbf16>, vector<8x512xbf16>, vector<8x512xf32> -> vector<8x512xf32>
    %329 = arith.addf %325, %328 : vector<8x512xf32>
    %c48_173 = arith.constant 48 : index
    %c0_174 = arith.constant 0 : index
    %330 = vector.load %arg3[%c48_173, %c0_174] : memref<56x1xf32, #tpu.memory_space<vmem>>, vector<8x1xf32>
    %331 = vector.broadcast %330 : vector<8x1xf32> to vector<8x512xf32>
    %332 = arith.addf %329, %331 : vector<8x512xf32>
    %cst_175 = arith.constant 0.000000e+00 : f32
    %333 = vector.broadcast %cst_175 : f32 to vector<8x512xf32>
    %334 = arith.subf %333, %332 : vector<8x512xf32>
    %335 = math.exp %334 : vector<8x512xf32>
    %cst_176 = arith.constant 1.000000e+00 : f32
    %336 = vector.broadcast %cst_176 : f32 to vector<8x512xf32>
    %337 = arith.addf %336, %335 : vector<8x512xf32>
    %338 = tpu.reciprocal %337 {approx = true} : vector<8x512xf32> -> vector<8x512xf32>
    %339 = arith.mulf %332, %338 : vector<8x512xf32>
    %c0_177 = arith.constant 0 : index
    %c0_178 = arith.constant 0 : index
    %c0_179 = arith.constant 0 : index
    %340 = vector.load %arg4[%c0_177, %c0_178, %c0_179] : memref<1x8x512xf32, #tpu.memory_space<vmem>>, vector<1x8x512xf32>
    %341 = vector.shape_cast %340 : vector<1x8x512xf32> to vector<8x512xf32>
    %342 = vector.shape_cast %339 : vector<8x512xf32> to vector<1x8x512xf32>
    tpu.vector_store %arg4[%c0_177, %c0_178, %c0_179], %342 {strides = array<i32>} : memref<1x8x512xf32, #tpu.memory_space<vmem>>, vector<1x8x512xf32>,
    return
  }
  func.func @transform_0(%arg0: i32) -> (i32, i32, i32) {
    %c0_i32 = arith.constant 0 : i32
    %c0_i32_0 = arith.constant 0 : i32
    %c0_i32_1 = arith.constant 0 : i32
    return %arg0, %c0_i32, %c0_i32_0 : i32, i32, i32
  }
  func.func @transform_1(%arg0: i32) -> (i32, i32) {
    %c0_i32 = arith.constant 0 : i32
    %c0_i32_0 = arith.constant 0 : i32
    %c0_i32_1 = arith.constant 0 : i32
    return %c0_i32, %c0_i32_0 : i32, i32
  }
  func.func @transform_2(%arg0: i32) -> (i32, i32) {
    %c0_i32 = arith.constant 0 : i32
    %c0_i32_0 = arith.constant 0 : i32
    %c0_i32_1 = arith.constant 0 : i32
    return %c0_i32, %c0_i32_0 : i32, i32
  }
  func.func @transform_3(%arg0: i32) -> (i32, i32, i32) {
    %c0_i32 = arith.constant 0 : i32
    %c0_i32_0 = arith.constant 0 : i32
    %c0_i32_1 = arith.constant 0 : i32
    return %arg0, %c0_i32, %c0_i32_0 : i32, i32, i32
  }
}

</mosaic_0001>

<llo_original>
// kernel: simple_spp_forward.1
$region0: #{simple_spp_forward.1}
  #allocation0 [shape = 'u32[]', space=smem, size = 0x4, offset = 0x4, fixed_abs, tag = 'smem constant byte address 0x4 - core index']
  #allocation1 [shape = 'u32[144,128]{1,0:T(1,128)}', space=vmem, size = 0x12000, scoped, tag = 'internal scratch']
  #allocation2 [shape = 'f32[72,512]{1,0:T(8,128)}', space=vmem, size = 0x24000, scoped, tag = 'scratch operand']
  %s0 = inlined_call_operand.vmem [shape: f32[1,8,512], index: 0, kind: input, shape index: {}]
  %s1 = inlined_call_operand.vmem [shape: bf16[176,128], index: 1, kind: input, shape index: {}]
  %s2 = inlined_call_operand.vmem [shape: f32[56,1], index: 2, kind: input, shape index: {}]
  %s3 = inlined_call_operand.vmem [shape: f32[1,8,512], index: 3, kind: output, shape index: {}]
  %s4 = sld [smem:[#allocation0]]
  $region22: #{simple_spp_forward.1} parent=0
    _
  %s6 = ssub.s32 1, %s4
  %s7 = scalar_select 0, %s6, %s4
  // Predicated region
  $region2: #{simple_spp_forward.1} parent=0 // pred_check
    _
  $region3: #{simple_spp_forward.1} parent=0 // pred_check_branch
    %9 = sbr.rel (0) target = $region5
  $region4: #{simple_spp_forward.1} parent=0 // pred_region
    _
  $region5: #{simple_spp_forward.1} parent=0 // pred_fallthru
    _
  // Predicated region
  $region6: #{simple_spp_forward.1} parent=0 // pred_check
    _
  $region7: #{simple_spp_forward.1} parent=0 // pred_check_branch
    %11 = sbr.rel (0) target = $region9
  $region8: #{simple_spp_forward.1} parent=0 // pred_region
    _
  $region9: #{simple_spp_forward.1} parent=0 // pred_fallthru
    _
  // Predicated region
  $region10: #{simple_spp_forward.1} parent=0 // pred_check
    _
  $region11: #{simple_spp_forward.1} parent=0 // pred_check_branch
    %13 = sbr.rel (0) target = $region13
  $region12: #{simple_spp_forward.1} parent=0 // pred_region
    _
  $region13: #{simple_spp_forward.1} parent=0 // pred_fallthru
    _
  %v15 = vld [vmem:[%s0] sm:$0xff]
  %v16 = vld [vmem:[%s0 + $0x8] sm:$0xff]
  %v17 = vld [vmem:[%s0 + $0x10] sm:$0xff]
  %v18 = vld [vmem:[%s0 + $0x18] sm:$0xff]
  %v19 = vlaneseq
  %v20 = vand.u32 %v19, 127
  %v21 = vadd.s32 %v20, 128
  %v22 = vadd.s32 %v20, 256
  %v23 = vadd.s32 %v20, 384
  %vm24 = vcmp.lt.s32.totalorder %v20, 0
  %v25 = vsub.s32 0, %v20
  %v26 = vsel %vm24, %v25, %v20
  %v27 = vshrl.u32 %v26, 8
  %v28 = vand.u32 %v26, 255
  %v29 = vsub.s32 0, %v28
  %v30 = vsel %vm24, %v29, %v28
  %vm31 = vcmp.lt.s32.totalorder %v21, 0
  %v32 = vsub.s32 0, %v21
  %v33 = vsel %vm31, %v32, %v21
  %v34 = vshrl.u32 %v33, 8
  %v35 = vand.u32 %v33, 255
  %v36 = vsub.s32 0, %v35
  %v37 = vsel %vm31, %v36, %v35
  %vm38 = vcmp.lt.s32.totalorder %v22, 0
  %v39 = vsub.s32 0, %v22
  %v40 = vsel %vm38, %v39, %v22
  %v41 = vshrl.u32 %v40, 8
  %v42 = vand.u32 %v40, 255
  %v43 = vsub.s32 0, %v42
  %v44 = vsel %vm38, %v43, %v42
  %vm45 = vcmp.lt.s32.totalorder %v23, 0
  %v46 = vsub.s32 0, %v23
  %v47 = vsel %vm45, %v46, %v23
  %v48 = vshrl.u32 %v47, 8
  %v49 = vand.u32 %v47, 255
  %v50 = vsub.s32 0, %v49
  %v51 = vsel %vm45, %v50, %v49
  %vm52 = vcmp.ne.s32.totalorder %v30, 0
  %vm53 = vcmp.ne.s32.totalorder %v37, 0
  %vm54 = vcmp.ne.s32.totalorder %v44, 0
  %vm55 = vcmp.ne.s32.totalorder %v51, 0
  %vm56 = vcmp.lt.s32.totalorder %v30, 0
  %vm57 = vcmp.lt.s32.totalorder %v37, 0
  %vm58 = vcmp.lt.s32.totalorder %v44, 0
  %vm59 = vcmp.lt.s32.totalorder %v51, 0
  %vm60 = vmand %vm56, %vm52
  %vm61 = vmand %vm57, %vm53
  %vm62 = vmand %vm58, %vm54
  %vm63 = vmand %vm59, %vm55
  %v64 = vadd.s32 %v30, 256
  %v65 = vadd.s32 %v37, 256
  %v66 = vadd.s32 %v44, 256
  %v67 = vadd.s32 %v51, 256
  %v68 = vsel %vm60, %v64, %v30
  %v69 = vsel %vm61, %v65, %v37
  %v70 = vsel %vm62, %v66, %v44
  %v71 = vsel %vm63, %v67, %v51
  %vm72 = vcmp.lt.s32.totalorder %v68, 0
  %v73 = vsub.s32 0, %v68
  %v74 = vsel %vm72, %v73, %v68
  %v75 = vshrl.u32 %v74, 4
  %v76 = vand.u32 %v74, 15
  %v77 = vsub.s32 0, %v76
  %v78 = vsel %vm72, %v77, %v76
  %vm79 = vcmp.lt.s32.totalorder %v69, 0
  %v80 = vsub.s32 0, %v69
  %v81 = vsel %vm79, %v80, %v69
  %v82 = vshrl.u32 %v81, 4
  %v83 = vand.u32 %v81, 15
  %v84 = vsub.s32 0, %v83
  %v85 = vsel %vm79, %v84, %v83
  %vm86 = vcmp.lt.s32.totalorder %v70, 0
  %v87 = vsub.s32 0, %v70
  %v88 = vsel %vm86, %v87, %v70
  %v89 = vshrl.u32 %v88, 4
  %v90 = vand.u32 %v88, 15
  %v91 = vsub.s32 0, %v90
  %v92 = vsel %vm86, %v91, %v90
  %vm93 = vcmp.lt.s32.totalorder %v71, 0
  %v94 = vsub.s32 0, %v71
  %v95 = vsel %vm93, %v94, %v71
  %v96 = vshrl.u32 %v95, 4
  %v97 = vand.u32 %v95, 15
  %v98 = vsub.s32 0, %v97
  %v99 = vsel %vm93, %v98, %v97
  %vm100 = vcmp.ne.s32.totalorder %v78, 0
  %vm101 = vcmp.ne.s32.totalorder %v85, 0
  %vm102 = vcmp.ne.s32.totalorder %v92, 0
  %vm103 = vcmp.ne.s32.totalorder %v99, 0
  %vm104 = vcmp.lt.s32.totalorder %v78, 0
  %vm105 = vcmp.lt.s32.totalorder %v85, 0
  %vm106 = vcmp.lt.s32.totalorder %v92, 0
  %vm107 = vcmp.lt.s32.totalorder %v99, 0
  %vm108 = vmand %vm104, %vm100
  %vm109 = vmand %vm105, %vm101
  %vm110 = vmand %vm106, %vm102
  %vm111 = vmand %vm107, %vm103
  %v112 = vadd.s32 %v78, 16
  %v113 = vadd.s32 %v85, 16
  %v114 = vadd.s32 %v92, 16
  %v115 = vadd.s32 %v99, 16
  %v116 = vsel %vm108, %v112, %v78
  %v117 = vsel %vm109, %v113, %v85
  %v118 = vsel %vm110, %v114, %v92
  %v119 = vsel %vm111, %v115, %v99
  %v120 = vld [vmem:[%s1] sm:$0xf]
  %v121 = vpack.c.bf16 %v15, %v15
  %v122 = vpack.c.bf16 %v16, %v16
  %v123 = vpack.c.bf16 %v17, %v17
  %v124 = vpack.c.bf16 %v18, %v18
  %v125 = vld [vmem:[%s2] sm:$0xff]
  %127 = vset.pattern.permute.xlu0 0
  %128 = vperm.xlu0 %127, %v125
  %v129 = vpop.permute.xlu0 %128
  %vm131 = vcmask 64512
  %v133 = vsel %vm131, %v120, 0
  %vm135 = vcmask 1043456
  %v137 = vsel %vm135, %v121, 0
  %v140 = vsel %vm135, %v122, 0
  %v143 = vsel %vm135, %v123, 0
  %v146 = vsel %vm135, %v124, 0
  %148 = vmatprep.subr.bf16.mxu0 %v140
  %149 = vmatpush1.bf16.msra.mxu0 %v137
  %150 = vmatprep.subr.bf16.mxu0 0
  %151 = vmatpush1.bf16.msra.mxu0 0
  %152 = vmatprep.subr.bf16.mxu0 0
  %153 = vmatpush1.bf16.msra.mxu0 0
  %154 = vmatprep.subr.bf16.mxu0 0
  %155 = vmatpush1.bf16.msra.mxu0 0
  %156 = vmatprep.subr.bf16.mxu0 0
  %157 = vmatpush1.bf16.msra.mxu0 0
  %158 = vmatprep.subr.bf16.mxu0 0
  %159 = vmatpush1.bf16.msra.mxu0 0
  %160 = vmatprep.subr.bf16.mxu0 0
  %161 = vmatpush1.bf16.msra.mxu0 0
  %162 = vmatprep.subr.bf16.mxu0 0
  %163 = vmatpush1.bf16.msra.mxu0 0
  %164 = vmatprep.subr.bf16.mxu0 0
  %165 = vmatpush1.bf16.msra.mxu0 0
  %166 = vmatprep.subr.bf16.mxu0 0
  %167 = vmatpush1.bf16.msra.mxu0 0
  %168 = vmatprep.subr.bf16.mxu0 0
  %169 = vmatpush1.bf16.msra.mxu0 0
  %170 = vmatprep.subr.bf16.mxu0 0
  %171 = vmatpush1.bf16.msra.mxu0 0
  %172 = vmatprep.subr.bf16.mxu0 0
  %173 = vmatpush1.bf16.msra.mxu0 0
  %174 = vmatprep.subr.bf16.mxu0 0
  %175 = vmatpush1.bf16.msra.mxu0 0
  %176 = vmatprep.subr.bf16.mxu0 0
  %177 = vmatpush1.bf16.msra.mxu0 0
  %178 = vmatprep.subr.bf16.mxu0 0
  %179 = vmatpush1.bf16.msra.mxu0 0
  %180 = vmatprep.mubr.bf16.mxu0 0
  %181 = vmatmul.mubr.bf16.gmra.mrb[0].mxu0 %v133
  %v182 = vpop.f32.mrb[0].mxu0
  %v183 = vadd.f32 %v129, %v182
  %v184 = vpop.f32.mrb[0].mxu0
  %v185 = vadd.f32 %v129, %v184
  %v186 = vpop.f32.mrb[0].mxu0
  %v187 = vpop.f32.mrb[0].mxu0
  %188 = vdwg.mxu0
  %189 = vmatprep.subr.bf16.mxu0 %v146
  %190 = vmatpush1.bf16.msra.mxu0 %v143
  %191 = vmatprep.subr.bf16.mxu0 0
  %192 = vmatpush1.bf16.msra.mxu0 0
  %193 = vmatprep.subr.bf16.mxu0 0
  %194 = vmatpush1.bf16.msra.mxu0 0
  %195 = vmatprep.subr.bf16.mxu0 0
  %196 = vmatpush1.bf16.msra.mxu0 0
  %197 = vmatprep.subr.bf16.mxu0 0
  %198 = vmatpush1.bf16.msra.mxu0 0
  %199 = vmatprep.subr.bf16.mxu0 0
  %200 = vmatpush1.bf16.msra.mxu0 0
  %201 = vmatprep.subr.bf16.mxu0 0
  %202 = vmatpush1.bf16.msra.mxu0 0
  %203 = vmatprep.subr.bf16.mxu0 0
  %204 = vmatpush1.bf16.msra.mxu0 0
  %205 = vmatprep.subr.bf16.mxu0 0
  %206 = vmatpush1.bf16.msra.mxu0 0
  %207 = vmatprep.subr.bf16.mxu0 0
  %208 = vmatpush1.bf16.msra.mxu0 0
  %209 = vmatprep.subr.bf16.mxu0 0
  %210 = vmatpush1.bf16.msra.mxu0 0
  %211 = vmatprep.subr.bf16.mxu0 0
  %212 = vmatpush1.bf16.msra.mxu0 0
  %213 = vmatprep.subr.bf16.mxu0 0
  %214 = vmatpush1.bf16.msra.mxu0 0
  %215 = vmatprep.subr.bf16.mxu0 0
  %216 = vmatpush1.bf16.msra.mxu0 0
  %217 = vmatprep.subr.bf16.mxu0 0
  %218 = vmatpush1.bf16.msra.mxu0 0
  %219 = vmatprep.subr.bf16.mxu0 0
  %220 = vmatpush1.bf16.msra.mxu0 0
  %221 = vmatprep.mubr.bf16.mxu0 0
  %222 = vmatmul.mubr.bf16.gmra.mrb[0].mxu0 %v133
  %v223 = vpop.f32.mrb[0].mxu0
  %v224 = vadd.f32 %v129, %v223
  %v225 = vpop.f32.mrb[0].mxu0
  %v226 = vadd.f32 %v129, %v225
  %v227 = vpop.f32.mrb[0].mxu0
  %v228 = vpop.f32.mrb[0].mxu0
  %229 = vdwg.mxu0
  %v230 = vsub.f32 0.0, %v183
  %v231 = vsub.f32 0.0, %v185
  %v232 = vsub.f32 0.0, %v224
  %v233 = vsub.f32 0.0, %v226
  %v234 = vmul.f32 %v230, 1.442695
  %v235 = vpow.pop %v234
  %v236 = vmul.f32 %v231, 1.442695
  %v237 = vpow.pop %v236
  %v238 = vmul.f32 %v232, 1.442695
  %v239 = vpow.pop %v238
  %v240 = vmul.f32 %v233, 1.442695
  %v241 = vpow.pop %v240
  %v242 = vadd.f32 %v235, 1.0
  %v243 = vadd.f32 %v237, 1.0
  %v244 = vadd.f32 %v239, 1.0
  %v245 = vadd.f32 %v241, 1.0
  %v246 = vrcp.pop %v242
  %v247 = vrcp.pop %v243
  %v248 = vrcp.pop %v244
  %v249 = vrcp.pop %v245
  %v250 = vmul.f32 %v183, %v246
  %v251 = vmul.f32 %v185, %v247
  %v252 = vmul.f32 %v224, %v248
  %v253 = vmul.f32 %v226, %v249
  %254 = vrot.lane.b32.xlu0 %v250, 17
  %v255 = vpop.permute.xlu0 %254
  %256 = vrot.lane.b32.xlu0 %v251, 17
  %v257 = vpop.permute.xlu0 %256
  %258 = vrot.lane.b32.xlu0 %v252, 17
  %v259 = vpop.permute.xlu0 %258
  %260 = vrot.lane.b32.xlu0 %v253, 17
  %v261 = vpop.permute.xlu0 %260
  %vm262 = vcmp.lt.s32.totalorder %v20, 17
  %v263 = vsel %vm262, %v259, %v261
  %v264 = vsel %vm262, %v257, %v259
  %v265 = vsel %vm262, %v255, %v257
  %v266 = vsel %vm262, %v261, %v255
  %vm267 = vcmp.ge.s32.totalorder %v116, 1
  %vm268 = vcmp.ge.s32.totalorder %v117, 1
  %vm269 = vcmp.ge.s32.totalorder %v118, 1
  %vm270 = vcmp.ge.s32.totalorder %v119, 1
  %vm271 = vcmp.ge.s32.totalorder %v68, 17
  %vm272 = vcmp.ge.s32.totalorder %v69, 17
  %vm273 = vcmp.ge.s32.totalorder %v70, 17
  %vm274 = vcmp.ge.s32.totalorder %v71, 17
  %vm275 = vmand %vm267, %vm271
  %vm276 = vmand %vm268, %vm272
  %vm277 = vmand %vm269, %vm273
  %vm278 = vmand %vm270, %vm274
  %v279 = vsel %vm275, %v266, 0.0
  %v280 = vsel %vm276, %v265, 0.0
  %v281 = vsel %vm277, %v264, 0.0
  %v282 = vsel %vm278, %v263, 0.0
  %283 = vst [vmem:[#allocation2] sm:$0xff] %v279
  %284 = vst [vmem:[#allocation2 + $0x8] sm:$0xff] %v280
  %285 = vst [vmem:[#allocation2 + $0x10] sm:$0xff] %v281
  %286 = vst [vmem:[#allocation2 + $0x18] sm:$0xff] %v282
  %287 = vrot.lane.b32.xlu0 %v250, 16
  %v288 = vpop.permute.xlu0 %287
  %289 = vrot.lane.b32.xlu0 %v251, 16
  %v290 = vpop.permute.xlu0 %289
  %291 = vrot.lane.b32.xlu0 %v252, 16
  %v292 = vpop.permute.xlu0 %291
  %293 = vrot.lane.b32.xlu0 %v253, 16
  %v294 = vpop.permute.xlu0 %293
  %vm295 = vcmp.lt.s32.totalorder %v20, 16
  %v296 = vsel %vm295, %v292, %v294
  %v297 = vsel %vm295, %v290, %v292
  %v298 = vsel %vm295, %v288, %v290
  %v299 = vsel %vm295, %v294, %v288
  %vm300 = vcmp.ge.s32.totalorder %v68, 16
  %vm301 = vcmp.ge.s32.totalorder %v69, 16
  %vm302 = vcmp.ge.s32.totalorder %v70, 16
  %vm303 = vcmp.ge.s32.totalorder %v71, 16
  %v304 = vsel %vm300, %v299, 0.0
  %v305 = vsel %vm301, %v298, 0.0
  %v306 = vsel %vm302, %v297, 0.0
  %v307 = vsel %vm303, %v296, 0.0
  %308 = vst [vmem:[#allocation2 + $0x20] sm:$0xff] %v304
  %309 = vst [vmem:[#allocation2 + $0x28] sm:$0xff] %v305
  %310 = vst [vmem:[#allocation2 + $0x30] sm:$0xff] %v306
  %311 = vst [vmem:[#allocation2 + $0x38] sm:$0xff] %v307
  %312 = vrot.lane.b32.xlu0 %v250, 15
  %v313 = vpop.permute.xlu0 %312
  %314 = vrot.lane.b32.xlu0 %v251, 15
  %v315 = vpop.permute.xlu0 %314
  %316 = vrot.lane.b32.xlu0 %v252, 15
  %v317 = vpop.permute.xlu0 %316
  %318 = vrot.lane.b32.xlu0 %v253, 15
  %v319 = vpop.permute.xlu0 %318
  %vm320 = vcmp.lt.s32.totalorder %v20, 15
  %v321 = vsel %vm320, %v317, %v319
  %v322 = vsel %vm320, %v315, %v317
  %v323 = vsel %vm320, %v313, %v315
  %v324 = vsel %vm320, %v319, %v313
  %vm325 = vcmp.lt.s32.totalorder %v116, 15
  %vm326 = vcmp.lt.s32.totalorder %v117, 15
  %vm327 = vcmp.lt.s32.totalorder %v118, 15
  %vm328 = vcmp.lt.s32.totalorder %v119, 15
  %vm329 = vcmp.ge.s32.totalorder %v68, 15
  %vm330 = vcmp.ge.s32.totalorder %v69, 15
  %vm331 = vcmp.ge.s32.totalorder %v70, 15
  %vm332 = vcmp.ge.s32.totalorder %v71, 15
  %vm333 = vmand %vm325, %vm329
  %vm334 = vmand %vm326, %vm330
  %vm335 = vmand %vm327, %vm331
  %vm336 = vmand %vm328, %vm332
  %v337 = vsel %vm333, %v324, 0.0
  %v338 = vsel %vm334, %v323, 0.0
  %v339 = vsel %vm335, %v322, 0.0
  %v340 = vsel %vm336, %v321, 0.0
  %341 = vst [vmem:[#allocation2 + $0x40] sm:$0xff] %v337
  %342 = vst [vmem:[#allocation2 + $0x48] sm:$0xff] %v338
  %343 = vst [vmem:[#allocation2 + $0x50] sm:$0xff] %v339
  %344 = vst [vmem:[#allocation2 + $0x58] sm:$0xff] %v340
  %345 = vrot.lane.b32.xlu0 %v250, 1
  %v346 = vpop.permute.xlu0 %345
  %347 = vrot.lane.b32.xlu0 %v251, 1
  %v348 = vpop.permute.xlu0 %347
  %349 = vrot.lane.b32.xlu0 %v252, 1
  %v350 = vpop.permute.xlu0 %349
  %351 = vrot.lane.b32.xlu0 %v253, 1
  %v352 = vpop.permute.xlu0 %351
  %vm353 = vcmp.lt.s32.totalorder %v20, 1
  %v354 = vsel %vm353, %v350, %v352
  %v355 = vsel %vm353, %v348, %v350
  %v356 = vsel %vm353, %v346, %v348
  %v357 = vsel %vm353, %v352, %v346
  %v358 = vsel %vm267, %v357, 0.0
  %v359 = vsel %vm268, %v356, 0.0
  %v360 = vsel %vm269, %v355, 0.0
  %v361 = vsel %vm270, %v354, 0.0
  %362 = vst [vmem:[#allocation2 + $0x60] sm:$0xff] %v358
  %363 = vst [vmem:[#allocation2 + $0x68] sm:$0xff] %v359
  %364 = vst [vmem:[#allocation2 + $0x70] sm:$0xff] %v360
  %365 = vst [vmem:[#allocation2 + $0x78] sm:$0xff] %v361
  %366 = vst [vmem:[#allocation2 + $0x80] sm:$0xff] %v250
  %367 = vst [vmem:[#allocation2 + $0x88] sm:$0xff] %v251
  %368 = vst [vmem:[#allocation2 + $0x90] sm:$0xff] %v252
  %369 = vst [vmem:[#allocation2 + $0x98] sm:$0xff] %v253
  %370 = vrot.lane.b32.xlu0 %v250, 127
  %v371 = vpop.permute.xlu0 %370
  %372 = vrot.lane.b32.xlu0 %v251, 127
  %v373 = vpop.permute.xlu0 %372
  %374 = vrot.lane.b32.xlu0 %v252, 127
  %v375 = vpop.permute.xlu0 %374
  %376 = vrot.lane.b32.xlu0 %v253, 127
  %v377 = vpop.permute.xlu0 %376
  %vm378 = vcmp.lt.s32.totalorder %v20, 127
  %v379 = vsel %vm378, %v375, %v377
  %v380 = vsel %vm378, %v373, %v375
  %v381 = vsel %vm378, %v371, %v373
  %v382 = vsel %vm378, %v377, %v371
  %v383 = vsel %vm325, %v381, 0.0
  %v384 = vsel %vm326, %v380, 0.0
  %v385 = vsel %vm327, %v379, 0.0
  %v386 = vsel %vm328, %v382, 0.0
  %387 = vst [vmem:[#allocation2 + $0xa0] sm:$0xff] %v383
  %388 = vst [vmem:[#allocation2 + $0xa8] sm:$0xff] %v384
  %389 = vst [vmem:[#allocation2 + $0xb0] sm:$0xff] %v385
  %390 = vst [vmem:[#allocation2 + $0xb8] sm:$0xff] %v386
  %391 = vrot.lane.b32.xlu0 %v250, 113
  %v392 = vpop.permute.xlu0 %391
  %393 = vrot.lane.b32.xlu0 %v251, 113
  %v394 = vpop.permute.xlu0 %393
  %395 = vrot.lane.b32.xlu0 %v252, 113
  %v396 = vpop.permute.xlu0 %395
  %397 = vrot.lane.b32.xlu0 %v253, 113
  %v398 = vpop.permute.xlu0 %397
  %vm399 = vcmp.lt.s32.totalorder %v20, 113
  %v400 = vsel %vm399, %v396, %v398
  %v401 = vsel %vm399, %v394, %v396
  %v402 = vsel %vm399, %v392, %v394
  %v403 = vsel %vm399, %v398, %v392
  %vm404 = vcmp.lt.s32.totalorder %v68, 241
  %vm405 = vcmp.lt.s32.totalorder %v69, 241
  %vm406 = vcmp.lt.s32.totalorder %v70, 241
  %vm407 = vcmp.lt.s32.totalorder %v71, 241
  %vm408 = vmand %vm267, %vm404
  %vm409 = vmand %vm268, %vm405
  %vm410 = vmand %vm269, %vm406
  %vm411 = vmand %vm270, %vm407
  %v412 = vsel %vm408, %v402, 0.0
  %v413 = vsel %vm409, %v401, 0.0
  %v414 = vsel %vm410, %v400, 0.0
  %v415 = vsel %vm411, %v403, 0.0
  %416 = vst [vmem:[#allocation2 + $0xc0] sm:$0xff] %v412
  %417 = vst [vmem:[#allocation2 + $0xc8] sm:$0xff] %v413
  %418 = vst [vmem:[#allocation2 + $0xd0] sm:$0xff] %v414
  %419 = vst [vmem:[#allocation2 + $0xd8] sm:$0xff] %v415
  %420 = vrot.lane.b32.xlu0 %v250, 112
  %v421 = vpop.permute.xlu0 %420
  %422 = vrot.lane.b32.xlu0 %v251, 112
  %v423 = vpop.permute.xlu0 %422
  %424 = vrot.lane.b32.xlu0 %v252, 112
  %v425 = vpop.permute.xlu0 %424
  %426 = vrot.lane.b32.xlu0 %v253, 112
  %v427 = vpop.permute.xlu0 %426
  %vm428 = vcmp.lt.s32.totalorder %v20, 112
  %v429 = vsel %vm428, %v425, %v427
  %v430 = vsel %vm428, %v423, %v425
  %v431 = vsel %vm428, %v421, %v423
  %v432 = vsel %vm428, %v427, %v421
  %vm433 = vcmp.lt.s32.totalorder %v68, 240
  %vm434 = vcmp.lt.s32.totalorder %v69, 240
  %vm435 = vcmp.lt.s32.totalorder %v70, 240
  %vm436 = vcmp.lt.s32.totalorder %v71, 240
  %v437 = vsel %vm433, %v431, 0.0
  %v438 = vsel %vm434, %v430, 0.0
  %v439 = vsel %vm435, %v429, 0.0
  %v440 = vsel %vm436, %v432, 0.0
  %441 = vst [vmem:[#allocation2 + $0xe0] sm:$0xff] %v437
  %442 = vst [vmem:[#allocation2 + $0xe8] sm:$0xff] %v438
  %443 = vst [vmem:[#allocation2 + $0xf0] sm:$0xff] %v439
  %444 = vst [vmem:[#allocation2 + $0xf8] sm:$0xff] %v440
  %445 = vrot.lane.b32.xlu0 %v250, 111
  %v446 = vpop.permute.xlu0 %445
  %447 = vrot.lane.b32.xlu0 %v251, 111
  %v448 = vpop.permute.xlu0 %447
  %449 = vrot.lane.b32.xlu0 %v252, 111
  %v450 = vpop.permute.xlu0 %449
  %451 = vrot.lane.b32.xlu0 %v253, 111
  %v452 = vpop.permute.xlu0 %451
  %vm453 = vcmp.lt.s32.totalorder %v20, 111
  %v454 = vsel %vm453, %v450, %v452
  %v455 = vsel %vm453, %v448, %v450
  %v456 = vsel %vm453, %v446, %v448
  %v457 = vsel %vm453, %v452, %v446
  %vm458 = vcmp.lt.s32.totalorder %v68, 239
  %vm459 = vcmp.lt.s32.totalorder %v69, 239
  %vm460 = vcmp.lt.s32.totalorder %v70, 239
  %vm461 = vcmp.lt.s32.totalorder %v71, 239
  %vm462 = vmand %vm325, %vm458
  %vm463 = vmand %vm326, %vm459
  %vm464 = vmand %vm327, %vm460
  %vm465 = vmand %vm328, %vm461
  %v466 = vsel %vm462, %v456, 0.0
  %v467 = vsel %vm463, %v455, 0.0
  %v468 = vsel %vm464, %v454, 0.0
  %v469 = vsel %vm465, %v457, 0.0
  %470 = vst [vmem:[#allocation2 + $0x100] sm:$0xff] %v466
  %471 = vst [vmem:[#allocation2 + $0x108] sm:$0xff] %v467
  %472 = vst [vmem:[#allocation2 + $0x110] sm:$0xff] %v468
  %473 = vst [vmem:[#allocation2 + $0x118] sm:$0xff] %v469
  %v474 = vld [vmem:[%s1 + $0x10] sm:$0xf]
  %v475 = vld [vmem:[#allocation2] sm:$0xff]
  %v476 = vld [vmem:[#allocation2 + $0x8] sm:$0xff]
  %v477 = vld [vmem:[#allocation2 + $0x10] sm:$0xff]
  %v478 = vld [vmem:[#allocation2 + $0x18] sm:$0xff]
  %v479 = vld [vmem:[#allocation2 + $0x20] sm:$0xff]
  %v480 = vld [vmem:[#allocation2 + $0x28] sm:$0xff]
  %v481 = vld [vmem:[#allocation2 + $0x30] sm:$0xff]
  %v482 = vld [vmem:[#allocation2 + $0x38] sm:$0xff]
  %v483 = vld [vmem:[#allocation2 + $0x40] sm:$0xff]
  %v484 = vld [vmem:[#allocation2 + $0x48] sm:$0xff]
  %v485 = vld [vmem:[#allocation2 + $0x50] sm:$0xff]
  %v486 = vld [vmem:[#allocation2 + $0x58] sm:$0xff]
  %v487 = vld [vmem:[#allocation2 + $0x60] sm:$0xff]
  %v488 = vld [vmem:[#allocation2 + $0x68] sm:$0xff]
  %v489 = vld [vmem:[#allocation2 + $0x70] sm:$0xff]
  %v490 = vld [vmem:[#allocation2 + $0x78] sm:$0xff]
  %v491 = vld [vmem:[#allocation2 + $0x80] sm:$0xff]
  %v492 = vld [vmem:[#allocation2 + $0x88] sm:$0xff]
  %v493 = vld [vmem:[#allocation2 + $0x90] sm:$0xff]
  %v494 = vld [vmem:[#allocation2 + $0x98] sm:$0xff]
  %v495 = vld [vmem:[#allocation2 + $0xa0] sm:$0xff]
  %v496 = vld [vmem:[#allocation2 + $0xa8] sm:$0xff]
  %v497 = vld [vmem:[#allocation2 + $0xb0] sm:$0xff]
  %v498 = vld [vmem:[#allocation2 + $0xb8] sm:$0xff]
  %v499 = vld [vmem:[#allocation2 + $0xc0] sm:$0xff]
  %v500 = vld [vmem:[#allocation2 + $0xc8] sm:$0xff]
  %v501 = vld [vmem:[#allocation2 + $0xd0] sm:$0xff]
  %v502 = vld [vmem:[#allocation2 + $0xd8] sm:$0xff]
  %v503 = vld [vmem:[#allocation2 + $0xe0] sm:$0xff]
  %v504 = vld [vmem:[#allocation2 + $0xe8] sm:$0xff]
  %v505 = vld [vmem:[#allocation2 + $0xf0] sm:$0xff]
  %v506 = vld [vmem:[#allocation2 + $0xf8] sm:$0xff]
  %v507 = vld [vmem:[#allocation2 + $0x100] sm:$0xff]
  %v508 = vld [vmem:[#allocation2 + $0x108] sm:$0xff]
  %v509 = vld [vmem:[#allocation2 + $0x110] sm:$0xff]
  %v510 = vld [vmem:[#allocation2 + $0x118] sm:$0xff]
  %v511 = vld [vmem:[%s2 + $0x10] sm:$0xff]
  %513 = vset.pattern.permute.xlu0 0
  %514 = vperm.xlu0 %513, %v511
  %v515 = vpop.permute.xlu0 %514
  %vm517 = vcmask 588800
  %v519 = vsel %vm517, %v474, 0
  %521 = vmatprep.subr.mxu0 %v476
  %522 = vmatpush1.msra.mxu0 %v475
  %523 = vmatprep.subr.mxu0 %v480
  %524 = vmatpush1.msra.mxu0 %v479
  %525 = vmatprep.subr.mxu0 %v484
  %526 = vmatpush1.msra.mxu0 %v483
  %527 = vmatprep.subr.mxu0 %v488
  %528 = vmatpush1.msra.mxu0 %v487
  %529 = vmatprep.subr.mxu0 %v492
  %530 = vmatpush1.msra.mxu0 %v491
  %531 = vmatprep.subr.mxu0 %v496
  %532 = vmatpush1.msra.mxu0 %v495
  %533 = vmatprep.subr.mxu0 %v500
  %534 = vmatpush1.msra.mxu0 %v499
  %535 = vmatprep.subr.mxu0 %v504
  %536 = vmatpush1.msra.mxu0 %v503
  %537 = vmatprep.subr.mxu0 %v508
  %538 = vmatpush1.msra.mxu0 %v507
  %539 = vmatprep.subr.mxu0 0.0
  %540 = vmatpush1.msra.mxu0 0.0
  %541 = vmatprep.subr.mxu0 0.0
  %542 = vmatpush1.msra.mxu0 0.0
  %543 = vmatprep.subr.mxu0 0.0
  %544 = vmatpush1.msra.mxu0 0.0
  %545 = vmatprep.subr.mxu0 0.0
  %546 = vmatpush1.msra.mxu0 0.0
  %547 = vmatprep.subr.mxu0 0.0
  %548 = vmatpush1.msra.mxu0 0.0
  %549 = vmatprep.subr.mxu0 0.0
  %550 = vmatpush1.msra.mxu0 0.0
  %551 = vmatprep.subr.mxu0 0.0
  %552 = vmatpush1.msra.mxu0 0.0
  %553 = vmatprep.subr.mxu0 0.0
  %554 = vmatpush1.msra.mxu0 0.0
  %555 = vmatprep.subr.mxu0 0.0
  %556 = vmatpush1.msra.mxu0 0.0
  %557 = vmatprep.subr.mxu0 0.0
  %558 = vmatpush1.msra.mxu0 0.0
  %559 = vmatprep.subr.mxu0 0.0
  %560 = vmatpush1.msra.mxu0 0.0
  %561 = vmatprep.subr.mxu0 0.0
  %562 = vmatpush1.msra.mxu0 0.0
  %563 = vmatprep.subr.mxu0 0.0
  %564 = vmatpush1.msra.mxu0 0.0
  %565 = vmatprep.subr.mxu0 0.0
  %566 = vmatpush1.msra.mxu0 0.0
  %567 = vmatprep.subr.mxu0 0.0
  %568 = vmatpush1.msra.mxu0 0.0
  %569 = vmatprep.subr.mxu0 0.0
  %570 = vmatpush1.msra.mxu0 0.0
  %571 = vmatprep.subr.mxu0 0.0
  %572 = vmatpush1.msra.mxu0 0.0
  %573 = vmatprep.subr.mxu0 0.0
  %574 = vmatpush1.msra.mxu0 0.0
  %575 = vmatprep.subr.mxu0 0.0
  %576 = vmatpush1.msra.mxu0 0.0
  %577 = vmatprep.subr.mxu0 0.0
  %578 = vmatpush1.msra.mxu0 0.0
  %579 = vmatprep.subr.mxu0 0.0
  %580 = vmatpush1.msra.mxu0 0.0
  %581 = vmatprep.subr.mxu0 0.0
  %582 = vmatpush1.msra.mxu0 0.0
  %583 = vmatprep.subr.mxu0 0.0
  %584 = vmatpush1.msra.mxu0 0.0
  %585 = vmatprep.mubr.bf16.mxu0 0
  %586 = vmatmul.mubr.bf16.gmra.mrb[0].mxu0 %v519
  %v587 = vpop.f32.mrb[0].mxu0
  %v588 = vadd.f32 %v515, %v587
  %v589 = vpop.f32.mrb[0].mxu0
  %v590 = vadd.f32 %v515, %v589
  %v591 = vpop.f32.mrb[0].mxu0
  %v592 = vpop.f32.mrb[0].mxu0
  %593 = vdwg.mxu0
  %594 = vmatprep.subr.mxu0 %v478
  %595 = vmatpush1.msra.mxu0 %v477
  %596 = vmatprep.subr.mxu0 %v482
  %597 = vmatpush1.msra.mxu0 %v481
  %598 = vmatprep.subr.mxu0 %v486
  %599 = vmatpush1.msra.mxu0 %v485
  %600 = vmatprep.subr.mxu0 %v490
  %601 = vmatpush1.msra.mxu0 %v489
  %602 = vmatprep.subr.mxu0 %v494
  %603 = vmatpush1.msra.mxu0 %v493
  %604 = vmatprep.subr.mxu0 %v498
  %605 = vmatpush1.msra.mxu0 %v497
  %606 = vmatprep.subr.mxu0 %v502
  %607 = vmatpush1.msra.mxu0 %v501
  %608 = vmatprep.subr.mxu0 %v506
  %609 = vmatpush1.msra.mxu0 %v505
  %610 = vmatprep.subr.mxu0 %v510
  %611 = vmatpush1.msra.mxu0 %v509
  %612 = vmatprep.subr.mxu0 0.0
  %613 = vmatpush1.msra.mxu0 0.0
  %614 = vmatprep.subr.mxu0 0.0
  %615 = vmatpush1.msra.mxu0 0.0
  %616 = vmatprep.subr.mxu0 0.0
  %617 = vmatpush1.msra.mxu0 0.0
  %618 = vmatprep.subr.mxu0 0.0
  %619 = vmatpush1.msra.mxu0 0.0
  %620 = vmatprep.subr.mxu0 0.0
  %621 = vmatpush1.msra.mxu0 0.0
  %622 = vmatprep.subr.mxu0 0.0
  %623 = vmatpush1.msra.mxu0 0.0
  %624 = vmatprep.subr.mxu0 0.0
  %625 = vmatpush1.msra.mxu0 0.0
  %626 = vmatprep.subr.mxu0 0.0
  %627 = vmatpush1.msra.mxu0 0.0
  %628 = vmatprep.subr.mxu0 0.0
  %629 = vmatpush1.msra.mxu0 0.0
  %630 = vmatprep.subr.mxu0 0.0
  %631 = vmatpush1.msra.mxu0 0.0
  %632 = vmatprep.subr.mxu0 0.0
  %633 = vmatpush1.msra.mxu0 0.0
  %634 = vmatprep.subr.mxu0 0.0
  %635 = vmatpush1.msra.mxu0 0.0
  %636 = vmatprep.subr.mxu0 0.0
  %637 = vmatpush1.msra.mxu0 0.0
  %638 = vmatprep.subr.mxu0 0.0
  %639 = vmatpush1.msra.mxu0 0.0
  %640 = vmatprep.subr.mxu0 0.0
  %641 = vmatpush1.msra.mxu0 0.0
  %642 = vmatprep.subr.mxu0 0.0
  %643 = vmatpush1.msra.mxu0 0.0
  %644 = vmatprep.subr.mxu0 0.0
  %645 = vmatpush1.msra.mxu0 0.0
  %646 = vmatprep.subr.mxu0 0.0
  %647 = vmatpush1.msra.mxu0 0.0
  %648 = vmatprep.subr.mxu0 0.0
  %649 = vmatpush1.msra.mxu0 0.0
  %650 = vmatprep.subr.mxu0 0.0
  %651 = vmatpush1.msra.mxu0 0.0
  %652 = vmatprep.subr.mxu0 0.0
  %653 = vmatpush1.msra.mxu0 0.0
  %654 = vmatprep.subr.mxu0 0.0
  %655 = vmatpush1.msra.mxu0 0.0
  %656 = vmatprep.subr.mxu0 0.0
  %657 = vmatpush1.msra.mxu0 0.0
  %658 = vmatprep.mubr.bf16.mxu0 0
  %659 = vmatmul.mubr.bf16.gmra.mrb[0].mxu0 %v519
  %v660 = vpop.f32.mrb[0].mxu0
  %v661 = vadd.f32 %v515, %v660
  %v662 = vpop.f32.mrb[0].mxu0
  %v663 = vadd.f32 %v515, %v662
  %v664 = vpop.f32.mrb[0].mxu0
  %v665 = vpop.f32.mrb[0].mxu0
  %666 = vdwg.mxu0
  %v667 = vsub.f32 0.0, %v588
  %v668 = vsub.f32 0.0, %v590
  %v669 = vsub.f32 0.0, %v661
  %v670 = vsub.f32 0.0, %v663
  %v671 = vmul.f32 %v667, 1.442695
  %v672 = vpow.pop %v671
  %v673 = vmul.f32 %v668, 1.442695
  %v674 = vpow.pop %v673
  %v675 = vmul.f32 %v669, 1.442695
  %v676 = vpow.pop %v675
  %v677 = vmul.f32 %v670, 1.442695
  %v678 = vpow.pop %v677
  %v679 = vadd.f32 %v672, 1.0
  %v680 = vadd.f32 %v674, 1.0
  %v681 = vadd.f32 %v676, 1.0
  %v682 = vadd.f32 %v678, 1.0
  %v683 = vrcp.pop %v679
  %v684 = vrcp.pop %v680
  %v685 = vrcp.pop %v681
  %v686 = vrcp.pop %v682
  %v687 = vmul.f32 %v588, %v683
  %v688 = vmul.f32 %v590, %v684
  %v689 = vmul.f32 %v661, %v685
  %v690 = vmul.f32 %v663, %v686
  %v691 = vld [vmem:[%s1 + $0x18] sm:$0xf]
  %v692 = vpack.c.bf16 %v687, %v687
  %v693 = vpack.c.bf16 %v688, %v688
  %v694 = vpack.c.bf16 %v689, %v689
  %v695 = vpack.c.bf16 %v690, %v690
  %v696 = vld [vmem:[%s2 + $0x18] sm:$0xff]
  %698 = vset.pattern.permute.xlu0 0
  %699 = vperm.xlu0 %698, %v696
  %v700 = vpop.permute.xlu0 %699
  %v703 = vsel %vm131, %v691, 0
  %v706 = vsel %vm135, %v692, 0
  %v709 = vsel %vm135, %v693, 0
  %v712 = vsel %vm135, %v694, 0
  %v715 = vsel %vm135, %v695, 0
  %717 = vmatprep.subr.bf16.mxu0 %v709
  %718 = vmatpush1.bf16.msra.mxu0 %v706
  %719 = vmatprep.subr.bf16.mxu0 0
  %720 = vmatpush1.bf16.msra.mxu0 0
  %721 = vmatprep.subr.bf16.mxu0 0
  %722 = vmatpush1.bf16.msra.mxu0 0
  %723 = vmatprep.subr.bf16.mxu0 0
  %724 = vmatpush1.bf16.msra.mxu0 0
  %725 = vmatprep.subr.bf16.mxu0 0
  %726 = vmatpush1.bf16.msra.mxu0 0
  %727 = vmatprep.subr.bf16.mxu0 0
  %728 = vmatpush1.bf16.msra.mxu0 0
  %729 = vmatprep.subr.bf16.mxu0 0
  %730 = vmatpush1.bf16.msra.mxu0 0
  %731 = vmatprep.subr.bf16.mxu0 0
  %732 = vmatpush1.bf16.msra.mxu0 0
  %733 = vmatprep.subr.bf16.mxu0 0
  %734 = vmatpush1.bf16.msra.mxu0 0
  %735 = vmatprep.subr.bf16.mxu0 0
  %736 = vmatpush1.bf16.msra.mxu0 0
  %737 = vmatprep.subr.bf16.mxu0 0
  %738 = vmatpush1.bf16.msra.mxu0 0
  %739 = vmatprep.subr.bf16.mxu0 0
  %740 = vmatpush1.bf16.msra.mxu0 0
  %741 = vmatprep.subr.bf16.mxu0 0
  %742 = vmatpush1.bf16.msra.mxu0 0
  %743 = vmatprep.subr.bf16.mxu0 0
  %744 = vmatpush1.bf16.msra.mxu0 0
  %745 = vmatprep.subr.bf16.mxu0 0
  %746 = vmatpush1.bf16.msra.mxu0 0
  %747 = vmatprep.subr.bf16.mxu0 0
  %748 = vmatpush1.bf16.msra.mxu0 0
  %749 = vmatprep.mubr.bf16.mxu0 0
  %750 = vmatmul.mubr.bf16.gmra.mrb[0].mxu0 %v703
  %v751 = vpop.f32.mrb[0].mxu0
  %v752 = vadd.f32 %v700, %v751
  %v753 = vpop.f32.mrb[0].mxu0
  %v754 = vadd.f32 %v700, %v753
  %v755 = vpop.f32.mrb[0].mxu0
  %v756 = vpop.f32.mrb[0].mxu0
  %757 = vdwg.mxu0
  %758 = vmatprep.subr.bf16.mxu0 %v715
  %759 = vmatpush1.bf16.msra.mxu0 %v712
  %760 = vmatprep.subr.bf16.mxu0 0
  %761 = vmatpush1.bf16.msra.mxu0 0
  %762 = vmatprep.subr.bf16.mxu0 0
  %763 = vmatpush1.bf16.msra.mxu0 0
  %764 = vmatprep.subr.bf16.mxu0 0
  %765 = vmatpush1.bf16.msra.mxu0 0
  %766 = vmatprep.subr.bf16.mxu0 0
  %767 = vmatpush1.bf16.msra.mxu0 0
  %768 = vmatprep.subr.bf16.mxu0 0
  %769 = vmatpush1.bf16.msra.mxu0 0
  %770 = vmatprep.subr.bf16.mxu0 0
  %771 = vmatpush1.bf16.msra.mxu0 0
  %772 = vmatprep.subr.bf16.mxu0 0
  %773 = vmatpush1.bf16.msra.mxu0 0
  %774 = vmatprep.subr.bf16.mxu0 0
  %775 = vmatpush1.bf16.msra.mxu0 0
  %776 = vmatprep.subr.bf16.mxu0 0
  %777 = vmatpush1.bf16.msra.mxu0 0
  %778 = vmatprep.subr.bf16.mxu0 0
  %779 = vmatpush1.bf16.msra.mxu0 0
  %780 = vmatprep.subr.bf16.mxu0 0
  %781 = vmatpush1.bf16.msra.mxu0 0
  %782 = vmatprep.subr.bf16.mxu0 0
  %783 = vmatpush1.bf16.msra.mxu0 0
  %784 = vmatprep.subr.bf16.mxu0 0
  %785 = vmatpush1.bf16.msra.mxu0 0
  %786 = vmatprep.subr.bf16.mxu0 0
  %787 = vmatpush1.bf16.msra.mxu0 0
  %788 = vmatprep.subr.bf16.mxu0 0
  %789 = vmatpush1.bf16.msra.mxu0 0
  %790 = vmatprep.mubr.bf16.mxu0 0
  %791 = vmatmul.mubr.bf16.gmra.mrb[0].mxu0 %v703
  %v792 = vpop.f32.mrb[0].mxu0
  %v793 = vadd.f32 %v700, %v792
  %v794 = vpop.f32.mrb[0].mxu0
  %v795 = vadd.f32 %v700, %v794
  %v796 = vpop.f32.mrb[0].mxu0
  %v797 = vpop.f32.mrb[0].mxu0
  %798 = vdwg.mxu0
  %v799 = vsub.f32 0.0, %v752
  %v800 = vsub.f32 0.0, %v754
  %v801 = vsub.f32 0.0, %v793
  %v802 = vsub.f32 0.0, %v795
  %v803 = vmul.f32 %v799, 1.442695
  %v804 = vpow.pop %v803
  %v805 = vmul.f32 %v800, 1.442695
  %v806 = vpow.pop %v805
  %v807 = vmul.f32 %v801, 1.442695
  %v808 = vpow.pop %v807
  %v809 = vmul.f32 %v802, 1.442695
  %v810 = vpow.pop %v809
  %v811 = vadd.f32 %v804, 1.0
  %v812 = vadd.f32 %v806, 1.0
  %v813 = vadd.f32 %v808, 1.0
  %v814 = vadd.f32 %v810, 1.0
  %v815 = vrcp.pop %v811
  %v816 = vrcp.pop %v812
  %v817 = vrcp.pop %v813
  %v818 = vrcp.pop %v814
  %v819 = vmul.f32 %v752, %v815
  %v820 = vmul.f32 %v754, %v816
  %v821 = vmul.f32 %v793, %v817
  %v822 = vmul.f32 %v795, %v818
  %823 = vrot.lane.b32.xlu0 %v819, 2
  %v824 = vpop.permute.xlu0 %823
  %825 = vrot.lane.b32.xlu0 %v820, 2
  %v826 = vpop.permute.xlu0 %825
  %827 = vrot.lane.b32.xlu0 %v821, 2
  %v828 = vpop.permute.xlu0 %827
  %829 = vrot.lane.b32.xlu0 %v822, 2
  %v830 = vpop.permute.xlu0 %829
  %vm831 = vcmp.lt.s32.totalorder %v20, 2
  %v832 = vsel %vm831, %v828, %v830
  %v833 = vsel %vm831, %v826, %v828
  %v834 = vsel %vm831, %v824, %v826
  %v835 = vsel %vm831, %v830, %v824
  %vm836 = vcmp.ge.s32.totalorder %v116, 2
  %vm837 = vcmp.ge.s32.totalorder %v117, 2
  %vm838 = vcmp.ge.s32.totalorder %v118, 2
  %vm839 = vcmp.ge.s32.totalorder %v119, 2
  %v840 = vsel %vm836, %v835, -inf
  %v841 = vsel %vm837, %v834, -inf
  %v842 = vsel %vm838, %v833, -inf
  %v843 = vsel %vm839, %v832, -inf
  %v844 = vmax.f32 %v819, %v840
  %v845 = vmax.f32 %v820, %v841
  %v846 = vmax.f32 %v821, %v842
  %v847 = vmax.f32 %v822, %v843
  %848 = vrot.lane.b32.xlu0 %v819, 1
  %v849 = vpop.permute.xlu0 %848
  %850 = vrot.lane.b32.xlu0 %v820, 1
  %v851 = vpop.permute.xlu0 %850
  %852 = vrot.lane.b32.xlu0 %v821, 1
  %v853 = vpop.permute.xlu0 %852
  %854 = vrot.lane.b32.xlu0 %v822, 1
  %v855 = vpop.permute.xlu0 %854
  %v856 = vsel %vm353, %v853, %v855
  %v857 = vsel %vm353, %v851, %v853
  %v858 = vsel %vm353, %v849, %v851
  %v859 = vsel %vm353, %v855, %v849
  %v860 = vsel %vm267, %v859, -inf
  %v861 = vsel %vm268, %v858, -inf
  %v862 = vsel %vm269, %v857, -inf
  %v863 = vsel %vm270, %v856, -inf
  %v864 = vmax.f32 %v844, %v860
  %v865 = vmax.f32 %v845, %v861
  %v866 = vmax.f32 %v846, %v862
  %v867 = vmax.f32 %v847, %v863
  %868 = vrot.lane.b32.xlu0 %v819, 127
  %v869 = vpop.permute.xlu0 %868
  %870 = vrot.lane.b32.xlu0 %v820, 127
  %v871 = vpop.permute.xlu0 %870
  %872 = vrot.lane.b32.xlu0 %v821, 127
  %v873 = vpop.permute.xlu0 %872
  %874 = vrot.lane.b32.xlu0 %v822, 127
  %v875 = vpop.permute.xlu0 %874
  %v876 = vsel %vm378, %v873, %v875
  %v877 = vsel %vm378, %v871, %v873
  %v878 = vsel %vm378, %v869, %v871
  %v879 = vsel %vm378, %v875, %v869
  %v880 = vsel %vm325, %v878, -inf
  %v881 = vsel %vm326, %v877, -inf
  %v882 = vsel %vm327, %v876, -inf
  %v883 = vsel %vm328, %v879, -inf
  %v884 = vmax.f32 %v864, %v880
  %v885 = vmax.f32 %v865, %v881
  %v886 = vmax.f32 %v866, %v882
  %v887 = vmax.f32 %v867, %v883
  %888 = vrot.lane.b32.xlu0 %v819, 126
  %v889 = vpop.permute.xlu0 %888
  %890 = vrot.lane.b32.xlu0 %v820, 126
  %v891 = vpop.permute.xlu0 %890
  %892 = vrot.lane.b32.xlu0 %v821, 126
  %v893 = vpop.permute.xlu0 %892
  %894 = vrot.lane.b32.xlu0 %v822, 126
  %v895 = vpop.permute.xlu0 %894
  %vm896 = vcmp.lt.s32.totalorder %v20, 126
  %v897 = vsel %vm896, %v893, %v895
  %v898 = vsel %vm896, %v891, %v893
  %v899 = vsel %vm896, %v889, %v891
  %v900 = vsel %vm896, %v895, %v889
  %vm901 = vcmp.lt.s32.totalorder %v116, 14
  %vm902 = vcmp.lt.s32.totalorder %v117, 14
  %vm903 = vcmp.lt.s32.totalorder %v118, 14
  %vm904 = vcmp.lt.s32.totalorder %v119, 14
  %v905 = vsel %vm901, %v899, -inf
  %v906 = vsel %vm902, %v898, -inf
  %v907 = vsel %vm903, %v897, -inf
  %v908 = vsel %vm904, %v900, -inf
  %v909 = vmax.f32 %v884, %v905
  %v910 = vmax.f32 %v885, %v906
  %v911 = vmax.f32 %v886, %v907
  %v912 = vmax.f32 %v887, %v908
  %913 = vrot.lane.b32.xlu0 %v909, 32
  %v914 = vpop.permute.xlu0 %913
  %915 = vrot.lane.b32.xlu0 %v910, 32
  %v916 = vpop.permute.xlu0 %915
  %917 = vrot.lane.b32.xlu0 %v911, 32
  %v918 = vpop.permute.xlu0 %917
  %919 = vrot.lane.b32.xlu0 %v912, 32
  %v920 = vpop.permute.xlu0 %919
  %vm921 = vcmp.lt.s32.totalorder %v20, 32
  %v922 = vsel %vm921, %v918, %v920
  %v923 = vsel %vm921, %v916, %v918
  %v924 = vsel %vm921, %v914, %v916
  %v925 = vsel %vm921, %v920, %v914
  %vm926 = vcmp.ge.s32.totalorder %v68, 32
  %vm927 = vcmp.ge.s32.totalorder %v69, 32
  %vm928 = vcmp.ge.s32.totalorder %v70, 32
  %vm929 = vcmp.ge.s32.totalorder %v71, 32
  %v930 = vsel %vm926, %v925, -inf
  %v931 = vsel %vm927, %v924, -inf
  %v932 = vsel %vm928, %v923, -inf
  %v933 = vsel %vm929, %v922, -inf
  %v934 = vmax.f32 %v909, %v930
  %v935 = vmax.f32 %v910, %v931
  %v936 = vmax.f32 %v911, %v932
  %v937 = vmax.f32 %v912, %v933
  %938 = vrot.lane.b32.xlu0 %v909, 16
  %v939 = vpop.permute.xlu0 %938
  %940 = vrot.lane.b32.xlu0 %v910, 16
  %v941 = vpop.permute.xlu0 %940
  %942 = vrot.lane.b32.xlu0 %v911, 16
  %v943 = vpop.permute.xlu0 %942
  %944 = vrot.lane.b32.xlu0 %v912, 16
  %v945 = vpop.permute.xlu0 %944
  %v946 = vsel %vm295, %v943, %v945
  %v947 = vsel %vm295, %v941, %v943
  %v948 = vsel %vm295, %v939, %v941
  %v949 = vsel %vm295, %v945, %v939
  %v950 = vsel %vm300, %v949, -inf
  %v951 = vsel %vm301, %v948, -inf
  %v952 = vsel %vm302, %v947, -inf
  %v953 = vsel %vm303, %v946, -inf
  %v954 = vmax.f32 %v934, %v950
  %v955 = vmax.f32 %v935, %v951
  %v956 = vmax.f32 %v936, %v952
  %v957 = vmax.f32 %v937, %v953
  %958 = vrot.lane.b32.xlu0 %v909, 112
  %v959 = vpop.permute.xlu0 %958
  %960 = vrot.lane.b32.xlu0 %v910, 112
  %v961 = vpop.permute.xlu0 %960
  %962 = vrot.lane.b32.xlu0 %v911, 112
  %v963 = vpop.permute.xlu0 %962
  %964 = vrot.lane.b32.xlu0 %v912, 112
  %v965 = vpop.permute.xlu0 %964
  %v966 = vsel %vm428, %v963, %v965
  %v967 = vsel %vm428, %v961, %v963
  %v968 = vsel %vm428, %v959, %v961
  %v969 = vsel %vm428, %v965, %v959
  %v970 = vsel %vm433, %v968, -inf
  %v971 = vsel %vm434, %v967, -inf
  %v972 = vsel %vm435, %v966, -inf
  %v973 = vsel %vm436, %v969, -inf
  %v974 = vmax.f32 %v954, %v970
  %v975 = vmax.f32 %v955, %v971
  %v976 = vmax.f32 %v956, %v972
  %v977 = vmax.f32 %v957, %v973
  %978 = vrot.lane.b32.xlu0 %v909, 96
  %v979 = vpop.permute.xlu0 %978
  %980 = vrot.lane.b32.xlu0 %v910, 96
  %v981 = vpop.permute.xlu0 %980
  %982 = vrot.lane.b32.xlu0 %v911, 96
  %v983 = vpop.permute.xlu0 %982
  %984 = vrot.lane.b32.xlu0 %v912, 96
  %v985 = vpop.permute.xlu0 %984
  %vm986 = vcmp.lt.s32.totalorder %v20, 96
  %v987 = vsel %vm986, %v983, %v985
  %v988 = vsel %vm986, %v981, %v983
  %v989 = vsel %vm986, %v979, %v981
  %v990 = vsel %vm986, %v985, %v979
  %vm991 = vcmp.lt.s32.totalorder %v68, 224
  %vm992 = vcmp.lt.s32.totalorder %v69, 224
  %vm993 = vcmp.lt.s32.totalorder %v70, 224
  %vm994 = vcmp.lt.s32.totalorder %v71, 224
  %v995 = vsel %vm991, %v989, -inf
  %v996 = vsel %vm992, %v988, -inf
  %v997 = vsel %vm993, %v987, -inf
  %v998 = vsel %vm994, %v990, -inf
  %v999 = vmax.f32 %v974, %v995
  %v1000 = vmax.f32 %v975, %v996
  %v1001 = vmax.f32 %v976, %v997
  %v1002 = vmax.f32 %v977, %v998
  %1003 = vrot.lane.b32.xlu0 %v999, 2
  %v1004 = vpop.permute.xlu0 %1003
  %1005 = vrot.lane.b32.xlu0 %v1000, 2
  %v1006 = vpop.permute.xlu0 %1005
  %1007 = vrot.lane.b32.xlu0 %v1001, 2
  %v1008 = vpop.permute.xlu0 %1007
  %1009 = vrot.lane.b32.xlu0 %v1002, 2
  %v1010 = vpop.permute.xlu0 %1009
  %v1011 = vsel %vm831, %v1008, %v1010
  %v1012 = vsel %vm831, %v1006, %v1008
  %v1013 = vsel %vm831, %v1004, %v1006
  %v1014 = vsel %vm831, %v1010, %v1004
  %v1015 = vsel %vm836, %v1014, -inf
  %v1016 = vsel %vm837, %v1013, -inf
  %v1017 = vsel %vm838, %v1012, -inf
  %v1018 = vsel %vm839, %v1011, -inf
  %v1019 = vmax.f32 %v999, %v1015
  %v1020 = vmax.f32 %v1000, %v1016
  %v1021 = vmax.f32 %v1001, %v1017
  %v1022 = vmax.f32 %v1002, %v1018
  %1023 = vrot.lane.b32.xlu0 %v999, 1
  %v1024 = vpop.permute.xlu0 %1023
  %1025 = vrot.lane.b32.xlu0 %v1000, 1
  %v1026 = vpop.permute.xlu0 %1025
  %1027 = vrot.lane.b32.xlu0 %v1001, 1
  %v1028 = vpop.permute.xlu0 %1027
  %1029 = vrot.lane.b32.xlu0 %v1002, 1
  %v1030 = vpop.permute.xlu0 %1029
  %v1031 = vsel %vm353, %v1028, %v1030
  %v1032 = vsel %vm353, %v1026, %v1028
  %v1033 = vsel %vm353, %v1024, %v1026
  %v1034 = vsel %vm353, %v1030, %v1024
  %v1035 = vsel %vm267, %v1034, -inf
  %v1036 = vsel %vm268, %v1033, -inf
  %v1037 = vsel %vm269, %v1032, -inf
  %v1038 = vsel %vm270, %v1031, -inf
  %v1039 = vmax.f32 %v1019, %v1035
  %v1040 = vmax.f32 %v1020, %v1036
  %v1041 = vmax.f32 %v1021, %v1037
  %v1042 = vmax.f32 %v1022, %v1038
  %1043 = vrot.lane.b32.xlu0 %v999, 127
  %v1044 = vpop.permute.xlu0 %1043
  %1045 = vrot.lane.b32.xlu0 %v1000, 127
  %v1046 = vpop.permute.xlu0 %1045
  %1047 = vrot.lane.b32.xlu0 %v1001, 127
  %v1048 = vpop.permute.xlu0 %1047
  %1049 = vrot.lane.b32.xlu0 %v1002, 127
  %v1050 = vpop.permute.xlu0 %1049
  %v1051 = vsel %vm378, %v1048, %v1050
  %v1052 = vsel %vm378, %v1046, %v1048
  %v1053 = vsel %vm378, %v1044, %v1046
  %v1054 = vsel %vm378, %v1050, %v1044
  %v1055 = vsel %vm325, %v1053, -inf
  %v1056 = vsel %vm326, %v1052, -inf
  %v1057 = vsel %vm327, %v1051, -inf
  %v1058 = vsel %vm328, %v1054, -inf
  %v1059 = vmax.f32 %v1039, %v1055
  %v1060 = vmax.f32 %v1040, %v1056
  %v1061 = vmax.f32 %v1041, %v1057
  %v1062 = vmax.f32 %v1042, %v1058
  %1063 = vrot.lane.b32.xlu0 %v999, 126
  %v1064 = vpop.permute.xlu0 %1063
  %1065 = vrot.lane.b32.xlu0 %v1000, 126
  %v1066 = vpop.permute.xlu0 %1065
  %1067 = vrot.lane.b32.xlu0 %v1001, 126
  %v1068 = vpop.permute.xlu0 %1067
  %1069 = vrot.lane.b32.xlu0 %v1002, 126
  %v1070 = vpop.permute.xlu0 %1069
  %v1071 = vsel %vm896, %v1068, %v1070
  %v1072 = vsel %vm896, %v1066, %v1068
  %v1073 = vsel %vm896, %v1064, %v1066
  %v1074 = vsel %vm896, %v1070, %v1064
  %v1075 = vsel %vm901, %v1073, -inf
  %v1076 = vsel %vm902, %v1072, -inf
  %v1077 = vsel %vm903, %v1071, -inf
  %v1078 = vsel %vm904, %v1074, -inf
  %v1079 = vmax.f32 %v1059, %v1075
  %v1080 = vmax.f32 %v1060, %v1076
  %v1081 = vmax.f32 %v1061, %v1077
  %v1082 = vmax.f32 %v1062, %v1078
  %1083 = vrot.lane.b32.xlu0 %v1079, 32
  %v1084 = vpop.permute.xlu0 %1083
  %1085 = vrot.lane.b32.xlu0 %v1080, 32
  %v1086 = vpop.permute.xlu0 %1085
  %1087 = vrot.lane.b32.xlu0 %v1081, 32
  %v1088 = vpop.permute.xlu0 %1087
  %1089 = vrot.lane.b32.xlu0 %v1082, 32
  %v1090 = vpop.permute.xlu0 %1089
  %v1091 = vsel %vm921, %v1088, %v1090
  %v1092 = vsel %vm921, %v1086, %v1088
  %v1093 = vsel %vm921, %v1084, %v1086
  %v1094 = vsel %vm921, %v1090, %v1084
  %v1095 = vsel %vm926, %v1094, -inf
  %v1096 = vsel %vm927, %v1093, -inf
  %v1097 = vsel %vm928, %v1092, -inf
  %v1098 = vsel %vm929, %v1091, -inf
  %v1099 = vmax.f32 %v1079, %v1095
  %v1100 = vmax.f32 %v1080, %v1096
  %v1101 = vmax.f32 %v1081, %v1097
  %v1102 = vmax.f32 %v1082, %v1098
  %1103 = vrot.lane.b32.xlu0 %v1079, 16
  %v1104 = vpop.permute.xlu0 %1103
  %1105 = vrot.lane.b32.xlu0 %v1080, 16
  %v1106 = vpop.permute.xlu0 %1105
  %1107 = vrot.lane.b32.xlu0 %v1081, 16
  %v1108 = vpop.permute.xlu0 %1107
  %1109 = vrot.lane.b32.xlu0 %v1082, 16
  %v1110 = vpop.permute.xlu0 %1109
  %v1111 = vsel %vm295, %v1108, %v1110
  %v1112 = vsel %vm295, %v1106, %v1108
  %v1113 = vsel %vm295, %v1104, %v1106
  %v1114 = vsel %vm295, %v1110, %v1104
  %v1115 = vsel %vm300, %v1114, -inf
  %v1116 = vsel %vm301, %v1113, -inf
  %v1117 = vsel %vm302, %v1112, -inf
  %v1118 = vsel %vm303, %v1111, -inf
  %v1119 = vmax.f32 %v1099, %v1115
  %v1120 = vmax.f32 %v1100, %v1116
  %v1121 = vmax.f32 %v1101, %v1117
  %v1122 = vmax.f32 %v1102, %v1118
  %1123 = vrot.lane.b32.xlu0 %v1079, 112
  %v1124 = vpop.permute.xlu0 %1123
  %1125 = vrot.lane.b32.xlu0 %v1080, 112
  %v1126 = vpop.permute.xlu0 %1125
  %1127 = vrot.lane.b32.xlu0 %v1081, 112
  %v1128 = vpop.permute.xlu0 %1127
  %1129 = vrot.lane.b32.xlu0 %v1082, 112
  %v1130 = vpop.permute.xlu0 %1129
  %v1131 = vsel %vm428, %v1128, %v1130
  %v1132 = vsel %vm428, %v1126, %v1128
  %v1133 = vsel %vm428, %v1124, %v1126
  %v1134 = vsel %vm428, %v1130, %v1124
  %v1135 = vsel %vm433, %v1133, -inf
  %v1136 = vsel %vm434, %v1132, -inf
  %v1137 = vsel %vm435, %v1131, -inf
  %v1138 = vsel %vm436, %v1134, -inf
  %v1139 = vmax.f32 %v1119, %v1135
  %v1140 = vmax.f32 %v1120, %v1136
  %v1141 = vmax.f32 %v1121, %v1137
  %v1142 = vmax.f32 %v1122, %v1138
  %1143 = vrot.lane.b32.xlu0 %v1079, 96
  %v1144 = vpop.permute.xlu0 %1143
  %1145 = vrot.lane.b32.xlu0 %v1080, 96
  %v1146 = vpop.permute.xlu0 %1145
  %1147 = vrot.lane.b32.xlu0 %v1081, 96
  %v1148 = vpop.permute.xlu0 %1147
  %1149 = vrot.lane.b32.xlu0 %v1082, 96
  %v1150 = vpop.permute.xlu0 %1149
  %v1151 = vsel %vm986, %v1148, %v1150
  %v1152 = vsel %vm986, %v1146, %v1148
  %v1153 = vsel %vm986, %v1144, %v1146
  %v1154 = vsel %vm986, %v1150, %v1144
  %v1155 = vsel %vm991, %v1153, -inf
  %v1156 = vsel %vm992, %v1152, -inf
  %v1157 = vsel %vm993, %v1151, -inf
  %v1158 = vsel %vm994, %v1154, -inf
  %v1159 = vmax.f32 %v1139, %v1155
  %v1160 = vmax.f32 %v1140, %v1156
  %v1161 = vmax.f32 %v1141, %v1157
  %v1162 = vmax.f32 %v1142, %v1158
  %1163 = vrot.lane.b32.xlu0 %v1159, 2
  %v1164 = vpop.permute.xlu0 %1163
  %1165 = vrot.lane.b32.xlu0 %v1160, 2
  %v1166 = vpop.permute.xlu0 %1165
  %1167 = vrot.lane.b32.xlu0 %v1161, 2
  %v1168 = vpop.permute.xlu0 %1167
  %1169 = vrot.lane.b32.xlu0 %v1162, 2
  %v1170 = vpop.permute.xlu0 %1169
  %v1171 = vsel %vm831, %v1168, %v1170
  %v1172 = vsel %vm831, %v1166, %v1168
  %v1173 = vsel %vm831, %v1164, %v1166
  %v1174 = vsel %vm831, %v1170, %v1164
  %v1175 = vsel %vm836, %v1174, -inf
  %v1176 = vsel %vm837, %v1173, -inf
  %v1177 = vsel %vm838, %v1172, -inf
  %v1178 = vsel %vm839, %v1171, -inf
  %v1179 = vmax.f32 %v1159, %v1175
  %v1180 = vmax.f32 %v1160, %v1176
  %v1181 = vmax.f32 %v1161, %v1177
  %v1182 = vmax.f32 %v1162, %v1178
  %1183 = vrot.lane.b32.xlu0 %v1159, 1
  %v1184 = vpop.permute.xlu0 %1183
  %1185 = vrot.lane.b32.xlu0 %v1160, 1
  %v1186 = vpop.permute.xlu0 %1185
  %1187 = vrot.lane.b32.xlu0 %v1161, 1
  %v1188 = vpop.permute.xlu0 %1187
  %1189 = vrot.lane.b32.xlu0 %v1162, 1
  %v1190 = vpop.permute.xlu0 %1189
  %v1191 = vsel %vm353, %v1188, %v1190
  %v1192 = vsel %vm353, %v1186, %v1188
  %v1193 = vsel %vm353, %v1184, %v1186
  %v1194 = vsel %vm353, %v1190, %v1184
  %v1195 = vsel %vm267, %v1194, -inf
  %v1196 = vsel %vm268, %v1193, -inf
  %v1197 = vsel %vm269, %v1192, -inf
  %v1198 = vsel %vm270, %v1191, -inf
  %v1199 = vmax.f32 %v1179, %v1195
  %v1200 = vmax.f32 %v1180, %v1196
  %v1201 = vmax.f32 %v1181, %v1197
  %v1202 = vmax.f32 %v1182, %v1198
  %1203 = vrot.lane.b32.xlu0 %v1159, 127
  %v1204 = vpop.permute.xlu0 %1203
  %1205 = vrot.lane.b32.xlu0 %v1160, 127
  %v1206 = vpop.permute.xlu0 %1205
  %1207 = vrot.lane.b32.xlu0 %v1161, 127
  %v1208 = vpop.permute.xlu0 %1207
  %1209 = vrot.lane.b32.xlu0 %v1162, 127
  %v1210 = vpop.permute.xlu0 %1209
  %v1211 = vsel %vm378, %v1208, %v1210
  %v1212 = vsel %vm378, %v1206, %v1208
  %v1213 = vsel %vm378, %v1204, %v1206
  %v1214 = vsel %vm378, %v1210, %v1204
  %v1215 = vsel %vm325, %v1213, -inf
  %v1216 = vsel %vm326, %v1212, -inf
  %v1217 = vsel %vm327, %v1211, -inf
  %v1218 = vsel %vm328, %v1214, -inf
  %v1219 = vmax.f32 %v1199, %v1215
  %v1220 = vmax.f32 %v1200, %v1216
  %v1221 = vmax.f32 %v1201, %v1217
  %v1222 = vmax.f32 %v1202, %v1218
  %1223 = vrot.lane.b32.xlu0 %v1159, 126
  %v1224 = vpop.permute.xlu0 %1223
  %1225 = vrot.lane.b32.xlu0 %v1160, 126
  %v1226 = vpop.permute.xlu0 %1225
  %1227 = vrot.lane.b32.xlu0 %v1161, 126
  %v1228 = vpop.permute.xlu0 %1227
  %1229 = vrot.lane.b32.xlu0 %v1162, 126
  %v1230 = vpop.permute.xlu0 %1229
  %v1231 = vsel %vm896, %v1228, %v1230
  %v1232 = vsel %vm896, %v1226, %v1228
  %v1233 = vsel %vm896, %v1224, %v1226
  %v1234 = vsel %vm896, %v1230, %v1224
  %v1235 = vsel %vm901, %v1233, -inf
  %v1236 = vsel %vm902, %v1232, -inf
  %v1237 = vsel %vm903, %v1231, -inf
  %v1238 = vsel %vm904, %v1234, -inf
  %v1239 = vmax.f32 %v1219, %v1235
  %v1240 = vmax.f32 %v1220, %v1236
  %v1241 = vmax.f32 %v1221, %v1237
  %v1242 = vmax.f32 %v1222, %v1238
  %1243 = vrot.lane.b32.xlu0 %v1239, 32
  %v1244 = vpop.permute.xlu0 %1243
  %1245 = vrot.lane.b32.xlu0 %v1240, 32
  %v1246 = vpop.permute.xlu0 %1245
  %1247 = vrot.lane.b32.xlu0 %v1241, 32
  %v1248 = vpop.permute.xlu0 %1247
  %1249 = vrot.lane.b32.xlu0 %v1242, 32
  %v1250 = vpop.permute.xlu0 %1249
  %v1251 = vsel %vm921, %v1248, %v1250
  %v1252 = vsel %vm921, %v1246, %v1248
  %v1253 = vsel %vm921, %v1244, %v1246
  %v1254 = vsel %vm921, %v1250, %v1244
  %v1255 = vsel %vm926, %v1254, -inf
  %v1256 = vsel %vm927, %v1253, -inf
  %v1257 = vsel %vm928, %v1252, -inf
  %v1258 = vsel %vm929, %v1251, -inf
  %v1259 = vmax.f32 %v1239, %v1255
  %v1260 = vmax.f32 %v1240, %v1256
  %v1261 = vmax.f32 %v1241, %v1257
  %v1262 = vmax.f32 %v1242, %v1258
  %1263 = vrot.lane.b32.xlu0 %v1239, 16
  %v1264 = vpop.permute.xlu0 %1263
  %1265 = vrot.lane.b32.xlu0 %v1240, 16
  %v1266 = vpop.permute.xlu0 %1265
  %1267 = vrot.lane.b32.xlu0 %v1241, 16
  %v1268 = vpop.permute.xlu0 %1267
  %1269 = vrot.lane.b32.xlu0 %v1242, 16
  %v1270 = vpop.permute.xlu0 %1269
  %v1271 = vsel %vm295, %v1268, %v1270
  %v1272 = vsel %vm295, %v1266, %v1268
  %v1273 = vsel %vm295, %v1264, %v1266
  %v1274 = vsel %vm295, %v1270, %v1264
  %v1275 = vsel %vm300, %v1274, -inf
  %v1276 = vsel %vm301, %v1273, -inf
  %v1277 = vsel %vm302, %v1272, -inf
  %v1278 = vsel %vm303, %v1271, -inf
  %v1279 = vmax.f32 %v1259, %v1275
  %v1280 = vmax.f32 %v1260, %v1276
  %v1281 = vmax.f32 %v1261, %v1277
  %v1282 = vmax.f32 %v1262, %v1278
  %1283 = vrot.lane.b32.xlu0 %v1239, 112
  %v1284 = vpop.permute.xlu0 %1283
  %1285 = vrot.lane.b32.xlu0 %v1240, 112
  %v1286 = vpop.permute.xlu0 %1285
  %1287 = vrot.lane.b32.xlu0 %v1241, 112
  %v1288 = vpop.permute.xlu0 %1287
  %1289 = vrot.lane.b32.xlu0 %v1242, 112
  %v1290 = vpop.permute.xlu0 %1289
  %v1291 = vsel %vm428, %v1288, %v1290
  %v1292 = vsel %vm428, %v1286, %v1288
  %v1293 = vsel %vm428, %v1284, %v1286
  %v1294 = vsel %vm428, %v1290, %v1284
  %v1295 = vsel %vm433, %v1293, -inf
  %v1296 = vsel %vm434, %v1292, -inf
  %v1297 = vsel %vm435, %v1291, -inf
  %v1298 = vsel %vm436, %v1294, -inf
  %v1299 = vmax.f32 %v1279, %v1295
  %v1300 = vmax.f32 %v1280, %v1296
  %v1301 = vmax.f32 %v1281, %v1297
  %v1302 = vmax.f32 %v1282, %v1298
  %1303 = vrot.lane.b32.xlu0 %v1239, 96
  %v1304 = vpop.permute.xlu0 %1303
  %1305 = vrot.lane.b32.xlu0 %v1240, 96
  %v1306 = vpop.permute.xlu0 %1305
  %1307 = vrot.lane.b32.xlu0 %v1241, 96
  %v1308 = vpop.permute.xlu0 %1307
  %1309 = vrot.lane.b32.xlu0 %v1242, 96
  %v1310 = vpop.permute.xlu0 %1309
  %v1311 = vsel %vm986, %v1308, %v1310
  %v1312 = vsel %vm986, %v1306, %v1308
  %v1313 = vsel %vm986, %v1304, %v1306
  %v1314 = vsel %vm986, %v1310, %v1304
  %v1315 = vsel %vm991, %v1313, -inf
  %v1316 = vsel %vm992, %v1312, -inf
  %v1317 = vsel %vm993, %v1311, -inf
  %v1318 = vsel %vm994, %v1314, -inf
  %v1319 = vmax.f32 %v1299, %v1315
  %v1320 = vmax.f32 %v1300, %v1316
  %v1321 = vmax.f32 %v1301, %v1317
  %v1322 = vmax.f32 %v1302, %v1318
  %v1323 = vld [vmem:[%s1 + $0x20] sm:$0xf]
  %v1324 = vpack.c.bf16 %v819, %v819
  %v1325 = vpack.c.bf16 %v820, %v820
  %v1326 = vpack.c.bf16 %v821, %v821
  %v1327 = vpack.c.bf16 %v822, %v822
  %v1328 = vld [vmem:[%s1 + $0x28] sm:$0xf]
  %v1329 = vpack.c.bf16 %v999, %v999
  %v1330 = vpack.c.bf16 %v1000, %v1000
  %v1331 = vpack.c.bf16 %v1001, %v1001
  %v1332 = vpack.c.bf16 %v1002, %v1002
  %v1334 = vsel %vm131, %v1328, 0
  %v1337 = vsel %vm135, %v1329, 0
  %v1340 = vsel %vm135, %v1330, 0
  %v1343 = vsel %vm135, %v1331, 0
  %v1346 = vsel %vm135, %v1332, 0
  %1348 = vmatprep.subr.bf16.mxu0 %v1340
  %1349 = vmatpush1.bf16.msra.mxu0 %v1337
  %1350 = vmatprep.subr.bf16.mxu0 0
  %1351 = vmatpush1.bf16.msra.mxu0 0
  %1352 = vmatprep.subr.bf16.mxu0 0
  %1353 = vmatpush1.bf16.msra.mxu0 0
  %1354 = vmatprep.subr.bf16.mxu0 0
  %1355 = vmatpush1.bf16.msra.mxu0 0
  %1356 = vmatprep.subr.bf16.mxu0 0
  %1357 = vmatpush1.bf16.msra.mxu0 0
  %1358 = vmatprep.subr.bf16.mxu0 0
  %1359 = vmatpush1.bf16.msra.mxu0 0
  %1360 = vmatprep.subr.bf16.mxu0 0
  %1361 = vmatpush1.bf16.msra.mxu0 0
  %1362 = vmatprep.subr.bf16.mxu0 0
  %1363 = vmatpush1.bf16.msra.mxu0 0
  %1364 = vmatprep.subr.bf16.mxu0 0
  %1365 = vmatpush1.bf16.msra.mxu0 0
  %1366 = vmatprep.subr.bf16.mxu0 0
  %1367 = vmatpush1.bf16.msra.mxu0 0
  %1368 = vmatprep.subr.bf16.mxu0 0
  %1369 = vmatpush1.bf16.msra.mxu0 0
  %1370 = vmatprep.subr.bf16.mxu0 0
  %1371 = vmatpush1.bf16.msra.mxu0 0
  %1372 = vmatprep.subr.bf16.mxu0 0
  %1373 = vmatpush1.bf16.msra.mxu0 0
  %1374 = vmatprep.subr.bf16.mxu0 0
  %1375 = vmatpush1.bf16.msra.mxu0 0
  %1376 = vmatprep.subr.bf16.mxu0 0
  %1377 = vmatpush1.bf16.msra.mxu0 0
  %1378 = vmatprep.subr.bf16.mxu0 0
  %1379 = vmatpush1.bf16.msra.mxu0 0
  %1380 = vmatprep.mubr.bf16.mxu0 0
  %1381 = vmatmul.mubr.bf16.gmra.mrb[0].mxu0 %v1334
  %v1382 = vpop.f32.mrb[0].mxu0
  %v1383 = vadd.f32 0.0, %v1382
  %v1384 = vpop.f32.mrb[0].mxu0
  %v1385 = vadd.f32 0.0, %v1384
  %v1386 = vpop.f32.mrb[0].mxu0
  %v1387 = vpop.f32.mrb[0].mxu0
  %1388 = vdwg.mxu0
  %1389 = vmatprep.subr.bf16.mxu0 %v1346
  %1390 = vmatpush1.bf16.msra.mxu0 %v1343
  %1391 = vmatprep.subr.bf16.mxu0 0
  %1392 = vmatpush1.bf16.msra.mxu0 0
  %1393 = vmatprep.subr.bf16.mxu0 0
  %1394 = vmatpush1.bf16.msra.mxu0 0
  %1395 = vmatprep.subr.bf16.mxu0 0
  %1396 = vmatpush1.bf16.msra.mxu0 0
  %1397 = vmatprep.subr.bf16.mxu0 0
  %1398 = vmatpush1.bf16.msra.mxu0 0
  %1399 = vmatprep.subr.bf16.mxu0 0
  %1400 = vmatpush1.bf16.msra.mxu0 0
  %1401 = vmatprep.subr.bf16.mxu0 0
  %1402 = vmatpush1.bf16.msra.mxu0 0
  %1403 = vmatprep.subr.bf16.mxu0 0
  %1404 = vmatpush1.bf16.msra.mxu0 0
  %1405 = vmatprep.subr.bf16.mxu0 0
  %1406 = vmatpush1.bf16.msra.mxu0 0
  %1407 = vmatprep.subr.bf16.mxu0 0
  %1408 = vmatpush1.bf16.msra.mxu0 0
  %1409 = vmatprep.subr.bf16.mxu0 0
  %1410 = vmatpush1.bf16.msra.mxu0 0
  %1411 = vmatprep.subr.bf16.mxu0 0
  %1412 = vmatpush1.bf16.msra.mxu0 0
  %1413 = vmatprep.subr.bf16.mxu0 0
  %1414 = vmatpush1.bf16.msra.mxu0 0
  %1415 = vmatprep.subr.bf16.mxu0 0
  %1416 = vmatpush1.bf16.msra.mxu0 0
  %1417 = vmatprep.subr.bf16.mxu0 0
  %1418 = vmatpush1.bf16.msra.mxu0 0
  %1419 = vmatprep.subr.bf16.mxu0 0
  %1420 = vmatpush1.bf16.msra.mxu0 0
  %1421 = vmatprep.mubr.bf16.mxu0 0
  %1422 = vmatmul.mubr.bf16.gmra.mrb[0].mxu0 %v1334
  %v1423 = vpop.f32.mrb[0].mxu0
  %v1424 = vadd.f32 0.0, %v1423
  %v1425 = vpop.f32.mrb[0].mxu0
  %v1426 = vadd.f32 0.0, %v1425
  %v1427 = vpop.f32.mrb[0].mxu0
  %v1428 = vpop.f32.mrb[0].mxu0
  %1429 = vdwg.mxu0
  %v1431 = vsel %vm131, %v1323, 0
  %v1434 = vsel %vm135, %v1324, 0
  %v1437 = vsel %vm135, %v1325, 0
  %v1440 = vsel %vm135, %v1326, 0
  %v1443 = vsel %vm135, %v1327, 0
  %1445 = vmatprep.subr.bf16.mxu0 %v1437
  %1446 = vmatpush1.bf16.msra.mxu0 %v1434
  %1447 = vmatprep.subr.bf16.mxu0 0
  %1448 = vmatpush1.bf16.msra.mxu0 0
  %1449 = vmatprep.subr.bf16.mxu0 0
  %1450 = vmatpush1.bf16.msra.mxu0 0
  %1451 = vmatprep.subr.bf16.mxu0 0
  %1452 = vmatpush1.bf16.msra.mxu0 0
  %1453 = vmatprep.subr.bf16.mxu0 0
  %1454 = vmatpush1.bf16.msra.mxu0 0
  %1455 = vmatprep.subr.bf16.mxu0 0
  %1456 = vmatpush1.bf16.msra.mxu0 0
  %1457 = vmatprep.subr.bf16.mxu0 0
  %1458 = vmatpush1.bf16.msra.mxu0 0
  %1459 = vmatprep.subr.bf16.mxu0 0
  %1460 = vmatpush1.bf16.msra.mxu0 0
  %1461 = vmatprep.subr.bf16.mxu0 0
  %1462 = vmatpush1.bf16.msra.mxu0 0
  %1463 = vmatprep.subr.bf16.mxu0 0
  %1464 = vmatpush1.bf16.msra.mxu0 0
  %1465 = vmatprep.subr.bf16.mxu0 0
  %1466 = vmatpush1.bf16.msra.mxu0 0
  %1467 = vmatprep.subr.bf16.mxu0 0
  %1468 = vmatpush1.bf16.msra.mxu0 0
  %1469 = vmatprep.subr.bf16.mxu0 0
  %1470 = vmatpush1.bf16.msra.mxu0 0
  %1471 = vmatprep.subr.bf16.mxu0 0
  %1472 = vmatpush1.bf16.msra.mxu0 0
  %1473 = vmatprep.subr.bf16.mxu0 0
  %1474 = vmatpush1.bf16.msra.mxu0 0
  %1475 = vmatprep.subr.bf16.mxu0 0
  %1476 = vmatpush1.bf16.msra.mxu0 0
  %1477 = vmatprep.mubr.bf16.mxu0 0
  %1478 = vmatmul.mubr.bf16.gmra.mrb[0].mxu0 %v1431
  %v1479 = vpop.f32.mrb[0].mxu0
  %v1480 = vadd.f32 %v1383, %v1479
  %v1481 = vpop.f32.mrb[0].mxu0
  %v1482 = vadd.f32 %v1385, %v1481
  %v1483 = vpop.f32.mrb[0].mxu0
  %v1484 = vpop.f32.mrb[0].mxu0
  %1485 = vdwg.mxu0
  %1486 = vmatprep.subr.bf16.mxu0 %v1443
  %1487 = vmatpush1.bf16.msra.mxu0 %v1440
  %1488 = vmatprep.subr.bf16.mxu0 0
  %1489 = vmatpush1.bf16.msra.mxu0 0
  %1490 = vmatprep.subr.bf16.mxu0 0
  %1491 = vmatpush1.bf16.msra.mxu0 0
  %1492 = vmatprep.subr.bf16.mxu0 0
  %1493 = vmatpush1.bf16.msra.mxu0 0
  %1494 = vmatprep.subr.bf16.mxu0 0
  %1495 = vmatpush1.bf16.msra.mxu0 0
  %1496 = vmatprep.subr.bf16.mxu0 0
  %1497 = vmatpush1.bf16.msra.mxu0 0
  %1498 = vmatprep.subr.bf16.mxu0 0
  %1499 = vmatpush1.bf16.msra.mxu0 0
  %1500 = vmatprep.subr.bf16.mxu0 0
  %1501 = vmatpush1.bf16.msra.mxu0 0
  %1502 = vmatprep.subr.bf16.mxu0 0
  %1503 = vmatpush1.bf16.msra.mxu0 0
  %1504 = vmatprep.subr.bf16.mxu0 0
  %1505 = vmatpush1.bf16.msra.mxu0 0
  %1506 = vmatprep.subr.bf16.mxu0 0
  %1507 = vmatpush1.bf16.msra.mxu0 0
  %1508 = vmatprep.subr.bf16.mxu0 0
  %1509 = vmatpush1.bf16.msra.mxu0 0
  %1510 = vmatprep.subr.bf16.mxu0 0
  %1511 = vmatpush1.bf16.msra.mxu0 0
  %1512 = vmatprep.subr.bf16.mxu0 0
  %1513 = vmatpush1.bf16.msra.mxu0 0
  %1514 = vmatprep.subr.bf16.mxu0 0
  %1515 = vmatpush1.bf16.msra.mxu0 0
  %1516 = vmatprep.subr.bf16.mxu0 0
  %1517 = vmatpush1.bf16.msra.mxu0 0
  %1518 = vmatprep.mubr.bf16.mxu0 0
  %1519 = vmatmul.mubr.bf16.gmra.mrb[0].mxu0 %v1431
  %v1520 = vpop.f32.mrb[0].mxu0
  %v1521 = vadd.f32 %v1424, %v1520
  %v1522 = vpop.f32.mrb[0].mxu0
  %v1523 = vadd.f32 %v1426, %v1522
  %v1524 = vpop.f32.mrb[0].mxu0
  %v1525 = vpop.f32.mrb[0].mxu0
  %1526 = vdwg.mxu0
  %v1527 = vld [vmem:[%s1 + $0x30] sm:$0xf]
  %v1528 = vpack.c.bf16 %v1159, %v1159
  %v1529 = vpack.c.bf16 %v1160, %v1160
  %v1530 = vpack.c.bf16 %v1161, %v1161
  %v1531 = vpack.c.bf16 %v1162, %v1162
  %v1533 = vsel %vm131, %v1527, 0
  %v1536 = vsel %vm135, %v1528, 0
  %v1539 = vsel %vm135, %v1529, 0
  %v1542 = vsel %vm135, %v1530, 0
  %v1545 = vsel %vm135, %v1531, 0
  %1547 = vmatprep.subr.bf16.mxu0 %v1539
  %1548 = vmatpush1.bf16.msra.mxu0 %v1536
  %1549 = vmatprep.subr.bf16.mxu0 0
  %1550 = vmatpush1.bf16.msra.mxu0 0
  %1551 = vmatprep.subr.bf16.mxu0 0
  %1552 = vmatpush1.bf16.msra.mxu0 0
  %1553 = vmatprep.subr.bf16.mxu0 0
  %1554 = vmatpush1.bf16.msra.mxu0 0
  %1555 = vmatprep.subr.bf16.mxu0 0
  %1556 = vmatpush1.bf16.msra.mxu0 0
  %1557 = vmatprep.subr.bf16.mxu0 0
  %1558 = vmatpush1.bf16.msra.mxu0 0
  %1559 = vmatprep.subr.bf16.mxu0 0
  %1560 = vmatpush1.bf16.msra.mxu0 0
  %1561 = vmatprep.subr.bf16.mxu0 0
  %1562 = vmatpush1.bf16.msra.mxu0 0
  %1563 = vmatprep.subr.bf16.mxu0 0
  %1564 = vmatpush1.bf16.msra.mxu0 0
  %1565 = vmatprep.subr.bf16.mxu0 0
  %1566 = vmatpush1.bf16.msra.mxu0 0
  %1567 = vmatprep.subr.bf16.mxu0 0
  %1568 = vmatpush1.bf16.msra.mxu0 0
  %1569 = vmatprep.subr.bf16.mxu0 0
  %1570 = vmatpush1.bf16.msra.mxu0 0
  %1571 = vmatprep.subr.bf16.mxu0 0
  %1572 = vmatpush1.bf16.msra.mxu0 0
  %1573 = vmatprep.subr.bf16.mxu0 0
  %1574 = vmatpush1.bf16.msra.mxu0 0
  %1575 = vmatprep.subr.bf16.mxu0 0
  %1576 = vmatpush1.bf16.msra.mxu0 0
  %1577 = vmatprep.subr.bf16.mxu0 0
  %1578 = vmatpush1.bf16.msra.mxu0 0
  %1579 = vmatprep.mubr.bf16.mxu0 0
  %1580 = vmatmul.mubr.bf16.gmra.mrb[0].mxu0 %v1533
  %v1581 = vpop.f32.mrb[0].mxu0
  %v1582 = vadd.f32 0.0, %v1581
  %v1583 = vpop.f32.mrb[0].mxu0
  %v1584 = vadd.f32 0.0, %v1583
  %v1585 = vpop.f32.mrb[0].mxu0
  %v1586 = vpop.f32.mrb[0].mxu0
  %1587 = vdwg.mxu0
  %1588 = vmatprep.subr.bf16.mxu0 %v1545
  %1589 = vmatpush1.bf16.msra.mxu0 %v1542
  %1590 = vmatprep.subr.bf16.mxu0 0
  %1591 = vmatpush1.bf16.msra.mxu0 0
  %1592 = vmatprep.subr.bf16.mxu0 0
  %1593 = vmatpush1.bf16.msra.mxu0 0
  %1594 = vmatprep.subr.bf16.mxu0 0
  %1595 = vmatpush1.bf16.msra.mxu0 0
  %1596 = vmatprep.subr.bf16.mxu0 0
  %1597 = vmatpush1.bf16.msra.mxu0 0
  %1598 = vmatprep.subr.bf16.mxu0 0
  %1599 = vmatpush1.bf16.msra.mxu0 0
  %1600 = vmatprep.subr.bf16.mxu0 0
  %1601 = vmatpush1.bf16.msra.mxu0 0
  %1602 = vmatprep.subr.bf16.mxu0 0
  %1603 = vmatpush1.bf16.msra.mxu0 0
  %1604 = vmatprep.subr.bf16.mxu0 0
  %1605 = vmatpush1.bf16.msra.mxu0 0
  %1606 = vmatprep.subr.bf16.mxu0 0
  %1607 = vmatpush1.bf16.msra.mxu0 0
  %1608 = vmatprep.subr.bf16.mxu0 0
  %1609 = vmatpush1.bf16.msra.mxu0 0
  %1610 = vmatprep.subr.bf16.mxu0 0
  %1611 = vmatpush1.bf16.msra.mxu0 0
  %1612 = vmatprep.subr.bf16.mxu0 0
  %1613 = vmatpush1.bf16.msra.mxu0 0
  %1614 = vmatprep.subr.bf16.mxu0 0
  %1615 = vmatpush1.bf16.msra.mxu0 0
  %1616 = vmatprep.subr.bf16.mxu0 0
  %1617 = vmatpush1.bf16.msra.mxu0 0
  %1618 = vmatprep.subr.bf16.mxu0 0
  %1619 = vmatpush1.bf16.msra.mxu0 0
  %1620 = vmatprep.mubr.bf16.mxu0 0
  %1621 = vmatmul.mubr.bf16.gmra.mrb[0].mxu0 %v1533
  %v1622 = vpop.f32.mrb[0].mxu0
  %v1623 = vadd.f32 0.0, %v1622
  %v1624 = vpop.f32.mrb[0].mxu0
  %v1625 = vadd.f32 0.0, %v1624
  %v1626 = vpop.f32.mrb[0].mxu0
  %v1627 = vpop.f32.mrb[0].mxu0
  %1628 = vdwg.mxu0
  %v1629 = vadd.f32 %v1480, %v1582
  %v1630 = vadd.f32 %v1482, %v1584
  %v1631 = vadd.f32 %v1521, %v1623
  %v1632 = vadd.f32 %v1523, %v1625
  %v1633 = vld [vmem:[%s1 + $0x38] sm:$0xf]
  %v1634 = vpack.c.bf16 %v1319, %v1319
  %v1635 = vpack.c.bf16 %v1320, %v1320
  %v1636 = vpack.c.bf16 %v1321, %v1321
  %v1637 = vpack.c.bf16 %v1322, %v1322
  %v1639 = vsel %vm131, %v1633, 0
  %v1642 = vsel %vm135, %v1634, 0
  %v1645 = vsel %vm135, %v1635, 0
  %v1648 = vsel %vm135, %v1636, 0
  %v1651 = vsel %vm135, %v1637, 0
  %1653 = vmatprep.subr.bf16.mxu0 %v1645
  %1654 = vmatpush1.bf16.msra.mxu0 %v1642
  %1655 = vmatprep.subr.bf16.mxu0 0
  %1656 = vmatpush1.bf16.msra.mxu0 0
  %1657 = vmatprep.subr.bf16.mxu0 0
  %1658 = vmatpush1.bf16.msra.mxu0 0
  %1659 = vmatprep.subr.bf16.mxu0 0
  %1660 = vmatpush1.bf16.msra.mxu0 0
  %1661 = vmatprep.subr.bf16.mxu0 0
  %1662 = vmatpush1.bf16.msra.mxu0 0
  %1663 = vmatprep.subr.bf16.mxu0 0
  %1664 = vmatpush1.bf16.msra.mxu0 0
  %1665 = vmatprep.subr.bf16.mxu0 0
  %1666 = vmatpush1.bf16.msra.mxu0 0
  %1667 = vmatprep.subr.bf16.mxu0 0
  %1668 = vmatpush1.bf16.msra.mxu0 0
  %1669 = vmatprep.subr.bf16.mxu0 0
  %1670 = vmatpush1.bf16.msra.mxu0 0
  %1671 = vmatprep.subr.bf16.mxu0 0
  %1672 = vmatpush1.bf16.msra.mxu0 0
  %1673 = vmatprep.subr.bf16.mxu0 0
  %1674 = vmatpush1.bf16.msra.mxu0 0
  %1675 = vmatprep.subr.bf16.mxu0 0
  %1676 = vmatpush1.bf16.msra.mxu0 0
  %1677 = vmatprep.subr.bf16.mxu0 0
  %1678 = vmatpush1.bf16.msra.mxu0 0
  %1679 = vmatprep.subr.bf16.mxu0 0
  %1680 = vmatpush1.bf16.msra.mxu0 0
  %1681 = vmatprep.subr.bf16.mxu0 0
  %1682 = vmatpush1.bf16.msra.mxu0 0
  %1683 = vmatprep.subr.bf16.mxu0 0
  %1684 = vmatpush1.bf16.msra.mxu0 0
  %1685 = vmatprep.mubr.bf16.mxu0 0
  %1686 = vmatmul.mubr.bf16.gmra.mrb[0].mxu0 %v1639
  %v1687 = vpop.f32.mrb[0].mxu0
  %v1688 = vadd.f32 0.0, %v1687
  %v1689 = vpop.f32.mrb[0].mxu0
  %v1690 = vadd.f32 0.0, %v1689
  %v1691 = vpop.f32.mrb[0].mxu0
  %v1692 = vpop.f32.mrb[0].mxu0
  %1693 = vdwg.mxu0
  %1694 = vmatprep.subr.bf16.mxu0 %v1651
  %1695 = vmatpush1.bf16.msra.mxu0 %v1648
  %1696 = vmatprep.subr.bf16.mxu0 0
  %1697 = vmatpush1.bf16.msra.mxu0 0
  %1698 = vmatprep.subr.bf16.mxu0 0
  %1699 = vmatpush1.bf16.msra.mxu0 0
  %1700 = vmatprep.subr.bf16.mxu0 0
  %1701 = vmatpush1.bf16.msra.mxu0 0
  %1702 = vmatprep.subr.bf16.mxu0 0
  %1703 = vmatpush1.bf16.msra.mxu0 0
  %1704 = vmatprep.subr.bf16.mxu0 0
  %1705 = vmatpush1.bf16.msra.mxu0 0
  %1706 = vmatprep.subr.bf16.mxu0 0
  %1707 = vmatpush1.bf16.msra.mxu0 0
  %1708 = vmatprep.subr.bf16.mxu0 0
  %1709 = vmatpush1.bf16.msra.mxu0 0
  %1710 = vmatprep.subr.bf16.mxu0 0
  %1711 = vmatpush1.bf16.msra.mxu0 0
  %1712 = vmatprep.subr.bf16.mxu0 0
  %1713 = vmatpush1.bf16.msra.mxu0 0
  %1714 = vmatprep.subr.bf16.mxu0 0
  %1715 = vmatpush1.bf16.msra.mxu0 0
  %1716 = vmatprep.subr.bf16.mxu0 0
  %1717 = vmatpush1.bf16.msra.mxu0 0
  %1718 = vmatprep.subr.bf16.mxu0 0
  %1719 = vmatpush1.bf16.msra.mxu0 0
  %1720 = vmatprep.subr.bf16.mxu0 0
  %1721 = vmatpush1.bf16.msra.mxu0 0
  %1722 = vmatprep.subr.bf16.mxu0 0
  %1723 = vmatpush1.bf16.msra.mxu0 0
  %1724 = vmatprep.subr.bf16.mxu0 0
  %1725 = vmatpush1.bf16.msra.mxu0 0
  %1726 = vmatprep.mubr.bf16.mxu0 0
  %1727 = vmatmul.mubr.bf16.gmra.mrb[0].mxu0 %v1639
  %v1728 = vpop.f32.mrb[0].mxu0
  %v1729 = vadd.f32 0.0, %v1728
  %v1730 = vpop.f32.mrb[0].mxu0
  %v1731 = vadd.f32 0.0, %v1730
  %v1732 = vpop.f32.mrb[0].mxu0
  %v1733 = vpop.f32.mrb[0].mxu0
  %1734 = vdwg.mxu0
  %v1735 = vadd.f32 %v1629, %v1688
  %v1736 = vadd.f32 %v1630, %v1690
  %v1737 = vadd.f32 %v1631, %v1729
  %v1738 = vadd.f32 %v1632, %v1731
  %v1739 = vld [vmem:[%s2 + $0x20] sm:$0xff]
  %1741 = vset.pattern.permute.xlu0 0
  %1742 = vperm.xlu0 %1741, %v1739
  %v1743 = vpop.permute.xlu0 %1742
  %v1745 = vadd.f32 %v1735, %v1743
  %v1746 = vadd.f32 %v1736, %v1743
  %v1747 = vadd.f32 %v1737, %v1743
  %v1748 = vadd.f32 %v1738, %v1743
  %v1749 = vsub.f32 0.0, %v1745
  %v1750 = vsub.f32 0.0, %v1746
  %v1751 = vsub.f32 0.0, %v1747
  %v1752 = vsub.f32 0.0, %v1748
  %v1753 = vmul.f32 %v1749, 1.442695
  %v1754 = vpow.pop %v1753
  %v1755 = vmul.f32 %v1750, 1.442695
  %v1756 = vpow.pop %v1755
  %v1757 = vmul.f32 %v1751, 1.442695
  %v1758 = vpow.pop %v1757
  %v1759 = vmul.f32 %v1752, 1.442695
  %v1760 = vpow.pop %v1759
  %v1761 = vadd.f32 %v1754, 1.0
  %v1762 = vadd.f32 %v1756, 1.0
  %v1763 = vadd.f32 %v1758, 1.0
  %v1764 = vadd.f32 %v1760, 1.0
  %v1765 = vrcp.pop %v1761
  %v1766 = vrcp.pop %v1762
  %v1767 = vrcp.pop %v1763
  %v1768 = vrcp.pop %v1764
  %v1769 = vmul.f32 %v1745, %v1765
  %v1770 = vmul.f32 %v1746, %v1766
  %v1771 = vmul.f32 %v1747, %v1767
  %v1772 = vmul.f32 %v1748, %v1768
  %1773 = vrot.lane.b32.xlu0 %v1769, 17
  %v1774 = vpop.permute.xlu0 %1773
  %1775 = vrot.lane.b32.xlu0 %v1770, 17
  %v1776 = vpop.permute.xlu0 %1775
  %1777 = vrot.lane.b32.xlu0 %v1771, 17
  %v1778 = vpop.permute.xlu0 %1777
  %1779 = vrot.lane.b32.xlu0 %v1772, 17
  %v1780 = vpop.permute.xlu0 %1779
  %v1781 = vsel %vm262, %v1778, %v1780
  %v1782 = vsel %vm262, %v1776, %v1778
  %v1783 = vsel %vm262, %v1774, %v1776
  %v1784 = vsel %vm262, %v1780, %v1774
  %v1785 = vsel %vm275, %v1784, 0.0
  %v1786 = vsel %vm276, %v1783, 0.0
  %v1787 = vsel %vm277, %v1782, 0.0
  %v1788 = vsel %vm278, %v1781, 0.0
  %1789 = vst [vmem:[#allocation2] sm:$0xff] %v1785
  %1790 = vst [vmem:[#allocation2 + $0x8] sm:$0xff] %v1786
  %1791 = vst [vmem:[#allocation2 + $0x10] sm:$0xff] %v1787
  %1792 = vst [vmem:[#allocation2 + $0x18] sm:$0xff] %v1788
  %1793 = vrot.lane.b32.xlu0 %v1769, 16
  %v1794 = vpop.permute.xlu0 %1793
  %1795 = vrot.lane.b32.xlu0 %v1770, 16
  %v1796 = vpop.permute.xlu0 %1795
  %1797 = vrot.lane.b32.xlu0 %v1771, 16
  %v1798 = vpop.permute.xlu0 %1797
  %1799 = vrot.lane.b32.xlu0 %v1772, 16
  %v1800 = vpop.permute.xlu0 %1799
  %v1801 = vsel %vm295, %v1798, %v1800
  %v1802 = vsel %vm295, %v1796, %v1798
  %v1803 = vsel %vm295, %v1794, %v1796
  %v1804 = vsel %vm295, %v1800, %v1794
  %v1805 = vsel %vm300, %v1804, 0.0
  %v1806 = vsel %vm301, %v1803, 0.0
  %v1807 = vsel %vm302, %v1802, 0.0
  %v1808 = vsel %vm303, %v1801, 0.0
  %1809 = vst [vmem:[#allocation2 + $0x20] sm:$0xff] %v1805
  %1810 = vst [vmem:[#allocation2 + $0x28] sm:$0xff] %v1806
  %1811 = vst [vmem:[#allocation2 + $0x30] sm:$0xff] %v1807
  %1812 = vst [vmem:[#allocation2 + $0x38] sm:$0xff] %v1808
  %1813 = vrot.lane.b32.xlu0 %v1769, 15
  %v1814 = vpop.permute.xlu0 %1813
  %1815 = vrot.lane.b32.xlu0 %v1770, 15
  %v1816 = vpop.permute.xlu0 %1815
  %1817 = vrot.lane.b32.xlu0 %v1771, 15
  %v1818 = vpop.permute.xlu0 %1817
  %1819 = vrot.lane.b32.xlu0 %v1772, 15
  %v1820 = vpop.permute.xlu0 %1819
  %v1821 = vsel %vm320, %v1818, %v1820
  %v1822 = vsel %vm320, %v1816, %v1818
  %v1823 = vsel %vm320, %v1814, %v1816
  %v1824 = vsel %vm320, %v1820, %v1814
  %v1825 = vsel %vm333, %v1824, 0.0
  %v1826 = vsel %vm334, %v1823, 0.0
  %v1827 = vsel %vm335, %v1822, 0.0
  %v1828 = vsel %vm336, %v1821, 0.0
  %1829 = vst [vmem:[#allocation2 + $0x40] sm:$0xff] %v1825
  %1830 = vst [vmem:[#allocation2 + $0x48] sm:$0xff] %v1826
  %1831 = vst [vmem:[#allocation2 + $0x50] sm:$0xff] %v1827
  %1832 = vst [vmem:[#allocation2 + $0x58] sm:$0xff] %v1828
  %1833 = vrot.lane.b32.xlu0 %v1769, 1
  %v1834 = vpop.permute.xlu0 %1833
  %1835 = vrot.lane.b32.xlu0 %v1770, 1
  %v1836 = vpop.permute.xlu0 %1835
  %1837 = vrot.lane.b32.xlu0 %v1771, 1
  %v1838 = vpop.permute.xlu0 %1837
  %1839 = vrot.lane.b32.xlu0 %v1772, 1
  %v1840 = vpop.permute.xlu0 %1839
  %v1841 = vsel %vm353, %v1838, %v1840
  %v1842 = vsel %vm353, %v1836, %v1838
  %v1843 = vsel %vm353, %v1834, %v1836
  %v1844 = vsel %vm353, %v1840, %v1834
  %v1845 = vsel %vm267, %v1844, 0.0
  %v1846 = vsel %vm268, %v1843, 0.0
  %v1847 = vsel %vm269, %v1842, 0.0
  %v1848 = vsel %vm270, %v1841, 0.0
  %1849 = vst [vmem:[#allocation2 + $0x60] sm:$0xff] %v1845
  %1850 = vst [vmem:[#allocation2 + $0x68] sm:$0xff] %v1846
  %1851 = vst [vmem:[#allocation2 + $0x70] sm:$0xff] %v1847
  %1852 = vst [vmem:[#allocation2 + $0x78] sm:$0xff] %v1848
  %1853 = vst [vmem:[#allocation2 + $0x80] sm:$0xff] %v1769
  %1854 = vst [vmem:[#allocation2 + $0x88] sm:$0xff] %v1770
  %1855 = vst [vmem:[#allocation2 + $0x90] sm:$0xff] %v1771
  %1856 = vst [vmem:[#allocation2 + $0x98] sm:$0xff] %v1772
  %1857 = vrot.lane.b32.xlu0 %v1769, 127
  %v1858 = vpop.permute.xlu0 %1857
  %1859 = vrot.lane.b32.xlu0 %v1770, 127
  %v1860 = vpop.permute.xlu0 %1859
  %1861 = vrot.lane.b32.xlu0 %v1771, 127
  %v1862 = vpop.permute.xlu0 %1861
  %1863 = vrot.lane.b32.xlu0 %v1772, 127
  %v1864 = vpop.permute.xlu0 %1863
  %v1865 = vsel %vm378, %v1862, %v1864
  %v1866 = vsel %vm378, %v1860, %v1862
  %v1867 = vsel %vm378, %v1858, %v1860
  %v1868 = vsel %vm378, %v1864, %v1858
  %v1869 = vsel %vm325, %v1867, 0.0
  %v1870 = vsel %vm326, %v1866, 0.0
  %v1871 = vsel %vm327, %v1865, 0.0
  %v1872 = vsel %vm328, %v1868, 0.0
  %1873 = vst [vmem:[#allocation2 + $0xa0] sm:$0xff] %v1869
  %1874 = vst [vmem:[#allocation2 + $0xa8] sm:$0xff] %v1870
  %1875 = vst [vmem:[#allocation2 + $0xb0] sm:$0xff] %v1871
  %1876 = vst [vmem:[#allocation2 + $0xb8] sm:$0xff] %v1872
  %1877 = vrot.lane.b32.xlu0 %v1769, 113
  %v1878 = vpop.permute.xlu0 %1877
  %1879 = vrot.lane.b32.xlu0 %v1770, 113
  %v1880 = vpop.permute.xlu0 %1879
  %1881 = vrot.lane.b32.xlu0 %v1771, 113
  %v1882 = vpop.permute.xlu0 %1881
  %1883 = vrot.lane.b32.xlu0 %v1772, 113
  %v1884 = vpop.permute.xlu0 %1883
  %v1885 = vsel %vm399, %v1882, %v1884
  %v1886 = vsel %vm399, %v1880, %v1882
  %v1887 = vsel %vm399, %v1878, %v1880
  %v1888 = vsel %vm399, %v1884, %v1878
  %v1889 = vsel %vm408, %v1887, 0.0
  %v1890 = vsel %vm409, %v1886, 0.0
  %v1891 = vsel %vm410, %v1885, 0.0
  %v1892 = vsel %vm411, %v1888, 0.0
  %1893 = vst [vmem:[#allocation2 + $0xc0] sm:$0xff] %v1889
  %1894 = vst [vmem:[#allocation2 + $0xc8] sm:$0xff] %v1890
  %1895 = vst [vmem:[#allocation2 + $0xd0] sm:$0xff] %v1891
  %1896 = vst [vmem:[#allocation2 + $0xd8] sm:$0xff] %v1892
  %1897 = vrot.lane.b32.xlu0 %v1769, 112
  %v1898 = vpop.permute.xlu0 %1897
  %1899 = vrot.lane.b32.xlu0 %v1770, 112
  %v1900 = vpop.permute.xlu0 %1899
  %1901 = vrot.lane.b32.xlu0 %v1771, 112
  %v1902 = vpop.permute.xlu0 %1901
  %1903 = vrot.lane.b32.xlu0 %v1772, 112
  %v1904 = vpop.permute.xlu0 %1903
  %v1905 = vsel %vm428, %v1902, %v1904
  %v1906 = vsel %vm428, %v1900, %v1902
  %v1907 = vsel %vm428, %v1898, %v1900
  %v1908 = vsel %vm428, %v1904, %v1898
  %v1909 = vsel %vm433, %v1907, 0.0
  %v1910 = vsel %vm434, %v1906, 0.0
  %v1911 = vsel %vm435, %v1905, 0.0
  %v1912 = vsel %vm436, %v1908, 0.0
  %1913 = vst [vmem:[#allocation2 + $0xe0] sm:$0xff] %v1909
  %1914 = vst [vmem:[#allocation2 + $0xe8] sm:$0xff] %v1910
  %1915 = vst [vmem:[#allocation2 + $0xf0] sm:$0xff] %v1911
  %1916 = vst [vmem:[#allocation2 + $0xf8] sm:$0xff] %v1912
  %1917 = vrot.lane.b32.xlu0 %v1769, 111
  %v1918 = vpop.permute.xlu0 %1917
  %1919 = vrot.lane.b32.xlu0 %v1770, 111
  %v1920 = vpop.permute.xlu0 %1919
  %1921 = vrot.lane.b32.xlu0 %v1771, 111
  %v1922 = vpop.permute.xlu0 %1921
  %1923 = vrot.lane.b32.xlu0 %v1772, 111
  %v1924 = vpop.permute.xlu0 %1923
  %v1925 = vsel %vm453, %v1922, %v1924
  %v1926 = vsel %vm453, %v1920, %v1922
  %v1927 = vsel %vm453, %v1918, %v1920
  %v1928 = vsel %vm453, %v1924, %v1918
  %v1929 = vsel %vm462, %v1927, 0.0
  %v1930 = vsel %vm463, %v1926, 0.0
  %v1931 = vsel %vm464, %v1925, 0.0
  %v1932 = vsel %vm465, %v1928, 0.0
  %1933 = vst [vmem:[#allocation2 + $0x100] sm:$0xff] %v1929
  %1934 = vst [vmem:[#allocation2 + $0x108] sm:$0xff] %v1930
  %1935 = vst [vmem:[#allocation2 + $0x110] sm:$0xff] %v1931
  %1936 = vst [vmem:[#allocation2 + $0x118] sm:$0xff] %v1932
  %v1937 = vld [vmem:[%s1 + $0x40] sm:$0xf]
  %v1938 = vld [vmem:[#allocation2] sm:$0xff]
  %v1939 = vld [vmem:[#allocation2 + $0x8] sm:$0xff]
  %v1940 = vld [vmem:[#allocation2 + $0x10] sm:$0xff]
  %v1941 = vld [vmem:[#allocation2 + $0x18] sm:$0xff]
  %v1942 = vld [vmem:[#allocation2 + $0x20] sm:$0xff]
  %v1943 = vld [vmem:[#allocation2 + $0x28] sm:$0xff]
  %v1944 = vld [vmem:[#allocation2 + $0x30] sm:$0xff]
  %v1945 = vld [vmem:[#allocation2 + $0x38] sm:$0xff]
  %v1946 = vld [vmem:[#allocation2 + $0x40] sm:$0xff]
  %v1947 = vld [vmem:[#allocation2 + $0x48] sm:$0xff]
  %v1948 = vld [vmem:[#allocation2 + $0x50] sm:$0xff]
  %v1949 = vld [vmem:[#allocation2 + $0x58] sm:$0xff]
  %v1950 = vld [vmem:[#allocation2 + $0x60] sm:$0xff]
  %v1951 = vld [vmem:[#allocation2 + $0x68] sm:$0xff]
  %v1952 = vld [vmem:[#allocation2 + $0x70] sm:$0xff]
  %v1953 = vld [vmem:[#allocation2 + $0x78] sm:$0xff]
  %v1954 = vld [vmem:[#allocation2 + $0x80] sm:$0xff]
  %v1955 = vld [vmem:[#allocation2 + $0x88] sm:$0xff]
  %v1956 = vld [vmem:[#allocation2 + $0x90] sm:$0xff]
  %v1957 = vld [vmem:[#allocation2 + $0x98] sm:$0xff]
  %v1958 = vld [vmem:[#allocation2 + $0xa0] sm:$0xff]
  %v1959 = vld [vmem:[#allocation2 + $0xa8] sm:$0xff]
  %v1960 = vld [vmem:[#allocation2 + $0xb0] sm:$0xff]
  %v1961 = vld [vmem:[#allocation2 + $0xb8] sm:$0xff]
  %v1962 = vld [vmem:[#allocation2 + $0xc0] sm:$0xff]
  %v1963 = vld [vmem:[#allocation2 + $0xc8] sm:$0xff]
  %v1964 = vld [vmem:[#allocation2 + $0xd0] sm:$0xff]
  %v1965 = vld [vmem:[#allocation2 + $0xd8] sm:$0xff]
  %v1966 = vld [vmem:[#allocation2 + $0xe0] sm:$0xff]
  %v1967 = vld [vmem:[#allocation2 + $0xe8] sm:$0xff]
  %v1968 = vld [vmem:[#allocation2 + $0xf0] sm:$0xff]
  %v1969 = vld [vmem:[#allocation2 + $0xf8] sm:$0xff]
  %v1970 = vld [vmem:[#allocation2 + $0x100] sm:$0xff]
  %v1971 = vld [vmem:[#allocation2 + $0x108] sm:$0xff]
  %v1972 = vld [vmem:[#allocation2 + $0x110] sm:$0xff]
  %v1973 = vld [vmem:[#allocation2 + $0x118] sm:$0xff]
  %v1974 = vld [vmem:[%s2 + $0x28] sm:$0xff]
  %1976 = vset.pattern.permute.xlu0 0
  %1977 = vperm.xlu0 %1976, %v1974
  %v1978 = vpop.permute.xlu0 %1977
  %v1981 = vsel %vm517, %v1937, 0
  %1983 = vmatprep.subr.mxu0 %v1939
  %1984 = vmatpush1.msra.mxu0 %v1938
  %1985 = vmatprep.subr.mxu0 %v1943
  %1986 = vmatpush1.msra.mxu0 %v1942
  %1987 = vmatprep.subr.mxu0 %v1947
  %1988 = vmatpush1.msra.mxu0 %v1946
  %1989 = vmatprep.subr.mxu0 %v1951
  %1990 = vmatpush1.msra.mxu0 %v1950
  %1991 = vmatprep.subr.mxu0 %v1955
  %1992 = vmatpush1.msra.mxu0 %v1954
  %1993 = vmatprep.subr.mxu0 %v1959
  %1994 = vmatpush1.msra.mxu0 %v1958
  %1995 = vmatprep.subr.mxu0 %v1963
  %1996 = vmatpush1.msra.mxu0 %v1962
  %1997 = vmatprep.subr.mxu0 %v1967
  %1998 = vmatpush1.msra.mxu0 %v1966
  %1999 = vmatprep.subr.mxu0 %v1971
  %2000 = vmatpush1.msra.mxu0 %v1970
  %2001 = vmatprep.subr.mxu0 0.0
  %2002 = vmatpush1.msra.mxu0 0.0
  %2003 = vmatprep.subr.mxu0 0.0
  %2004 = vmatpush1.msra.mxu0 0.0
  %2005 = vmatprep.subr.mxu0 0.0
  %2006 = vmatpush1.msra.mxu0 0.0
  %2007 = vmatprep.subr.mxu0 0.0
  %2008 = vmatpush1.msra.mxu0 0.0
  %2009 = vmatprep.subr.mxu0 0.0
  %2010 = vmatpush1.msra.mxu0 0.0
  %2011 = vmatprep.subr.mxu0 0.0
  %2012 = vmatpush1.msra.mxu0 0.0
  %2013 = vmatprep.subr.mxu0 0.0
  %2014 = vmatpush1.msra.mxu0 0.0
  %2015 = vmatprep.subr.mxu0 0.0
  %2016 = vmatpush1.msra.mxu0 0.0
  %2017 = vmatprep.subr.mxu0 0.0
  %2018 = vmatpush1.msra.mxu0 0.0
  %2019 = vmatprep.subr.mxu0 0.0
  %2020 = vmatpush1.msra.mxu0 0.0
  %2021 = vmatprep.subr.mxu0 0.0
  %2022 = vmatpush1.msra.mxu0 0.0
  %2023 = vmatprep.subr.mxu0 0.0
  %2024 = vmatpush1.msra.mxu0 0.0
  %2025 = vmatprep.subr.mxu0 0.0
  %2026 = vmatpush1.msra.mxu0 0.0
  %2027 = vmatprep.subr.mxu0 0.0
  %2028 = vmatpush1.msra.mxu0 0.0
  %2029 = vmatprep.subr.mxu0 0.0
  %2030 = vmatpush1.msra.mxu0 0.0
  %2031 = vmatprep.subr.mxu0 0.0
  %2032 = vmatpush1.msra.mxu0 0.0
  %2033 = vmatprep.subr.mxu0 0.0
  %2034 = vmatpush1.msra.mxu0 0.0
  %2035 = vmatprep.subr.mxu0 0.0
  %2036 = vmatpush1.msra.mxu0 0.0
  %2037 = vmatprep.subr.mxu0 0.0
  %2038 = vmatpush1.msra.mxu0 0.0
  %2039 = vmatprep.subr.mxu0 0.0
  %2040 = vmatpush1.msra.mxu0 0.0
  %2041 = vmatprep.subr.mxu0 0.0
  %2042 = vmatpush1.msra.mxu0 0.0
  %2043 = vmatprep.subr.mxu0 0.0
  %2044 = vmatpush1.msra.mxu0 0.0
  %2045 = vmatprep.subr.mxu0 0.0
  %2046 = vmatpush1.msra.mxu0 0.0
  %2047 = vmatprep.mubr.bf16.mxu0 0
  %2048 = vmatmul.mubr.bf16.gmra.mrb[0].mxu0 %v1981
  %v2049 = vpop.f32.mrb[0].mxu0
  %v2050 = vadd.f32 %v1978, %v2049
  %v2051 = vpop.f32.mrb[0].mxu0
  %v2052 = vadd.f32 %v1978, %v2051
  %v2053 = vpop.f32.mrb[0].mxu0
  %v2054 = vpop.f32.mrb[0].mxu0
  %2055 = vdwg.mxu0
  %2056 = vmatprep.subr.mxu0 %v1941
  %2057 = vmatpush1.msra.mxu0 %v1940
  %2058 = vmatprep.subr.mxu0 %v1945
  %2059 = vmatpush1.msra.mxu0 %v1944
  %2060 = vmatprep.subr.mxu0 %v1949
  %2061 = vmatpush1.msra.mxu0 %v1948
  %2062 = vmatprep.subr.mxu0 %v1953
  %2063 = vmatpush1.msra.mxu0 %v1952
  %2064 = vmatprep.subr.mxu0 %v1957
  %2065 = vmatpush1.msra.mxu0 %v1956
  %2066 = vmatprep.subr.mxu0 %v1961
  %2067 = vmatpush1.msra.mxu0 %v1960
  %2068 = vmatprep.subr.mxu0 %v1965
  %2069 = vmatpush1.msra.mxu0 %v1964
  %2070 = vmatprep.subr.mxu0 %v1969
  %2071 = vmatpush1.msra.mxu0 %v1968
  %2072 = vmatprep.subr.mxu0 %v1973
  %2073 = vmatpush1.msra.mxu0 %v1972
  %2074 = vmatprep.subr.mxu0 0.0
  %2075 = vmatpush1.msra.mxu0 0.0
  %2076 = vmatprep.subr.mxu0 0.0
  %2077 = vmatpush1.msra.mxu0 0.0
  %2078 = vmatprep.subr.mxu0 0.0
  %2079 = vmatpush1.msra.mxu0 0.0
  %2080 = vmatprep.subr.mxu0 0.0
  %2081 = vmatpush1.msra.mxu0 0.0
  %2082 = vmatprep.subr.mxu0 0.0
  %2083 = vmatpush1.msra.mxu0 0.0
  %2084 = vmatprep.subr.mxu0 0.0
  %2085 = vmatpush1.msra.mxu0 0.0
  %2086 = vmatprep.subr.mxu0 0.0
  %2087 = vmatpush1.msra.mxu0 0.0
  %2088 = vmatprep.subr.mxu0 0.0
  %2089 = vmatpush1.msra.mxu0 0.0
  %2090 = vmatprep.subr.mxu0 0.0
  %2091 = vmatpush1.msra.mxu0 0.0
  %2092 = vmatprep.subr.mxu0 0.0
  %2093 = vmatpush1.msra.mxu0 0.0
  %2094 = vmatprep.subr.mxu0 0.0
  %2095 = vmatpush1.msra.mxu0 0.0
  %2096 = vmatprep.subr.mxu0 0.0
  %2097 = vmatpush1.msra.mxu0 0.0
  %2098 = vmatprep.subr.mxu0 0.0
  %2099 = vmatpush1.msra.mxu0 0.0
  %2100 = vmatprep.subr.mxu0 0.0
  %2101 = vmatpush1.msra.mxu0 0.0
  %2102 = vmatprep.subr.mxu0 0.0
  %2103 = vmatpush1.msra.mxu0 0.0
  %2104 = vmatprep.subr.mxu0 0.0
  %2105 = vmatpush1.msra.mxu0 0.0
  %2106 = vmatprep.subr.mxu0 0.0
  %2107 = vmatpush1.msra.mxu0 0.0
  %2108 = vmatprep.subr.mxu0 0.0
  %2109 = vmatpush1.msra.mxu0 0.0
  %2110 = vmatprep.subr.mxu0 0.0
  %2111 = vmatpush1.msra.mxu0 0.0
  %2112 = vmatprep.subr.mxu0 0.0
  %2113 = vmatpush1.msra.mxu0 0.0
  %2114 = vmatprep.subr.mxu0 0.0
  %2115 = vmatpush1.msra.mxu0 0.0
  %2116 = vmatprep.subr.mxu0 0.0
  %2117 = vmatpush1.msra.mxu0 0.0
  %2118 = vmatprep.subr.mxu0 0.0
  %2119 = vmatpush1.msra.mxu0 0.0
  %2120 = vmatprep.mubr.bf16.mxu0 0
  %2121 = vmatmul.mubr.bf16.gmra.mrb[0].mxu0 %v1981
  %v2122 = vpop.f32.mrb[0].mxu0
  %v2123 = vadd.f32 %v1978, %v2122
  %v2124 = vpop.f32.mrb[0].mxu0
  %v2125 = vadd.f32 %v1978, %v2124
  %v2126 = vpop.f32.mrb[0].mxu0
  %v2127 = vpop.f32.mrb[0].mxu0
  %2128 = vdwg.mxu0
  %v2129 = vsub.f32 0.0, %v2050
  %v2130 = vsub.f32 0.0, %v2052
  %v2131 = vsub.f32 0.0, %v2123
  %v2132 = vsub.f32 0.0, %v2125
  %v2133 = vmul.f32 %v2129, 1.442695
  %v2134 = vpow.pop %v2133
  %v2135 = vmul.f32 %v2130, 1.442695
  %v2136 = vpow.pop %v2135
  %v2137 = vmul.f32 %v2131, 1.442695
  %v2138 = vpow.pop %v2137
  %v2139 = vmul.f32 %v2132, 1.442695
  %v2140 = vpow.pop %v2139
  %v2141 = vadd.f32 %v2134, 1.0
  %v2142 = vadd.f32 %v2136, 1.0
  %v2143 = vadd.f32 %v2138, 1.0
  %v2144 = vadd.f32 %v2140, 1.0
  %v2145 = vrcp.pop %v2141
  %v2146 = vrcp.pop %v2142
  %v2147 = vrcp.pop %v2143
  %v2148 = vrcp.pop %v2144
  %v2149 = vmul.f32 %v2050, %v2145
  %v2150 = vmul.f32 %v2052, %v2146
  %v2151 = vmul.f32 %v2123, %v2147
  %v2152 = vmul.f32 %v2125, %v2148
  %v2153 = vld [vmem:[%s1 + $0x8] sm:$0xf]
  %v2154 = vld [vmem:[%s2 + $0x8] sm:$0xff]
  %2156 = vset.pattern.permute.xlu0 0
  %2157 = vperm.xlu0 %2156, %v2154
  %v2158 = vpop.permute.xlu0 %2157
  %v2161 = vsel %vm131, %v2153, 0
  %2163 = vmatprep.subr.bf16.mxu0 %v140
  %2164 = vmatpush1.bf16.msra.mxu0 %v137
  %2165 = vmatprep.subr.bf16.mxu0 0
  %2166 = vmatpush1.bf16.msra.mxu0 0
  %2167 = vmatprep.subr.bf16.mxu0 0
  %2168 = vmatpush1.bf16.msra.mxu0 0
  %2169 = vmatprep.subr.bf16.mxu0 0
  %2170 = vmatpush1.bf16.msra.mxu0 0
  %2171 = vmatprep.subr.bf16.mxu0 0
  %2172 = vmatpush1.bf16.msra.mxu0 0
  %2173 = vmatprep.subr.bf16.mxu0 0
  %2174 = vmatpush1.bf16.msra.mxu0 0
  %2175 = vmatprep.subr.bf16.mxu0 0
  %2176 = vmatpush1.bf16.msra.mxu0 0
  %2177 = vmatprep.subr.bf16.mxu0 0
  %2178 = vmatpush1.bf16.msra.mxu0 0
  %2179 = vmatprep.subr.bf16.mxu0 0
  %2180 = vmatpush1.bf16.msra.mxu0 0
  %2181 = vmatprep.subr.bf16.mxu0 0
  %2182 = vmatpush1.bf16.msra.mxu0 0
  %2183 = vmatprep.subr.bf16.mxu0 0
  %2184 = vmatpush1.bf16.msra.mxu0 0
  %2185 = vmatprep.subr.bf16.mxu0 0
  %2186 = vmatpush1.bf16.msra.mxu0 0
  %2187 = vmatprep.subr.bf16.mxu0 0
  %2188 = vmatpush1.bf16.msra.mxu0 0
  %2189 = vmatprep.subr.bf16.mxu0 0
  %2190 = vmatpush1.bf16.msra.mxu0 0
  %2191 = vmatprep.subr.bf16.mxu0 0
  %2192 = vmatpush1.bf16.msra.mxu0 0
  %2193 = vmatprep.subr.bf16.mxu0 0
  %2194 = vmatpush1.bf16.msra.mxu0 0
  %2195 = vmatprep.mubr.bf16.mxu0 0
  %2196 = vmatmul.mubr.bf16.gmra.mrb[0].mxu0 %v2161
  %v2197 = vpop.f32.mrb[0].mxu0
  %v2198 = vadd.f32 %v2158, %v2197
  %v2199 = vpop.f32.mrb[0].mxu0
  %v2200 = vadd.f32 %v2158, %v2199
  %v2201 = vpop.f32.mrb[0].mxu0
  %v2202 = vpop.f32.mrb[0].mxu0
  %2203 = vdwg.mxu0
  %2204 = vmatprep.subr.bf16.mxu0 %v146
  %2205 = vmatpush1.bf16.msra.mxu0 %v143
  %2206 = vmatprep.subr.bf16.mxu0 0
  %2207 = vmatpush1.bf16.msra.mxu0 0
  %2208 = vmatprep.subr.bf16.mxu0 0
  %2209 = vmatpush1.bf16.msra.mxu0 0
  %2210 = vmatprep.subr.bf16.mxu0 0
  %2211 = vmatpush1.bf16.msra.mxu0 0
  %2212 = vmatprep.subr.bf16.mxu0 0
  %2213 = vmatpush1.bf16.msra.mxu0 0
  %2214 = vmatprep.subr.bf16.mxu0 0
  %2215 = vmatpush1.bf16.msra.mxu0 0
  %2216 = vmatprep.subr.bf16.mxu0 0
  %2217 = vmatpush1.bf16.msra.mxu0 0
  %2218 = vmatprep.subr.bf16.mxu0 0
  %2219 = vmatpush1.bf16.msra.mxu0 0
  %2220 = vmatprep.subr.bf16.mxu0 0
  %2221 = vmatpush1.bf16.msra.mxu0 0
  %2222 = vmatprep.subr.bf16.mxu0 0
  %2223 = vmatpush1.bf16.msra.mxu0 0
  %2224 = vmatprep.subr.bf16.mxu0 0
  %2225 = vmatpush1.bf16.msra.mxu0 0
  %2226 = vmatprep.subr.bf16.mxu0 0
  %2227 = vmatpush1.bf16.msra.mxu0 0
  %2228 = vmatprep.subr.bf16.mxu0 0
  %2229 = vmatpush1.bf16.msra.mxu0 0
  %2230 = vmatprep.subr.bf16.mxu0 0
  %2231 = vmatpush1.bf16.msra.mxu0 0
  %2232 = vmatprep.subr.bf16.mxu0 0
  %2233 = vmatpush1.bf16.msra.mxu0 0
  %2234 = vmatprep.subr.bf16.mxu0 0
  %2235 = vmatpush1.bf16.msra.mxu0 0
  %2236 = vmatprep.mubr.bf16.mxu0 0
  %2237 = vmatmul.mubr.bf16.gmra.mrb[0].mxu0 %v2161
  %v2238 = vpop.f32.mrb[0].mxu0
  %v2239 = vadd.f32 %v2158, %v2238
  %v2240 = vpop.f32.mrb[0].mxu0
  %v2241 = vadd.f32 %v2158, %v2240
  %v2242 = vpop.f32.mrb[0].mxu0
  %v2243 = vpop.f32.mrb[0].mxu0
  %2244 = vdwg.mxu0
  %v2245 = vsub.f32 0.0, %v2198
  %v2246 = vsub.f32 0.0, %v2200
  %v2247 = vsub.f32 0.0, %v2239
  %v2248 = vsub.f32 0.0, %v2241
  %v2249 = vmul.f32 %v2245, 1.442695
  %v2250 = vpow.pop %v2249
  %v2251 = vmul.f32 %v2246, 1.442695
  %v2252 = vpow.pop %v2251
  %v2253 = vmul.f32 %v2247, 1.442695
  %v2254 = vpow.pop %v2253
  %v2255 = vmul.f32 %v2248, 1.442695
  %v2256 = vpow.pop %v2255
  %v2257 = vadd.f32 %v2250, 1.0
  %v2258 = vadd.f32 %v2252, 1.0
  %v2259 = vadd.f32 %v2254, 1.0
  %v2260 = vadd.f32 %v2256, 1.0
  %v2261 = vrcp.pop %v2257
  %v2262 = vrcp.pop %v2258
  %v2263 = vrcp.pop %v2259
  %v2264 = vrcp.pop %v2260
  %v2265 = vmul.f32 %v2198, %v2261
  %v2266 = vmul.f32 %v2200, %v2262
  %v2267 = vmul.f32 %v2239, %v2263
  %v2268 = vmul.f32 %v2241, %v2264
  %v2269 = vld [vmem:[%s1 + $0x48] sm:$0xf]
  %v2270 = vpack.c.bf16 %v2149, %v2149
  %v2271 = vpack.c.bf16 %v2150, %v2150
  %v2272 = vpack.c.bf16 %v2151, %v2151
  %v2273 = vpack.c.bf16 %v2152, %v2152
  %v2274 = vld [vmem:[%s1 + $0x50] sm:$0xf]
  %v2275 = vpack.c.bf16 %v2265, %v2265
  %v2276 = vpack.c.bf16 %v2266, %v2266
  %v2277 = vpack.c.bf16 %v2267, %v2267
  %v2278 = vpack.c.bf16 %v2268, %v2268
  %v2280 = vsel %vm131, %v2274, 0
  %v2283 = vsel %vm135, %v2275, 0
  %v2286 = vsel %vm135, %v2276, 0
  %v2289 = vsel %vm135, %v2277, 0
  %v2292 = vsel %vm135, %v2278, 0
  %2294 = vmatprep.subr.bf16.mxu0 %v2286
  %2295 = vmatpush1.bf16.msra.mxu0 %v2283
  %2296 = vmatprep.subr.bf16.mxu0 0
  %2297 = vmatpush1.bf16.msra.mxu0 0
  %2298 = vmatprep.subr.bf16.mxu0 0
  %2299 = vmatpush1.bf16.msra.mxu0 0
  %2300 = vmatprep.subr.bf16.mxu0 0
  %2301 = vmatpush1.bf16.msra.mxu0 0
  %2302 = vmatprep.subr.bf16.mxu0 0
  %2303 = vmatpush1.bf16.msra.mxu0 0
  %2304 = vmatprep.subr.bf16.mxu0 0
  %2305 = vmatpush1.bf16.msra.mxu0 0
  %2306 = vmatprep.subr.bf16.mxu0 0
  %2307 = vmatpush1.bf16.msra.mxu0 0
  %2308 = vmatprep.subr.bf16.mxu0 0
  %2309 = vmatpush1.bf16.msra.mxu0 0
  %2310 = vmatprep.subr.bf16.mxu0 0
  %2311 = vmatpush1.bf16.msra.mxu0 0
  %2312 = vmatprep.subr.bf16.mxu0 0
  %2313 = vmatpush1.bf16.msra.mxu0 0
  %2314 = vmatprep.subr.bf16.mxu0 0
  %2315 = vmatpush1.bf16.msra.mxu0 0
  %2316 = vmatprep.subr.bf16.mxu0 0
  %2317 = vmatpush1.bf16.msra.mxu0 0
  %2318 = vmatprep.subr.bf16.mxu0 0
  %2319 = vmatpush1.bf16.msra.mxu0 0
  %2320 = vmatprep.subr.bf16.mxu0 0
  %2321 = vmatpush1.bf16.msra.mxu0 0
  %2322 = vmatprep.subr.bf16.mxu0 0
  %2323 = vmatpush1.bf16.msra.mxu0 0
  %2324 = vmatprep.subr.bf16.mxu0 0
  %2325 = vmatpush1.bf16.msra.mxu0 0
  %2326 = vmatprep.mubr.bf16.mxu0 0
  %2327 = vmatmul.mubr.bf16.gmra.mrb[0].mxu0 %v2280
  %v2328 = vpop.f32.mrb[0].mxu0
  %v2329 = vadd.f32 0.0, %v2328
  %v2330 = vpop.f32.mrb[0].mxu0
  %v2331 = vadd.f32 0.0, %v2330
  %v2332 = vpop.f32.mrb[0].mxu0
  %v2333 = vpop.f32.mrb[0].mxu0
  %2334 = vdwg.mxu0
  %2335 = vmatprep.subr.bf16.mxu0 %v2292
  %2336 = vmatpush1.bf16.msra.mxu0 %v2289
  %2337 = vmatprep.subr.bf16.mxu0 0
  %2338 = vmatpush1.bf16.msra.mxu0 0
  %2339 = vmatprep.subr.bf16.mxu0 0
  %2340 = vmatpush1.bf16.msra.mxu0 0
  %2341 = vmatprep.subr.bf16.mxu0 0
  %2342 = vmatpush1.bf16.msra.mxu0 0
  %2343 = vmatprep.subr.bf16.mxu0 0
  %2344 = vmatpush1.bf16.msra.mxu0 0
  %2345 = vmatprep.subr.bf16.mxu0 0
  %2346 = vmatpush1.bf16.msra.mxu0 0
  %2347 = vmatprep.subr.bf16.mxu0 0
  %2348 = vmatpush1.bf16.msra.mxu0 0
  %2349 = vmatprep.subr.bf16.mxu0 0
  %2350 = vmatpush1.bf16.msra.mxu0 0
  %2351 = vmatprep.subr.bf16.mxu0 0
  %2352 = vmatpush1.bf16.msra.mxu0 0
  %2353 = vmatprep.subr.bf16.mxu0 0
  %2354 = vmatpush1.bf16.msra.mxu0 0
  %2355 = vmatprep.subr.bf16.mxu0 0
  %2356 = vmatpush1.bf16.msra.mxu0 0
  %2357 = vmatprep.subr.bf16.mxu0 0
  %2358 = vmatpush1.bf16.msra.mxu0 0
  %2359 = vmatprep.subr.bf16.mxu0 0
  %2360 = vmatpush1.bf16.msra.mxu0 0
  %2361 = vmatprep.subr.bf16.mxu0 0
  %2362 = vmatpush1.bf16.msra.mxu0 0
  %2363 = vmatprep.subr.bf16.mxu0 0
  %2364 = vmatpush1.bf16.msra.mxu0 0
  %2365 = vmatprep.subr.bf16.mxu0 0
  %2366 = vmatpush1.bf16.msra.mxu0 0
  %2367 = vmatprep.mubr.bf16.mxu0 0
  %2368 = vmatmul.mubr.bf16.gmra.mrb[0].mxu0 %v2280
  %v2369 = vpop.f32.mrb[0].mxu0
  %v2370 = vadd.f32 0.0, %v2369
  %v2371 = vpop.f32.mrb[0].mxu0
  %v2372 = vadd.f32 0.0, %v2371
  %v2373 = vpop.f32.mrb[0].mxu0
  %v2374 = vpop.f32.mrb[0].mxu0
  %2375 = vdwg.mxu0
  %v2377 = vsel %vm131, %v2269, 0
  %v2380 = vsel %vm135, %v2270, 0
  %v2383 = vsel %vm135, %v2271, 0
  %v2386 = vsel %vm135, %v2272, 0
  %v2389 = vsel %vm135, %v2273, 0
  %2391 = vmatprep.subr.bf16.mxu0 %v2383
  %2392 = vmatpush1.bf16.msra.mxu0 %v2380
  %2393 = vmatprep.subr.bf16.mxu0 0
  %2394 = vmatpush1.bf16.msra.mxu0 0
  %2395 = vmatprep.subr.bf16.mxu0 0
  %2396 = vmatpush1.bf16.msra.mxu0 0
  %2397 = vmatprep.subr.bf16.mxu0 0
  %2398 = vmatpush1.bf16.msra.mxu0 0
  %2399 = vmatprep.subr.bf16.mxu0 0
  %2400 = vmatpush1.bf16.msra.mxu0 0
  %2401 = vmatprep.subr.bf16.mxu0 0
  %2402 = vmatpush1.bf16.msra.mxu0 0
  %2403 = vmatprep.subr.bf16.mxu0 0
  %2404 = vmatpush1.bf16.msra.mxu0 0
  %2405 = vmatprep.subr.bf16.mxu0 0
  %2406 = vmatpush1.bf16.msra.mxu0 0
  %2407 = vmatprep.subr.bf16.mxu0 0
  %2408 = vmatpush1.bf16.msra.mxu0 0
  %2409 = vmatprep.subr.bf16.mxu0 0
  %2410 = vmatpush1.bf16.msra.mxu0 0
  %2411 = vmatprep.subr.bf16.mxu0 0
  %2412 = vmatpush1.bf16.msra.mxu0 0
  %2413 = vmatprep.subr.bf16.mxu0 0
  %2414 = vmatpush1.bf16.msra.mxu0 0
  %2415 = vmatprep.subr.bf16.mxu0 0
  %2416 = vmatpush1.bf16.msra.mxu0 0
  %2417 = vmatprep.subr.bf16.mxu0 0
  %2418 = vmatpush1.bf16.msra.mxu0 0
  %2419 = vmatprep.subr.bf16.mxu0 0
  %2420 = vmatpush1.bf16.msra.mxu0 0
  %2421 = vmatprep.subr.bf16.mxu0 0
  %2422 = vmatpush1.bf16.msra.mxu0 0
  %2423 = vmatprep.mubr.bf16.mxu0 0
  %2424 = vmatmul.mubr.bf16.gmra.mrb[0].mxu0 %v2377
  %v2425 = vpop.f32.mrb[0].mxu0
  %v2426 = vadd.f32 %v2329, %v2425
  %v2427 = vpop.f32.mrb[0].mxu0
  %v2428 = vadd.f32 %v2331, %v2427
  %v2429 = vpop.f32.mrb[0].mxu0
  %v2430 = vpop.f32.mrb[0].mxu0
  %2431 = vdwg.mxu0
  %2432 = vmatprep.subr.bf16.mxu0 %v2389
  %2433 = vmatpush1.bf16.msra.mxu0 %v2386
  %2434 = vmatprep.subr.bf16.mxu0 0
  %2435 = vmatpush1.bf16.msra.mxu0 0
  %2436 = vmatprep.subr.bf16.mxu0 0
  %2437 = vmatpush1.bf16.msra.mxu0 0
  %2438 = vmatprep.subr.bf16.mxu0 0
  %2439 = vmatpush1.bf16.msra.mxu0 0
  %2440 = vmatprep.subr.bf16.mxu0 0
  %2441 = vmatpush1.bf16.msra.mxu0 0
  %2442 = vmatprep.subr.bf16.mxu0 0
  %2443 = vmatpush1.bf16.msra.mxu0 0
  %2444 = vmatprep.subr.bf16.mxu0 0
  %2445 = vmatpush1.bf16.msra.mxu0 0
  %2446 = vmatprep.subr.bf16.mxu0 0
  %2447 = vmatpush1.bf16.msra.mxu0 0
  %2448 = vmatprep.subr.bf16.mxu0 0
  %2449 = vmatpush1.bf16.msra.mxu0 0
  %2450 = vmatprep.subr.bf16.mxu0 0
  %2451 = vmatpush1.bf16.msra.mxu0 0
  %2452 = vmatprep.subr.bf16.mxu0 0
  %2453 = vmatpush1.bf16.msra.mxu0 0
  %2454 = vmatprep.subr.bf16.mxu0 0
  %2455 = vmatpush1.bf16.msra.mxu0 0
  %2456 = vmatprep.subr.bf16.mxu0 0
  %2457 = vmatpush1.bf16.msra.mxu0 0
  %2458 = vmatprep.subr.bf16.mxu0 0
  %2459 = vmatpush1.bf16.msra.mxu0 0
  %2460 = vmatprep.subr.bf16.mxu0 0
  %2461 = vmatpush1.bf16.msra.mxu0 0
  %2462 = vmatprep.subr.bf16.mxu0 0
  %2463 = vmatpush1.bf16.msra.mxu0 0
  %2464 = vmatprep.mubr.bf16.mxu0 0
  %2465 = vmatmul.mubr.bf16.gmra.mrb[0].mxu0 %v2377
  %v2466 = vpop.f32.mrb[0].mxu0
  %v2467 = vadd.f32 %v2370, %v2466
  %v2468 = vpop.f32.mrb[0].mxu0
  %v2469 = vadd.f32 %v2372, %v2468
  %v2470 = vpop.f32.mrb[0].mxu0
  %v2471 = vpop.f32.mrb[0].mxu0
  %2472 = vdwg.mxu0
  %v2473 = vld [vmem:[%s2 + $0x30] sm:$0xff]
  %2475 = vset.pattern.permute.xlu0 0
  %2476 = vperm.xlu0 %2475, %v2473
  %v2477 = vpop.permute.xlu0 %2476
  %v2479 = vadd.f32 %v2426, %v2477
  %v2480 = vadd.f32 %v2428, %v2477
  %v2481 = vadd.f32 %v2467, %v2477
  %v2482 = vadd.f32 %v2469, %v2477
  %v2483 = vsub.f32 0.0, %v2479
  %v2484 = vsub.f32 0.0, %v2480
  %v2485 = vsub.f32 0.0, %v2481
  %v2486 = vsub.f32 0.0, %v2482
  %v2487 = vmul.f32 %v2483, 1.442695
  %v2488 = vpow.pop %v2487
  %v2489 = vmul.f32 %v2484, 1.442695
  %v2490 = vpow.pop %v2489
  %v2491 = vmul.f32 %v2485, 1.442695
  %v2492 = vpow.pop %v2491
  %v2493 = vmul.f32 %v2486, 1.442695
  %v2494 = vpow.pop %v2493
  %v2495 = vadd.f32 %v2488, 1.0
  %v2496 = vadd.f32 %v2490, 1.0
  %v2497 = vadd.f32 %v2492, 1.0
  %v2498 = vadd.f32 %v2494, 1.0
  %v2499 = vrcp.pop %v2495
  %v2500 = vrcp.pop %v2496
  %v2501 = vrcp.pop %v2497
  %v2502 = vrcp.pop %v2498
  %v2503 = vmul.f32 %v2479, %v2499
  %v2504 = vmul.f32 %v2480, %v2500
  %v2505 = vmul.f32 %v2481, %v2501
  %v2506 = vmul.f32 %v2482, %v2502
  %2507 = vst [vmem:[%s3] sm:$0xff] %v2503
  %2508 = vst [vmem:[%s3 + $0x8] sm:$0xff] %v2504
  %2509 = vst [vmem:[%s3 + $0x10] sm:$0xff] %v2505
  %2510 = vst [vmem:[%s3 + $0x18] sm:$0xff] %v2506
  // Predicated region
  $region14: #{simple_spp_forward.1} parent=0 // pred_check
    _
  $region15: #{simple_spp_forward.1} parent=0 // pred_check_branch
    %2512 = sbr.rel (0) target = $region17
  $region16: #{simple_spp_forward.1} parent=0 // pred_region
    _
  $region17: #{simple_spp_forward.1} parent=0 // pred_fallthru
    _
  // Predicated region
  $region18: #{simple_spp_forward.1} parent=0 // pred_check
    _
  $region19: #{simple_spp_forward.1} parent=0 // pred_check_branch
    %2514 = sbr.rel (0) target = $region21
  $region20: #{simple_spp_forward.1} parent=0 // pred_region
    _
  $region21: #{simple_spp_forward.1} parent=0 // pred_fallthru
    _

</llo_original>
